<compile_context>
chip_gen: v7x
topology: tpu7x:2x2x1
jax: 0.10.0
libtpu: 0.0.40
codegen_flags: <defaults>
</compile_context>

<pallas_src>
import jax
import jax.numpy as jnp
from jax import lax
from jax.experimental import pallas as pl
from jax.experimental.pallas import tpu as pltpu

EPS = 1e-5
LANE = 128


def _round_up(x, m):
    return (x + m - 1) // m * m


# ----------------------------- Pallas kernels ------------------------------

def _maxpool_kernel(xe_ref, xo_ref, o_ref):
    # xe/xo: (TB, H2, 2, W2, C) -- even / odd W columns; dim 2 holds the H-pair (untiled dim).
    xe = xe_ref[...]
    xo = xo_ref[...]
    m = jnp.maximum(jnp.maximum(xe[:, :, 0], xe[:, :, 1]),
                    jnp.maximum(xo[:, :, 0], xo[:, :, 1]))
    o_ref[...] = m.astype(o_ref.dtype)


def _conv_tap_kernel(x_ref, w_ref, b_ref, y_ref, st_ref, acc_ref):
    # x_ref : (1, 1, H+2, W+2, Cp)   one padded depth-plane (depth tap kd chosen by index_map)
    # w_ref : (1, 3, 3, Cp, Coutp)   weights for depth tap kd
    # b_ref : (1, Coutp)             conv bias (resident)
    # y_ref : (1, 1, H*W, Coutp)     conv+bias output (written at last kd)
    # st_ref: (1, 1, 2, Coutp)       per-plane [sum, sum-of-squares] of y (for BatchNorm)
    # acc_ref: (H*W, Coutp) f32      VMEM accumulator across the kd reduction axis
    kd = pl.program_id(2)
    hp, wp, cp = x_ref.shape[2], x_ref.shape[3], x_ref.shape[4]
    h, w = hp - 2, wp - 2
    hw, coutp = acc_ref.shape

    @pl.when(kd == 0)
    def _init():
        acc_ref[...] = jnp.zeros_like(acc_ref)

    part = jnp.zeros((hw, coutp), jnp.float32)
    for kh in range(3):
        for kw in range(3):
            patch = x_ref[0, 0, kh:kh + h, kw:kw + w, :].reshape(hw, cp)
            part = part + jnp.dot(patch, w_ref[0, kh, kw],
                                  preferred_element_type=jnp.float32)
    acc_ref[...] = acc_ref[...] + part

    @pl.when(kd == pl.num_programs(2) - 1)
    def _finalize():
        y = acc_ref[...] + b_ref[...]                            # conv bias, f32
        y_ref[0, 0] = y.astype(y_ref.dtype)
        st_ref[0, 0, 0:1, :] = jnp.sum(y, axis=0, keepdims=True)
        st_ref[0, 0, 1:2, :] = jnp.sum(y * y, axis=0, keepdims=True)


def _affine_relu_kernel(y_ref, scale_ref, shift_ref, o_ref):
    # Lane-dense elementwise BN-apply + ReLU:  out = max(y*scale + shift, 0)
    o_ref[...] = jnp.maximum(y_ref[...] * scale_ref[...] + shift_ref[...],
                             0.0).astype(o_ref.dtype)


# ------------------------------ wrappers ------------------------------------

def _maxpool_1x2x2(x_ncdhw, out_dtype):
    """MaxPool3d(kernel=(1,2,2), stride=(1,2,2), pad=0); returns (N, D, H/2, W/2, C)."""
    N, C, D, H, W = x_ncdhw.shape
    assert H % 2 == 0 and W % 2 == 0
    H2, W2 = H // 2, W // 2
    nd = N * D
    x = jnp.transpose(x_ncdhw, (0, 2, 3, 4, 1))                  # NDHWC (needed by convs anyway)
    xe = x[:, :, :, 0::2, :].reshape(nd, H2, 2, W2, C)           # even W columns, H split in pairs
    xo = x[:, :, :, 1::2, :].reshape(nd, H2, 2, W2, C)           # odd  W columns

    blk_bytes = H2 * 2 * W2 * C * x.dtype.itemsize * 2           # both inputs, per leading row
    tb = 1
    for t in (8, 4, 2):                                          # biggest tile that still pipelines
        if nd % t == 0 and nd // t >= 2 and t * blk_bytes <= (4 << 20):
            tb = t
            break

    in_spec = pl.BlockSpec((tb, H2, 2, W2, C), lambda i: (i, 0, 0, 0, 0))
    out = pl.pallas_call(
        _maxpool_kernel,
        out_shape=jax.ShapeDtypeStruct((nd, H2, W2, C), out_dtype),
        grid=(nd // tb,),
        in_specs=[in_spec, in_spec],
        out_specs=pl.BlockSpec((tb, H2, W2, C), lambda i: (i, 0, 0, 0)),
        compiler_params=pltpu.CompilerParams(dimension_semantics=("parallel",)),
    )(xe, xo)
    return out.reshape(N, D, H2, W2, C)


def _conv3x3x3(a_pad, w, b):
    """3x3x3 'same' conv as a 3-step depth-tap reduction x 9 in-plane taps (no HBM im2col).

    a_pad: (N, D+2, H+2, W+2, Cp)  spatially + channel padded activation (compute dtype)
    w    : (3, 3, 3, Cp, Coutp)    channel padded weights (compute dtype)
    b    : (1, Coutp) float32      conv bias
    Returns y: (N, D, H*W, Coutp) conv+bias (compute dtype), stats: (N, D, 2, Coutp) f32.
    """
    N, dp, hp, wp, cp = a_pad.shape
    D, H, W = dp - 2, hp - 2, wp - 2
    coutp = w.shape[-1]
    hw = H * W

    y, st = pl.pallas_call(
        _conv_tap_kernel,
        out_shape=(jax.ShapeDtypeStruct((N, D, hw, coutp), a_pad.dtype),
                   jax.ShapeDtypeStruct((N, D, 2, coutp), jnp.float32)),
        grid=(N, D, 3),
        in_specs=[
            # one padded depth plane, shifted by the depth tap kd
            pl.BlockSpec((1, 1, hp, wp, cp), lambda n, d, kd: (n, d + kd, 0, 0, 0)),
            # weights for depth tap kd
            pl.BlockSpec((1, 3, 3, cp, coutp), lambda n, d, kd: (kd, 0, 0, 0, 0)),
            # resident conv bias
            pl.BlockSpec((1, coutp), lambda n, d, kd: (0, 0)),
        ],
        out_specs=(
            pl.BlockSpec((1, 1, hw, coutp), lambda n, d, kd: (n, d, 0, 0)),
            pl.BlockSpec((1, 1, 2, coutp), lambda n, d, kd: (n, d, 0, 0)),
        ),
        scratch_shapes=[pltpu.VMEM((hw, coutp), jnp.float32)],
        compiler_params=pltpu.CompilerParams(
            dimension_semantics=("parallel", "parallel", "arbitrary")),
    )(a_pad, w, b)
    return y, st


def _bn_relu(y, stats, gamma_p, beta_p, eps, out_dtype):
    """BatchNorm3d (training-mode batch statistics, biased variance) + ReLU."""
    N, D, hw, cp = y.shape
    cnt = N * D * hw
    total = jnp.sum(stats, axis=(0, 1))                       # (2, cp): [sum, sumsq] per channel
    mu = total[0] / cnt
    var = jnp.maximum(total[1] / cnt - mu * mu, 0.0)          # biased variance
    scale = gamma_p * lax.rsqrt(var + eps)
    shift = beta_p - mu * scale

    R = N * D * hw
    tr = min(256, R)
    out = pl.pallas_call(
        _affine_relu_kernel,
        out_shape=jax.ShapeDtypeStruct((R, cp), out_dtype),
        grid=(pl.cdiv(R, tr),),
        in_specs=[
            pl.BlockSpec((tr, cp), lambda i: (i, 0)),
            pl.BlockSpec((1, cp), lambda i: (0, 0)),          # resident per-channel scale
            pl.BlockSpec((1, cp), lambda i: (0, 0)),          # resident per-channel shift
        ],
        out_specs=pl.BlockSpec((tr, cp), lambda i: (i, 0)),
        compiler_params=pltpu.CompilerParams(dimension_semantics=("parallel",)),
    )(y.reshape(R, cp),
      scale.reshape(1, cp).astype(jnp.float32),
      shift.reshape(1, cp).astype(jnp.float32))
    return out.reshape(N, D, hw, cp)


def _prep_weight(w_oidhw, cin_p, cout_p, dtype):
    o, i = w_oidhw.shape[:2]
    w = jnp.transpose(w_oidhw, (2, 3, 4, 1, 0))               # (3,3,3,Cin,Cout)
    w = jnp.pad(w, ((0, 0), (0, 0), (0, 0), (0, cin_p - i), (0, cout_p - o)))
    return w.astype(dtype)


def _prep_bias(b, cout_p):
    return jnp.pad(b.astype(jnp.float32), (0, cout_p - b.shape[0])).reshape(1, cout_p)


def down_conv_block2(x_ncdhw, params, *, eps=EPS, compute_dtype=jnp.bfloat16):
    """DownConvBlock2 forward.  x_ncdhw: (N, Cin, D, H, W) -> (N, Cout, D, H/2, W/2)."""
    N, Cin, D, H, W = x_ncdhw.shape
    Cout = params["b1"].shape[0]
    H2, W2 = H // 2, W // 2
    cin_p = _round_up(Cin, LANE)
    cout_p = _round_up(Cout, LANE)

    # MaxPool3d((1,2,2))
    pooled = _maxpool_1x2x2(x_ncdhw, out_dtype=compute_dtype)     # (N, D, H2, W2, Cin)

    gamma_p = jnp.pad(params["gamma"].astype(jnp.float32), (0, cout_p - Cout))
    beta_p = jnp.pad(params["beta"].astype(jnp.float32), (0, cout_p - Cout))

    # conv1 -> BN(batch stats) -> ReLU
    a = jnp.pad(pooled, ((0, 0), (1, 1), (1, 1), (1, 1), (0, cin_p - Cin)))
    y1, st1 = _conv3x3x3(a, _prep_weight(params["w1"], cin_p, cout_p, compute_dtype),
                         _prep_bias(params["b1"], cout_p))
    a1 = _bn_relu(y1, st1, gamma_p, beta_p, eps, out_dtype=compute_dtype)
    a1 = a1.reshape(N, D, H2, W2, cout_p)

    # conv2 -> BN(batch stats, SAME gamma/beta) -> ReLU
    a1 = jnp.pad(a1, ((0, 0), (1, 1), (1, 1), (1, 1), (0, 0)))
    y2, st2 = _conv3x3x3(a1, _prep_weight(params["w2"], cout_p, cout_p, compute_dtype),
                         _prep_bias(params["b2"], cout_p))
    a2 = _bn_relu(y2, st2, gamma_p, beta_p, eps, out_dtype=jnp.float32)
    a2 = a2.reshape(N, D, H2, W2, cout_p)[..., :Cout]

    return jnp.transpose(a2, (0, 4, 1, 2, 3))                    # back to NCDHW


# --------------------------- pure-JAX reference -----------------------------

def _ref_conv_bn_relu(x, w_oidhw, b, gamma, beta, eps=EPS):
    y = lax.conv_general_dilated(x, w_oidhw, window_strides=(1, 1, 1),
                                 padding=((1, 1), (1, 1), (1, 1)),
                                 dimension_numbers=("NCDHW", "OIDHW", "NCDHW"),
                                 precision=lax.Precision.HIGHEST)
    y = y + b.reshape(1, -1, 1, 1, 1)
    mu = jnp.mean(y, axis=(0, 2, 3, 4), keepdims=True)
    var = jnp.mean(jnp.square(y - mu), axis=(0, 2, 3, 4), keepdims=True)
    yhat = (y - mu) * lax.rsqrt(var + eps)
    return jnp.maximum(yhat * gamma.reshape(1, -1, 1, 1, 1)
                       + beta.reshape(1, -1, 1, 1, 1), 0.0)


def reference_forward(x_ncdhw, params, eps=EPS):
    x = lax.reduce_window(x_ncdhw, -jnp.inf, lax.max,
                          (1, 1, 1, 2, 2), (1, 1, 1, 2, 2), "VALID")
    x = _ref_conv_bn_relu(x, params["w1"], params["b1"],
                          params["gamma"], params["beta"], eps)
    x = _ref_conv_bn_relu(x, params["w2"], params["b2"],
                          params["gamma"], params["beta"], eps)
    return x


# --------------------------------- main --------------------------------------

if __name__ == "__main__":
    N, Cin, Cout, D, H, W = 2, 4, 8, 4, 16, 16
    key = jax.random.PRNGKey(0)
    ks = jax.random.split(key, 6)
    x = jax.random.normal(ks[0], (N, Cin, D, H, W), jnp.float32)

    # Deterministic synthetic parameters (PyTorch layouts: Conv3d weight = OIDHW).
    w1 = jax.random.normal(ks[1], (Cout, Cin, 3, 3, 3), jnp.float32) / (27 * Cin) ** 0.5
    b1 = 0.1 * jax.random.normal(ks[2], (Cout,), jnp.float32)
    w2 = jax.random.normal(ks[3], (Cout, Cout, 3, 3, 3), jnp.float32) / (27 * Cout) ** 0.5
    b2 = 0.1 * jax.random.normal(ks[4], (Cout,), jnp.float32)
    gb = jax.random.normal(ks[5], (2, Cout), jnp.float32)
    params = {"w1": w1, "b1": b1, "w2": w2, "b2": b2,
              "gamma": 1.0 + 0.1 * gb[0], "beta": 0.1 * gb[1]}

    ref = jax.block_until_ready(reference_forward(x, params))

    # bf16 MXU path (production choice on v6e/v7x); tolerance sized for bf16 rounding through
    # two 27-tap convolutions + batch-norm -- structural bugs would give O(1) errors.
    fwd_bf16 = jax.jit(lambda xx, pp: down_conv_block2(xx, pp, compute_dtype=jnp.bfloat16))
    out_bf16 = jax.block_until_ready(fwd_bf16(x, params))
    assert out_bf16.shape == (N, Cout, D, H // 2, W // 2), out_bf16.shape
    err_bf16 = float(jnp.max(jnp.abs(out_bf16 - ref)))
    if err_bf16 > 1e-1:
        raise AssertionError(f"bf16 Pallas output mismatch vs reference: max_err={err_bf16}")

    # f32 path (tight check of the kernel structure itself).
    fwd_f32 = jax.jit(lambda xx, pp: down_conv_block2(xx, pp, compute_dtype=jnp.float32))
    out_f32 = jax.block_until_ready(fwd_f32(x, params))
    err_f32 = float(jnp.max(jnp.abs(out_f32 - ref)))
    if err_f32 > 5e-2:
        raise AssertionError(f"f32 Pallas output mismatch vs reference: max_err={err_f32}")

    print("KERNEL_OK")
</pallas_src>

<mosaic_0001>
module attributes {stable_mosaic.version = 11 : i64} {
  func.func @_maxpool_kernel(%arg0: i32, %arg1: memref<4x8x2x8x4xf32, #tpu.memory_space<vmem>>, %arg2: memref<4x8x2x8x4xf32, #tpu.memory_space<vmem>>, %arg3: memref<4x8x8x4xbf16, #tpu.memory_space<vmem>>) attributes {dimension_semantics = [#tpu.dimension_semantics<parallel>], iteration_bounds = array<i64: 2>, scalar_prefetch = 0 : i64, scratch_operands = 0 : i64, tpu.core_type = #tpu.core_type<tc>, window_params = [{transform_indices = @transform_0, window_bounds = array<i64: 4, 8, 2, 8, 4>}, {transform_indices = @transform_1, window_bounds = array<i64: 4, 8, 2, 8, 4>}, {transform_indices = @transform_2, window_bounds = array<i64: 4, 8, 8, 4>}]} {
    %c0 = arith.constant 0 : index
    %c0_0 = arith.constant 0 : index
    %c0_1 = arith.constant 0 : index
    %c0_2 = arith.constant 0 : index
    %c0_3 = arith.constant 0 : index
    %0 = vector.load %arg1[%c0, %c0_0, %c0_1, %c0_2, %c0_3] : memref<4x8x2x8x4xf32, #tpu.memory_space<vmem>>, vector<4x8x2x8x4xf32>
    %c0_4 = arith.constant 0 : index
    %c0_5 = arith.constant 0 : index
    %c0_6 = arith.constant 0 : index
    %c0_7 = arith.constant 0 : index
    %c0_8 = arith.constant 0 : index
    %1 = vector.load %arg2[%c0_4, %c0_5, %c0_6, %c0_7, %c0_8] : memref<4x8x2x8x4xf32, #tpu.memory_space<vmem>>, vector<4x8x2x8x4xf32>
    %2 = vector.extract_strided_slice %0 {offsets = [0, 0, 0, 0, 0], sizes = [4, 8, 1, 8, 4], strides = [1, 1, 1, 1, 1]} : vector<4x8x2x8x4xf32> to vector<4x8x1x8x4xf32>
    %3 = vector.shape_cast %2 : vector<4x8x1x8x4xf32> to vector<4x8x8x4xf32>
    %4 = vector.extract_strided_slice %0 {offsets = [0, 0, 1, 0, 0], sizes = [4, 8, 1, 8, 4], strides = [1, 1, 1, 1, 1]} : vector<4x8x2x8x4xf32> to vector<4x8x1x8x4xf32>
    %5 = vector.shape_cast %4 : vector<4x8x1x8x4xf32> to vector<4x8x8x4xf32>
    %6 = arith.maximumf %3, %5 : vector<4x8x8x4xf32>
    %7 = vector.extract_strided_slice %1 {offsets = [0, 0, 0, 0, 0], sizes = [4, 8, 1, 8, 4], strides = [1, 1, 1, 1, 1]} : vector<4x8x2x8x4xf32> to vector<4x8x1x8x4xf32>
    %8 = vector.shape_cast %7 : vector<4x8x1x8x4xf32> to vector<4x8x8x4xf32>
    %9 = vector.extract_strided_slice %1 {offsets = [0, 0, 1, 0, 0], sizes = [4, 8, 1, 8, 4], strides = [1, 1, 1, 1, 1]} : vector<4x8x2x8x4xf32> to vector<4x8x1x8x4xf32>
    %10 = vector.shape_cast %9 : vector<4x8x1x8x4xf32> to vector<4x8x8x4xf32>
    %11 = arith.maximumf %8, %10 : vector<4x8x8x4xf32>
    %12 = arith.maximumf %6, %11 : vector<4x8x8x4xf32>
    %13 = arith.truncf %12 : vector<4x8x8x4xf32> to vector<4x8x8x4xbf16>
    %c0_9 = arith.constant 0 : index
    %c0_10 = arith.constant 0 : index
    %c0_11 = arith.constant 0 : index
    %c0_12 = arith.constant 0 : index
    %14 = vector.load %arg3[%c0_9, %c0_10, %c0_11, %c0_12] : memref<4x8x8x4xbf16, #tpu.memory_space<vmem>>, vector<4x8x8x4xbf16>
    tpu.vector_store %arg3[%c0_9, %c0_10, %c0_11, %c0_12], %13 {strides = array<i32>} : memref<4x8x8x4xbf16, #tpu.memory_space<vmem>>, vector<4x8x8x4xbf16>,
    return
  }
  func.func @transform_0(%arg0: i32) -> (i32, i32, i32, i32, i32) {
    %c0_i32 = arith.constant 0 : i32
    %c0_i32_0 = arith.constant 0 : i32
    %c0_i32_1 = arith.constant 0 : i32
    %c0_i32_2 = arith.constant 0 : i32
    %c0_i32_3 = arith.constant 0 : i32
    return %arg0, %c0_i32, %c0_i32_0, %c0_i32_1, %c0_i32_2 : i32, i32, i32, i32, i32
  }
  func.func @transform_1(%arg0: i32) -> (i32, i32, i32, i32, i32) {
    %c0_i32 = arith.constant 0 : i32
    %c0_i32_0 = arith.constant 0 : i32
    %c0_i32_1 = arith.constant 0 : i32
    %c0_i32_2 = arith.constant 0 : i32
    %c0_i32_3 = arith.constant 0 : i32
    return %arg0, %c0_i32, %c0_i32_0, %c0_i32_1, %c0_i32_2 : i32, i32, i32, i32, i32
  }
  func.func @transform_2(%arg0: i32) -> (i32, i32, i32, i32) {
    %c0_i32 = arith.constant 0 : i32
    %c0_i32_0 = arith.constant 0 : i32
    %c0_i32_1 = arith.constant 0 : i32
    %c0_i32_2 = arith.constant 0 : i32
    return %arg0, %c0_i32, %c0_i32_0, %c0_i32_1 : i32, i32, i32, i32
  }
}

module attributes {stable_mosaic.version = 11 : i64} {
  func.func @_conv_tap_kernel(%arg0: i32, %arg1: i32, %arg2: i32, %arg3: memref<1x1x10x10x128xbf16, #tpu.memory_space<vmem>>, %arg4: memref<1x3x3x128x128xbf16, #tpu.memory_space<vmem>>, %arg5: memref<1x128xf32, #tpu.memory_space<vmem>>, %arg6: memref<1x1x64x128xbf16, #tpu.memory_space<vmem>>, %arg7: memref<1x1x2x128xf32, #tpu.memory_space<vmem>>, %arg8: memref<64x128xf32, #tpu.memory_space<vmem>>) attributes {dimension_semantics = [#tpu.dimension_semantics<parallel>, #tpu.dimension_semantics<parallel>, #tpu.dimension_semantics<arbitrary>], iteration_bounds = array<i64: 2, 4, 3>, scalar_prefetch = 0 : i64, scratch_operands = 1 : i64, tpu.core_type = #tpu.core_type<tc>, window_params = [{transform_indices = @transform_0, window_bounds = array<i64: 1, 1, 10, 10, 128>}, {transform_indices = @transform_1, window_bounds = array<i64: 1, 3, 3, 128, 128>}, {pipeline_mode = #tpu.pipeline_mode<synchronous>, transform_indices = @transform_2, window_bounds = array<i64: 1, 128>}, {transform_indices = @transform_3, window_bounds = array<i64: 1, 1, 64, 128>}, {transform_indices = @transform_4, window_bounds = array<i64: 1, 1, 2, 128>}]} {
    %c0_i32 = arith.constant 0 : i32
    %0 = arith.cmpi eq, %arg2, %c0_i32 : i32
    %1 = arith.extui %0 : i1 to i32
    %c0_i32_0 = arith.constant 0 : i32
    %2 = arith.cmpi ne, %1, %c0_i32_0 : i32
    scf.if %2 {
      %cst_102 = arith.constant 0.000000e+00 : f32
      %73 = vector.broadcast %cst_102 : f32 to vector<64x128xf32>
      %c0_103 = arith.constant 0 : index
      %c0_104 = arith.constant 0 : index
      %74 = vector.load %arg8[%c0_103, %c0_104] : memref<64x128xf32, #tpu.memory_space<vmem>>, vector<64x128xf32>
      tpu.vector_store %arg8[%c0_103, %c0_104], %73 {strides = array<i32>} : memref<64x128xf32, #tpu.memory_space<vmem>>, vector<64x128xf32>,
    } else {
    }
    %cst = arith.constant 0.000000e+00 : f32
    %3 = vector.broadcast %cst : f32 to vector<64x128xf32>
    %c0 = arith.constant 0 : index
    %c0_1 = arith.constant 0 : index
    %c0_2 = arith.constant 0 : index
    %c0_3 = arith.constant 0 : index
    %c0_4 = arith.constant 0 : index
    %4 = vector.load %arg3[%c0, %c0_1, %c0_2, %c0_3, %c0_4] : memref<1x1x10x10x128xbf16, #tpu.memory_space<vmem>>, vector<1x1x8x8x128xbf16>
    %5 = vector.shape_cast %4 : vector<1x1x8x8x128xbf16> to vector<8x8x128xbf16>
    %6 = vector.shape_cast %5 : vector<8x8x128xbf16> to vector<64x128xbf16>
    %c0_5 = arith.constant 0 : index
    %c0_6 = arith.constant 0 : index
    %c0_7 = arith.constant 0 : index
    %c0_8 = arith.constant 0 : index
    %c0_9 = arith.constant 0 : index
    %7 = vector.load %arg4[%c0_5, %c0_6, %c0_7, %c0_8, %c0_9] : memref<1x3x3x128x128xbf16, #tpu.memory_space<vmem>>, vector<1x1x1x128x128xbf16>
    %8 = vector.shape_cast %7 : vector<1x1x1x128x128xbf16> to vector<128x128xbf16>
    %cst_10 = arith.constant dense<0.000000e+00> : vector<64x128xf32>
    %9 = tpu.matmul %6, %8, %cst_10 {dimension_numbers = #tpu.dot_dimension_numbers<[1], [0], [0], [1], [0, 0, 1, 1], [], []>} : vector<64x128xbf16>, vector<128x128xbf16>, vector<64x128xf32> -> vector<64x128xf32>
    %10 = arith.addf %3, %9 : vector<64x128xf32>
    %c0_11 = arith.constant 0 : index
    %c0_12 = arith.constant 0 : index
    %c0_13 = arith.constant 0 : index
    %c1 = arith.constant 1 : index
    %c0_14 = arith.constant 0 : index
    %11 = vector.load %arg3[%c0_11, %c0_12, %c0_13, %c1, %c0_14] : memref<1x1x10x10x128xbf16, #tpu.memory_space<vmem>>, vector<1x1x8x8x128xbf16>
    %12 = vector.shape_cast %11 : vector<1x1x8x8x128xbf16> to vector<8x8x128xbf16>
    %13 = vector.shape_cast %12 : vector<8x8x128xbf16> to vector<64x128xbf16>
    %c0_15 = arith.constant 0 : index
    %c0_16 = arith.constant 0 : index
    %c1_17 = arith.constant 1 : index
    %c0_18 = arith.constant 0 : index
    %c0_19 = arith.constant 0 : index
    %14 = vector.load %arg4[%c0_15, %c0_16, %c1_17, %c0_18, %c0_19] : memref<1x3x3x128x128xbf16, #tpu.memory_space<vmem>>, vector<1x1x1x128x128xbf16>
    %15 = vector.shape_cast %14 : vector<1x1x1x128x128xbf16> to vector<128x128xbf16>
    %cst_20 = arith.constant dense<0.000000e+00> : vector<64x128xf32>
    %16 = tpu.matmul %13, %15, %cst_20 {dimension_numbers = #tpu.dot_dimension_numbers<[1], [0], [0], [1], [0, 0, 1, 1], [], []>} : vector<64x128xbf16>, vector<128x128xbf16>, vector<64x128xf32> -> vector<64x128xf32>
    %17 = arith.addf %10, %16 : vector<64x128xf32>
    %c0_21 = arith.constant 0 : index
    %c0_22 = arith.constant 0 : index
    %c0_23 = arith.constant 0 : index
    %c2 = arith.constant 2 : index
    %c0_24 = arith.constant 0 : index
    %18 = vector.load %arg3[%c0_21, %c0_22, %c0_23, %c2, %c0_24] : memref<1x1x10x10x128xbf16, #tpu.memory_space<vmem>>, vector<1x1x8x8x128xbf16>
    %19 = vector.shape_cast %18 : vector<1x1x8x8x128xbf16> to vector<8x8x128xbf16>
    %20 = vector.shape_cast %19 : vector<8x8x128xbf16> to vector<64x128xbf16>
    %c0_25 = arith.constant 0 : index
    %c0_26 = arith.constant 0 : index
    %c2_27 = arith.constant 2 : index
    %c0_28 = arith.constant 0 : index
    %c0_29 = arith.constant 0 : index
    %21 = vector.load %arg4[%c0_25, %c0_26, %c2_27, %c0_28, %c0_29] : memref<1x3x3x128x128xbf16, #tpu.memory_space<vmem>>, vector<1x1x1x128x128xbf16>
    %22 = vector.shape_cast %21 : vector<1x1x1x128x128xbf16> to vector<128x128xbf16>
    %cst_30 = arith.constant dense<0.000000e+00> : vector<64x128xf32>
    %23 = tpu.matmul %20, %22, %cst_30 {dimension_numbers = #tpu.dot_dimension_numbers<[1], [0], [0], [1], [0, 0, 1, 1], [], []>} : vector<64x128xbf16>, vector<128x128xbf16>, vector<64x128xf32> -> vector<64x128xf32>
    %24 = arith.addf %17, %23 : vector<64x128xf32>
    %c0_31 = arith.constant 0 : index
    %c0_32 = arith.constant 0 : index
    %c1_33 = arith.constant 1 : index
    %c0_34 = arith.constant 0 : index
    %c0_35 = arith.constant 0 : index
    %25 = vector.load %arg3[%c0_31, %c0_32, %c1_33, %c0_34, %c0_35] : memref<1x1x10x10x128xbf16, #tpu.memory_space<vmem>>, vector<1x1x8x8x128xbf16>
    %26 = vector.shape_cast %25 : vector<1x1x8x8x128xbf16> to vector<8x8x128xbf16>
    %27 = vector.shape_cast %26 : vector<8x8x128xbf16> to vector<64x128xbf16>
    %c0_36 = arith.constant 0 : index
    %c1_37 = arith.constant 1 : index
    %c0_38 = arith.constant 0 : index
    %c0_39 = arith.constant 0 : index
    %c0_40 = arith.constant 0 : index
    %28 = vector.load %arg4[%c0_36, %c1_37, %c0_38, %c0_39, %c0_40] : memref<1x3x3x128x128xbf16, #tpu.memory_space<vmem>>, vector<1x1x1x128x128xbf16>
    %29 = vector.shape_cast %28 : vector<1x1x1x128x128xbf16> to vector<128x128xbf16>
    %cst_41 = arith.constant dense<0.000000e+00> : vector<64x128xf32>
    %30 = tpu.matmul %27, %29, %cst_41 {dimension_numbers = #tpu.dot_dimension_numbers<[1], [0], [0], [1], [0, 0, 1, 1], [], []>} : vector<64x128xbf16>, vector<128x128xbf16>, vector<64x128xf32> -> vector<64x128xf32>
    %31 = arith.addf %24, %30 : vector<64x128xf32>
    %c0_42 = arith.constant 0 : index
    %c0_43 = arith.constant 0 : index
    %c1_44 = arith.constant 1 : index
    %c1_45 = arith.constant 1 : index
    %c0_46 = arith.constant 0 : index
    %32 = vector.load %arg3[%c0_42, %c0_43, %c1_44, %c1_45, %c0_46] : memref<1x1x10x10x128xbf16, #tpu.memory_space<vmem>>, vector<1x1x8x8x128xbf16>
    %33 = vector.shape_cast %32 : vector<1x1x8x8x128xbf16> to vector<8x8x128xbf16>
    %34 = vector.shape_cast %33 : vector<8x8x128xbf16> to vector<64x128xbf16>
    %c0_47 = arith.constant 0 : index
    %c1_48 = arith.constant 1 : index
    %c1_49 = arith.constant 1 : index
    %c0_50 = arith.constant 0 : index
    %c0_51 = arith.constant 0 : index
    %35 = vector.load %arg4[%c0_47, %c1_48, %c1_49, %c0_50, %c0_51] : memref<1x3x3x128x128xbf16, #tpu.memory_space<vmem>>, vector<1x1x1x128x128xbf16>
    %36 = vector.shape_cast %35 : vector<1x1x1x128x128xbf16> to vector<128x128xbf16>
    %cst_52 = arith.constant dense<0.000000e+00> : vector<64x128xf32>
    %37 = tpu.matmul %34, %36, %cst_52 {dimension_numbers = #tpu.dot_dimension_numbers<[1], [0], [0], [1], [0, 0, 1, 1], [], []>} : vector<64x128xbf16>, vector<128x128xbf16>, vector<64x128xf32> -> vector<64x128xf32>
    %38 = arith.addf %31, %37 : vector<64x128xf32>
    %c0_53 = arith.constant 0 : index
    %c0_54 = arith.constant 0 : index
    %c1_55 = arith.constant 1 : index
    %c2_56 = arith.constant 2 : index
    %c0_57 = arith.constant 0 : index
    %39 = vector.load %arg3[%c0_53, %c0_54, %c1_55, %c2_56, %c0_57] : memref<1x1x10x10x128xbf16, #tpu.memory_space<vmem>>, vector<1x1x8x8x128xbf16>
    %40 = vector.shape_cast %39 : vector<1x1x8x8x128xbf16> to vector<8x8x128xbf16>
    %41 = vector.shape_cast %40 : vector<8x8x128xbf16> to vector<64x128xbf16>
    %c0_58 = arith.constant 0 : index
    %c1_59 = arith.constant 1 : index
    %c2_60 = arith.constant 2 : index
    %c0_61 = arith.constant 0 : index
    %c0_62 = arith.constant 0 : index
    %42 = vector.load %arg4[%c0_58, %c1_59, %c2_60, %c0_61, %c0_62] : memref<1x3x3x128x128xbf16, #tpu.memory_space<vmem>>, vector<1x1x1x128x128xbf16>
    %43 = vector.shape_cast %42 : vector<1x1x1x128x128xbf16> to vector<128x128xbf16>
    %cst_63 = arith.constant dense<0.000000e+00> : vector<64x128xf32>
    %44 = tpu.matmul %41, %43, %cst_63 {dimension_numbers = #tpu.dot_dimension_numbers<[1], [0], [0], [1], [0, 0, 1, 1], [], []>} : vector<64x128xbf16>, vector<128x128xbf16>, vector<64x128xf32> -> vector<64x128xf32>
    %45 = arith.addf %38, %44 : vector<64x128xf32>
    %c0_64 = arith.constant 0 : index
    %c0_65 = arith.constant 0 : index
    %c2_66 = arith.constant 2 : index
    %c0_67 = arith.constant 0 : index
    %c0_68 = arith.constant 0 : index
    %46 = vector.load %arg3[%c0_64, %c0_65, %c2_66, %c0_67, %c0_68] : memref<1x1x10x10x128xbf16, #tpu.memory_space<vmem>>, vector<1x1x8x8x128xbf16>
    %47 = vector.shape_cast %46 : vector<1x1x8x8x128xbf16> to vector<8x8x128xbf16>
    %48 = vector.shape_cast %47 : vector<8x8x128xbf16> to vector<64x128xbf16>
    %c0_69 = arith.constant 0 : index
    %c2_70 = arith.constant 2 : index
    %c0_71 = arith.constant 0 : index
    %c0_72 = arith.constant 0 : index
    %c0_73 = arith.constant 0 : index
    %49 = vector.load %arg4[%c0_69, %c2_70, %c0_71, %c0_72, %c0_73] : memref<1x3x3x128x128xbf16, #tpu.memory_space<vmem>>, vector<1x1x1x128x128xbf16>
    %50 = vector.shape_cast %49 : vector<1x1x1x128x128xbf16> to vector<128x128xbf16>
    %cst_74 = arith.constant dense<0.000000e+00> : vector<64x128xf32>
    %51 = tpu.matmul %48, %50, %cst_74 {dimension_numbers = #tpu.dot_dimension_numbers<[1], [0], [0], [1], [0, 0, 1, 1], [], []>} : vector<64x128xbf16>, vector<128x128xbf16>, vector<64x128xf32> -> vector<64x128xf32>
    %52 = arith.addf %45, %51 : vector<64x128xf32>
    %c0_75 = arith.constant 0 : index
    %c0_76 = arith.constant 0 : index
    %c2_77 = arith.constant 2 : index
    %c1_78 = arith.constant 1 : index
    %c0_79 = arith.constant 0 : index
    %53 = vector.load %arg3[%c0_75, %c0_76, %c2_77, %c1_78, %c0_79] : memref<1x1x10x10x128xbf16, #tpu.memory_space<vmem>>, vector<1x1x8x8x128xbf16>
    %54 = vector.shape_cast %53 : vector<1x1x8x8x128xbf16> to vector<8x8x128xbf16>
    %55 = vector.shape_cast %54 : vector<8x8x128xbf16> to vector<64x128xbf16>
    %c0_80 = arith.constant 0 : index
    %c2_81 = arith.constant 2 : index
    %c1_82 = arith.constant 1 : index
    %c0_83 = arith.constant 0 : index
    %c0_84 = arith.constant 0 : index
    %56 = vector.load %arg4[%c0_80, %c2_81, %c1_82, %c0_83, %c0_84] : memref<1x3x3x128x128xbf16, #tpu.memory_space<vmem>>, vector<1x1x1x128x128xbf16>
    %57 = vector.shape_cast %56 : vector<1x1x1x128x128xbf16> to vector<128x128xbf16>
    %cst_85 = arith.constant dense<0.000000e+00> : vector<64x128xf32>
    %58 = tpu.matmul %55, %57, %cst_85 {dimension_numbers = #tpu.dot_dimension_numbers<[1], [0], [0], [1], [0, 0, 1, 1], [], []>} : vector<64x128xbf16>, vector<128x128xbf16>, vector<64x128xf32> -> vector<64x128xf32>
    %59 = arith.addf %52, %58 : vector<64x128xf32>
    %c0_86 = arith.constant 0 : index
    %c0_87 = arith.constant 0 : index
    %c2_88 = arith.constant 2 : index
    %c2_89 = arith.constant 2 : index
    %c0_90 = arith.constant 0 : index
    %60 = vector.load %arg3[%c0_86, %c0_87, %c2_88, %c2_89, %c0_90] : memref<1x1x10x10x128xbf16, #tpu.memory_space<vmem>>, vector<1x1x8x8x128xbf16>
    %61 = vector.shape_cast %60 : vector<1x1x8x8x128xbf16> to vector<8x8x128xbf16>
    %62 = vector.shape_cast %61 : vector<8x8x128xbf16> to vector<64x128xbf16>
    %c0_91 = arith.constant 0 : index
    %c2_92 = arith.constant 2 : index
    %c2_93 = arith.constant 2 : index
    %c0_94 = arith.constant 0 : index
    %c0_95 = arith.constant 0 : index
    %63 = vector.load %arg4[%c0_91, %c2_92, %c2_93, %c0_94, %c0_95] : memref<1x3x3x128x128xbf16, #tpu.memory_space<vmem>>, vector<1x1x1x128x128xbf16>
    %64 = vector.shape_cast %63 : vector<1x1x1x128x128xbf16> to vector<128x128xbf16>
    %cst_96 = arith.constant dense<0.000000e+00> : vector<64x128xf32>
    %65 = tpu.matmul %62, %64, %cst_96 {dimension_numbers = #tpu.dot_dimension_numbers<[1], [0], [0], [1], [0, 0, 1, 1], [], []>} : vector<64x128xbf16>, vector<128x128xbf16>, vector<64x128xf32> -> vector<64x128xf32>
    %66 = arith.addf %59, %65 : vector<64x128xf32>
    %c0_97 = arith.constant 0 : index
    %c0_98 = arith.constant 0 : index
    %67 = vector.load %arg8[%c0_97, %c0_98] : memref<64x128xf32, #tpu.memory_space<vmem>>, vector<64x128xf32>
    %68 = arith.addf %67, %66 : vector<64x128xf32>
    %c0_99 = arith.constant 0 : index
    %c0_100 = arith.constant 0 : index
    %69 = vector.load %arg8[%c0_99, %c0_100] : memref<64x128xf32, #tpu.memory_space<vmem>>, vector<64x128xf32>
    tpu.vector_store %arg8[%c0_99, %c0_100], %68 {strides = array<i32>} : memref<64x128xf32, #tpu.memory_space<vmem>>, vector<64x128xf32>,
    %c2_i32 = arith.constant 2 : i32
    %70 = arith.cmpi eq, %arg2, %c2_i32 : i32
    %71 = arith.extui %70 : i1 to i32
    %c0_i32_101 = arith.constant 0 : i32
    %72 = arith.cmpi ne, %71, %c0_i32_101 : i32
    scf.if %72 {
      %c0_102 = arith.constant 0 : index
      %c0_103 = arith.constant 0 : index
      %73 = vector.load %arg8[%c0_102, %c0_103] : memref<64x128xf32, #tpu.memory_space<vmem>>, vector<64x128xf32>
      %c0_104 = arith.constant 0 : index
      %c0_105 = arith.constant 0 : index
      %74 = vector.load %arg5[%c0_104, %c0_105] : memref<1x128xf32, #tpu.memory_space<vmem>>, vector<1x128xf32>
      %75 = vector.broadcast %74 : vector<1x128xf32> to vector<64x128xf32>
      %76 = arith.addf %73, %75 : vector<64x128xf32>
      %77 = arith.truncf %76 : vector<64x128xf32> to vector<64x128xbf16>
      %c0_106 = arith.constant 0 : index
      %c0_107 = arith.constant 0 : index
      %c0_108 = arith.constant 0 : index
      %c0_109 = arith.constant 0 : index
      %78 = vector.load %arg6[%c0_106, %c0_107, %c0_108, %c0_109] : memref<1x1x64x128xbf16, #tpu.memory_space<vmem>>, vector<1x1x64x128xbf16>
      %79 = vector.shape_cast %78 : vector<1x1x64x128xbf16> to vector<64x128xbf16>
      %80 = vector.shape_cast %77 : vector<64x128xbf16> to vector<1x1x64x128xbf16>
      tpu.vector_store %arg6[%c0_106, %c0_107, %c0_108, %c0_109], %80 {strides = array<i32>} : memref<1x1x64x128xbf16, #tpu.memory_space<vmem>>, vector<1x1x64x128xbf16>,
      %cst_110 = arith.constant dense<0.000000e+00> : vector<128xf32>
      %81 = vector.multi_reduction <add>, %76, %cst_110 [0] : vector<64x128xf32> to vector<128xf32>
      %82 = vector.shape_cast %81 : vector<128xf32> to vector<1x128xf32>
      %c0_111 = arith.constant 0 : index
      %c0_112 = arith.constant 0 : index
      %c0_113 = arith.constant 0 : index
      %c0_114 = arith.constant 0 : index
      %83 = vector.load %arg7[%c0_111, %c0_112, %c0_113, %c0_114] : memref<1x1x2x128xf32, #tpu.memory_space<vmem>>, vector<1x1x1x128xf32>
      %84 = vector.shape_cast %83 : vector<1x1x1x128xf32> to vector<1x128xf32>
      %85 = vector.shape_cast %82 : vector<1x128xf32> to vector<1x1x1x128xf32>
      tpu.vector_store %arg7[%c0_111, %c0_112, %c0_113, %c0_114], %85 {strides = array<i32>} : memref<1x1x2x128xf32, #tpu.memory_space<vmem>>, vector<1x1x1x128xf32>,
      %86 = arith.mulf %76, %76 : vector<64x128xf32>
      %cst_115 = arith.constant dense<0.000000e+00> : vector<128xf32>
      %87 = vector.multi_reduction <add>, %86, %cst_115 [0] : vector<64x128xf32> to vector<128xf32>
      %88 = vector.shape_cast %87 : vector<128xf32> to vector<1x128xf32>
      %c0_116 = arith.constant 0 : index
      %c0_117 = arith.constant 0 : index
      %c1_118 = arith.constant 1 : index
      %c0_119 = arith.constant 0 : index
      %89 = vector.load %arg7[%c0_116, %c0_117, %c1_118, %c0_119] : memref<1x1x2x128xf32, #tpu.memory_space<vmem>>, vector<1x1x1x128xf32>
      %90 = vector.shape_cast %89 : vector<1x1x1x128xf32> to vector<1x128xf32>
      %91 = vector.shape_cast %88 : vector<1x128xf32> to vector<1x1x1x128xf32>
      tpu.vector_store %arg7[%c0_116, %c0_117, %c1_118, %c0_119], %91 {strides = array<i32>} : memref<1x1x2x128xf32, #tpu.memory_space<vmem>>, vector<1x1x1x128xf32>,
    } else {
    }
    return
  }
  func.func @transform_0(%arg0: i32, %arg1: i32, %arg2: i32) -> (i32, i32, i32, i32, i32) {
    %0 = arith.addi %arg1, %arg2 : i32
    %c0_i32 = arith.constant 0 : i32
    %c0_i32_0 = arith.constant 0 : i32
    %c0_i32_1 = arith.constant 0 : i32
    %c0_i32_2 = arith.constant 0 : i32
    return %arg0, %0, %c0_i32, %c0_i32_0, %c0_i32_1 : i32, i32, i32, i32, i32
  }
  func.func @transform_1(%arg0: i32, %arg1: i32, %arg2: i32) -> (i32, i32, i32, i32, i32) {
    %c0_i32 = arith.constant 0 : i32
    %c0_i32_0 = arith.constant 0 : i32
    %c0_i32_1 = arith.constant 0 : i32
    %c0_i32_2 = arith.constant 0 : i32
    %c0_i32_3 = arith.constant 0 : i32
    return %arg2, %c0_i32, %c0_i32_0, %c0_i32_1, %c0_i32_2 : i32, i32, i32, i32, i32
  }
  func.func @transform_2(%arg0: i32, %arg1: i32, %arg2: i32) -> (i32, i32) {
    %c0_i32 = arith.constant 0 : i32
    %c0_i32_0 = arith.constant 0 : i32
    %c0_i32_1 = arith.constant 0 : i32
    return %c0_i32, %c0_i32_0 : i32, i32
  }
  func.func @transform_3(%arg0: i32, %arg1: i32, %arg2: i32) -> (i32, i32, i32, i32) {
    %c0_i32 = arith.constant 0 : i32
    %c0_i32_0 = arith.constant 0 : i32
    %c0_i32_1 = arith.constant 0 : i32
    return %arg0, %arg1, %c0_i32, %c0_i32_0 : i32, i32, i32, i32
  }
  func.func @transform_4(%arg0: i32, %arg1: i32, %arg2: i32) -> (i32, i32, i32, i32) {
    %c0_i32 = arith.constant 0 : i32
    %c0_i32_0 = arith.constant 0 : i32
    %c0_i32_1 = arith.constant 0 : i32
    return %arg0, %arg1, %c0_i32, %c0_i32_0 : i32, i32, i32, i32
  }
}

module attributes {stable_mosaic.version = 11 : i64} {
  func.func @_affine_relu_kernel(%arg0: i32, %arg1: memref<256x128xbf16, #tpu.memory_space<vmem>>, %arg2: memref<1x128xf32, #tpu.memory_space<vmem>>, %arg3: memref<1x128xf32, #tpu.memory_space<vmem>>, %arg4: memref<256x128xbf16, #tpu.memory_space<vmem>>) attributes {dimension_semantics = [#tpu.dimension_semantics<parallel>], iteration_bounds = array<i64: 2>, scalar_prefetch = 0 : i64, scratch_operands = 0 : i64, tpu.core_type = #tpu.core_type<tc>, window_params = [{transform_indices = @transform_0, window_bounds = array<i64: 256, 128>}, {pipeline_mode = #tpu.pipeline_mode<synchronous>, transform_indices = @transform_1, window_bounds = array<i64: 1, 128>}, {pipeline_mode = #tpu.pipeline_mode<synchronous>, transform_indices = @transform_2, window_bounds = array<i64: 1, 128>}, {transform_indices = @transform_3, window_bounds = array<i64: 256, 128>}]} {
    %c0 = arith.constant 0 : index
    %c0_0 = arith.constant 0 : index
    %0 = vector.load %arg1[%c0, %c0_0] : memref<256x128xbf16, #tpu.memory_space<vmem>>, vector<256x128xbf16>
    %c0_1 = arith.constant 0 : index
    %c0_2 = arith.constant 0 : index
    %1 = vector.load %arg2[%c0_1, %c0_2] : memref<1x128xf32, #tpu.memory_space<vmem>>, vector<1x128xf32>
    %2 = arith.extf %0 : vector<256x128xbf16> to vector<256x128xf32>
    %3 = vector.broadcast %1 : vector<1x128xf32> to vector<256x128xf32>
    %4 = arith.mulf %2, %3 : vector<256x128xf32>
    %c0_3 = arith.constant 0 : index
    %c0_4 = arith.constant 0 : index
    %5 = vector.load %arg3[%c0_3, %c0_4] : memref<1x128xf32, #tpu.memory_space<vmem>>, vector<1x128xf32>
    %6 = vector.broadcast %5 : vector<1x128xf32> to vector<256x128xf32>
    %7 = arith.addf %4, %6 : vector<256x128xf32>
    %cst = arith.constant 0.000000e+00 : f32
    %8 = vector.broadcast %cst : f32 to vector<256x128xf32>
    %9 = arith.maximumf %7, %8 : vector<256x128xf32>
    %10 = arith.truncf %9 : vector<256x128xf32> to vector<256x128xbf16>
    %c0_5 = arith.constant 0 : index
    %c0_6 = arith.constant 0 : index
    %11 = vector.load %arg4[%c0_5, %c0_6] : memref<256x128xbf16, #tpu.memory_space<vmem>>, vector<256x128xbf16>
    tpu.vector_store %arg4[%c0_5, %c0_6], %10 {strides = array<i32>} : memref<256x128xbf16, #tpu.memory_space<vmem>>, vector<256x128xbf16>,
    return
  }
  func.func @transform_0(%arg0: i32) -> (i32, i32) {
    %c0_i32 = arith.constant 0 : i32
    %c0_i32_0 = arith.constant 0 : i32
    return %arg0, %c0_i32 : i32, i32
  }
  func.func @transform_1(%arg0: i32) -> (i32, i32) {
    %c0_i32 = arith.constant 0 : i32
    %c0_i32_0 = arith.constant 0 : i32
    %c0_i32_1 = arith.constant 0 : i32
    return %c0_i32, %c0_i32_0 : i32, i32
  }
  func.func @transform_2(%arg0: i32) -> (i32, i32) {
    %c0_i32 = arith.constant 0 : i32
    %c0_i32_0 = arith.constant 0 : i32
    %c0_i32_1 = arith.constant 0 : i32
    return %c0_i32, %c0_i32_0 : i32, i32
  }
  func.func @transform_3(%arg0: i32) -> (i32, i32) {
    %c0_i32 = arith.constant 0 : i32
    %c0_i32_0 = arith.constant 0 : i32
    return %arg0, %c0_i32 : i32, i32
  }
}

module attributes {stable_mosaic.version = 11 : i64} {
  func.func @_affine_relu_kernel(%arg0: i32, %arg1: memref<256x128xbf16, #tpu.memory_space<vmem>>, %arg2: memref<1x128xf32, #tpu.memory_space<vmem>>, %arg3: memref<1x128xf32, #tpu.memory_space<vmem>>, %arg4: memref<256x128xf32, #tpu.memory_space<vmem>>) attributes {dimension_semantics = [#tpu.dimension_semantics<parallel>], iteration_bounds = array<i64: 2>, scalar_prefetch = 0 : i64, scratch_operands = 0 : i64, tpu.core_type = #tpu.core_type<tc>, window_params = [{transform_indices = @transform_0, window_bounds = array<i64: 256, 128>}, {pipeline_mode = #tpu.pipeline_mode<synchronous>, transform_indices = @transform_1, window_bounds = array<i64: 1, 128>}, {pipeline_mode = #tpu.pipeline_mode<synchronous>, transform_indices = @transform_2, window_bounds = array<i64: 1, 128>}, {transform_indices = @transform_3, window_bounds = array<i64: 256, 128>}]} {
    %c0 = arith.constant 0 : index
    %c0_0 = arith.constant 0 : index
    %0 = vector.load %arg1[%c0, %c0_0] : memref<256x128xbf16, #tpu.memory_space<vmem>>, vector<256x128xbf16>
    %c0_1 = arith.constant 0 : index
    %c0_2 = arith.constant 0 : index
    %1 = vector.load %arg2[%c0_1, %c0_2] : memref<1x128xf32, #tpu.memory_space<vmem>>, vector<1x128xf32>
    %2 = arith.extf %0 : vector<256x128xbf16> to vector<256x128xf32>
    %3 = vector.broadcast %1 : vector<1x128xf32> to vector<256x128xf32>
    %4 = arith.mulf %2, %3 : vector<256x128xf32>
    %c0_3 = arith.constant 0 : index
    %c0_4 = arith.constant 0 : index
    %5 = vector.load %arg3[%c0_3, %c0_4] : memref<1x128xf32, #tpu.memory_space<vmem>>, vector<1x128xf32>
    %6 = vector.broadcast %5 : vector<1x128xf32> to vector<256x128xf32>
    %7 = arith.addf %4, %6 : vector<256x128xf32>
    %cst = arith.constant 0.000000e+00 : f32
    %8 = vector.broadcast %cst : f32 to vector<256x128xf32>
    %9 = arith.maximumf %7, %8 : vector<256x128xf32>
    %c0_5 = arith.constant 0 : index
    %c0_6 = arith.constant 0 : index
    %10 = vector.load %arg4[%c0_5, %c0_6] : memref<256x128xf32, #tpu.memory_space<vmem>>, vector<256x128xf32>
    tpu.vector_store %arg4[%c0_5, %c0_6], %9 {strides = array<i32>} : memref<256x128xf32, #tpu.memory_space<vmem>>, vector<256x128xf32>,
    return
  }
  func.func @transform_0(%arg0: i32) -> (i32, i32) {
    %c0_i32 = arith.constant 0 : i32
    %c0_i32_0 = arith.constant 0 : i32
    return %arg0, %c0_i32 : i32, i32
  }
  func.func @transform_1(%arg0: i32) -> (i32, i32) {
    %c0_i32 = arith.constant 0 : i32
    %c0_i32_0 = arith.constant 0 : i32
    %c0_i32_1 = arith.constant 0 : i32
    return %c0_i32, %c0_i32_0 : i32, i32
  }
  func.func @transform_2(%arg0: i32) -> (i32, i32) {
    %c0_i32 = arith.constant 0 : i32
    %c0_i32_0 = arith.constant 0 : i32
    %c0_i32_1 = arith.constant 0 : i32
    return %c0_i32, %c0_i32_0 : i32, i32
  }
  func.func @transform_3(%arg0: i32) -> (i32, i32) {
    %c0_i32 = arith.constant 0 : i32
    %c0_i32_0 = arith.constant 0 : i32
    return %arg0, %c0_i32 : i32, i32
  }
}

</mosaic_0001>

<llo_original>
// kernel: _lambda_.5
$region0: #{_lambda_.5}
  #allocation0 [shape = 'u32[]', space=smem, size = 0x4, offset = 0x4, fixed_abs, tag = 'smem constant byte address 0x4 - core index']
  #allocation1 [shape = 'u32[144,128]{1,0:T(1,128)}', space=vmem, size = 0x12000, scoped, tag = 'internal scratch']
  %s0 = inlined_call_operand.vmem [shape: f32[8,8,2,8,4], index: 0, kind: input, shape index: {}]
  %s1 = inlined_call_operand.vmem [shape: f32[8,8,2,8,4], index: 1, kind: input, shape index: {}]
  %s2 = inlined_call_operand.vmem [shape: bf16[8,8,8,4], index: 2, kind: output, shape index: {}]
  %s3 = sld [smem:[#allocation0]]
  $region41: #{_lambda_.5} parent=0
    _
  %s5 = ssub.s32 1, %s3
  %s6 = scalar_select 0, %s5, %s3
  loop: start=0, step=1, limit=4
  $region2: #{_lambda_.5} parent=0 // loop_pre_header
    _
  $region3: #{_lambda_.5} parent=0 // loop_header
    %s8 = sphi 0, %s12
    %p9 = scmp.ge.s32.totalorder %s8, 4
    %s18 = sphi 0, %s20
    %s21 = sphi 0, %s18
    %s22 = sphi 0, %s21
    %s38 = sphi 0, %s22
    %s44 = sphi 0, %s46
    %s47 = sphi 0, %s44
    %s48 = sphi 0, %s47
    %s64 = sphi 0, %s48
    %s70 = sphi 0, %s72
    %s73 = sphi 0, %s70
    %s74 = sphi 0, %s73
    %s90 = sphi 0, %s74
  $region4: #{_lambda_.5} parent=0 // loop_header_branch
    %11 = sbr.rel (%p9) target = $region8
  $region5: #{_lambda_.5} parent=0 // loop_body
    %s13 = ssub.s32 %s8, 1
    %s14 = ssub.s32 %s8, 2
    %s15 = sadd.s32 %s8, 1
    %s16 = ssub.s32 %s8, %s15
    %p17 = scmp.eq.s32.totalorder %s16, 0
    %s19 = sadd.s32 %s18, 1
    %s20 = scalar_select %p17, %s18, %s19
    %p23 = pneg %p17
    %p24 = scmp.eq.s32.totalorder %s8, 1
    %p25 = por %p23, %p24
    %p26 = scmp.ne.s32.totalorder %s18, %s21
    %p27 = scmp.eq.s32.totalorder %s8, 0
    %p28 = por %p26, %p27
    %p29 = scmp.ne.s32.totalorder %s18, %s21
    %p30 = scmp.eq.s32.totalorder %s13, 1
    %p31 = por %p29, %p30
    %p32 = scmp.ne.s32.totalorder %s21, %s22
    %p33 = scmp.eq.s32.totalorder %s13, 0
    %p34 = por %p32, %p33
    %p35 = scmp.ne.s32.totalorder %s21, %s22
    %p36 = scmp.eq.s32.totalorder %s14, 1
    %p37 = por %p35, %p36
    %p39 = scmp.ne.s32.totalorder %s22, %s38
    %p40 = scmp.eq.s32.totalorder %s14, 0
    %p41 = por %p39, %p40
    %s42 = ssub.s32 %s8, %s15
    %p43 = scmp.eq.s32.totalorder %s42, 0
    %s45 = sadd.s32 %s44, 1
    %s46 = scalar_select %p43, %s44, %s45
    %p49 = pneg %p43
    %p50 = scmp.eq.s32.totalorder %s8, 1
    %p51 = por %p49, %p50
    %p52 = scmp.ne.s32.totalorder %s44, %s47
    %p53 = scmp.eq.s32.totalorder %s8, 0
    %p54 = por %p52, %p53
    %p55 = scmp.ne.s32.totalorder %s44, %s47
    %p56 = scmp.eq.s32.totalorder %s13, 1
    %p57 = por %p55, %p56
    %p58 = scmp.ne.s32.totalorder %s47, %s48
    %p59 = scmp.eq.s32.totalorder %s13, 0
    %p60 = por %p58, %p59
    %p61 = scmp.ne.s32.totalorder %s47, %s48
    %p62 = scmp.eq.s32.totalorder %s14, 1
    %p63 = por %p61, %p62
    %p65 = scmp.ne.s32.totalorder %s48, %s64
    %p66 = scmp.eq.s32.totalorder %s14, 0
    %p67 = por %p65, %p66
    %s68 = ssub.s32 %s8, %s15
    %p69 = scmp.eq.s32.totalorder %s68, 0
    %s71 = sadd.s32 %s70, 1
    %s72 = scalar_select %p69, %s70, %s71
    %p75 = pneg %p69
    %p76 = scmp.eq.s32.totalorder %s8, 1
    %p77 = por %p75, %p76
    %p78 = scmp.ne.s32.totalorder %s70, %s73
    %p79 = scmp.eq.s32.totalorder %s8, 0
    %p80 = por %p78, %p79
    %p81 = scmp.ne.s32.totalorder %s70, %s73
    %p82 = scmp.eq.s32.totalorder %s13, 1
    %p83 = por %p81, %p82
    %p84 = scmp.ne.s32.totalorder %s73, %s74
    %p85 = scmp.eq.s32.totalorder %s13, 0
    %p86 = por %p84, %p85
    %p87 = scmp.ne.s32.totalorder %s73, %s74
    %p88 = scmp.eq.s32.totalorder %s14, 1
    %p89 = por %p87, %p88
    %p91 = scmp.ne.s32.totalorder %s74, %s90
    %p92 = scmp.eq.s32.totalorder %s14, 0
    %p93 = por %p91, %p92
    %p94 = scmp.le.s32.totalorder 1, %s8
    %p95 = scmp.lt.s32.totalorder %s8, 3
    %p96 = pnand %p94, %p95
    %p97 = pneg %p96
    // Predicated region
    $region9: #{_lambda_.5} parent=5 // pred_check
      _
    $region10: #{_lambda_.5} parent=5 // pred_check_branch
      %99 = sbr.rel (%p96) target = $region12
    $region11: #{_lambda_.5} parent=5 // pred_region
      %s100 = ssub.s32 %s8, 1
    $region12: #{_lambda_.5} parent=5 // pred_fallthru
      _
    %p101 = scmp.lt.s32.totalorder %s8, 2
    // Predicated region
    $region13: #{_lambda_.5} parent=5 // pred_check
      %p102 = pneg %p101
    $region14: #{_lambda_.5} parent=5 // pred_check_branch
      %104 = sbr.rel (%p102) target = $region16
    $region15: #{_lambda_.5} parent=5 // pred_region
      // Predicated region
      $region17: #{_lambda_.5} parent=15 // pred_check
        %p105 = pneg %p28
      $region18: #{_lambda_.5} parent=15 // pred_check_branch
        %107 = sbr.rel (%p105) target = $region20
      $region19: #{_lambda_.5} parent=15 // pred_region
        %s108 = smul.u32 4, %s8
        %p109 = scmp.lt.s32.totalorder %s108, 7
        %s110 = scalar_select %p109, %s108, 7
        %s111 = smul.addr %s110, 16
        %s112 = smul.addr %s111, 8
        %s113 = scalar_lea.vmem %s0, %s112
        %s114 = smul.u32 4, %s8
      $region20: #{_lambda_.5} parent=15 // pred_fallthru
        _
      // Predicated region
      $region21: #{_lambda_.5} parent=15 // pred_check
        %p115 = pneg %p54
      $region22: #{_lambda_.5} parent=15 // pred_check_branch
        %117 = sbr.rel (%p115) target = $region24
      $region23: #{_lambda_.5} parent=15 // pred_region
        %s118 = smul.u32 4, %s8
        %p119 = scmp.lt.s32.totalorder %s118, 7
        %s120 = scalar_select %p119, %s118, 7
        %s121 = smul.addr %s120, 16
        %s122 = smul.addr %s121, 8
        %s123 = scalar_lea.vmem %s1, %s122
        %s124 = smul.u32 4, %s8
      $region24: #{_lambda_.5} parent=15 // pred_fallthru
        _
    $region16: #{_lambda_.5} parent=5 // pred_fallthru
      _
    %p125 = scmp.le.s32.totalorder 1, %s8
    %p126 = scmp.lt.s32.totalorder %s8, 3
    %p127 = pnand %p125, %p126
    %p128 = pneg %p127
    // Predicated region
    $region25: #{_lambda_.5} parent=5 // pred_check
      _
    $region26: #{_lambda_.5} parent=5 // pred_check_branch
      %130 = sbr.rel (%p127) target = $region28
    $region27: #{_lambda_.5} parent=5 // pred_region
      %s131 = ssub.s32 %s8, 1
      %s132 = smul.u32 4, %s13
      %p133 = scmp.lt.s32.totalorder %s132, 7
      %s134 = scalar_select %p133, %s132, 7
      %s135 = smul.addr %s134, 16
      %s136 = smul.addr %s135, 8
      %s137 = scalar_lea.vmem %s0, %s136
      %p138 = pneg %p34
      %p139 = pneg %p31
      %s140 = smul.u32 4, %s13
      %p141 = scmp.lt.s32.totalorder %s140, 7
      %s142 = scalar_select %p141, %s140, 7
      %s143 = smul.addr %s142, 16
      %s144 = smul.addr %s143, 8
      %s145 = scalar_lea.vmem %s1, %s144
      %p146 = pneg %p60
      %p147 = pneg %p57
      %p148 = pneg %p86
      %p149 = pneg %p83
      %s150 = smul.u32 4, %s13
      %p151 = scmp.lt.s32.totalorder %s150, 7
      %s152 = scalar_select %p151, %s150, 7
      %s153 = smul.addr %s152, 8
      %s154 = smul.addr %s153, 4
      %s155 = scalar_lea.vmem %s2, %s154
      %s156 = smul.u32 4, %s13
      %p157 = scmp.lt.s32.totalorder %s156, 7
      %s158 = scalar_select %p157, %s156, 7
      %s159 = smul.addr %s158, 16
      %s160 = smul.addr %s159, 8
      %s161 = scalar_lea.vmem %s0, %s160
      %s162 = smul.u32 4, %s13
      %s163 = smul.u32 4, %s13
      %p164 = scmp.lt.s32.totalorder %s163, 7
      %s165 = scalar_select %p164, %s163, 7
      %s166 = smul.addr %s165, 16
      %s167 = smul.addr %s166, 8
      %s168 = scalar_lea.vmem %s1, %s167
      %s169 = smul.u32 4, %s13
      %s170 = smul.u32 4, %s13
      %p171 = scmp.lt.s32.totalorder %s170, 7
      %s172 = scalar_select %p171, %s170, 7
      %s173 = smul.addr %s172, 8
      %s174 = smul.addr %s173, 4
      %s175 = scalar_lea.vmem %s2, %s174
      %s176 = smul.u32 4, %s13
      %v177 = vld [vmem:[%s161] sm:$0xff]
      %v178 = vld [vmem:[%s161 + $0x8] sm:$0xff]
      %v179 = vld [vmem:[%s161 + $0x10] sm:$0xff]
      %v180 = vld [vmem:[%s161 + $0x18] sm:$0xff]
      %v181 = vld [vmem:[%s161 + $0x20] sm:$0xff]
      %v182 = vld [vmem:[%s161 + $0x28] sm:$0xff]
      %v183 = vld [vmem:[%s161 + $0x30] sm:$0xff]
      %v184 = vld [vmem:[%s161 + $0x38] sm:$0xff]
      %v185 = vld [vmem:[%s161 + $0x40] sm:$0xff]
      %v186 = vld [vmem:[%s161 + $0x48] sm:$0xff]
      %v187 = vld [vmem:[%s161 + $0x50] sm:$0xff]
      %v188 = vld [vmem:[%s161 + $0x58] sm:$0xff]
      %v189 = vld [vmem:[%s161 + $0x60] sm:$0xff]
      %v190 = vld [vmem:[%s161 + $0x68] sm:$0xff]
      %v191 = vld [vmem:[%s161 + $0x70] sm:$0xff]
      %v192 = vld [vmem:[%s161 + $0x78] sm:$0xff]
      %v193 = vld [vmem:[%s161 + $0x80] sm:$0xff]
      %v194 = vld [vmem:[%s161 + $0x88] sm:$0xff]
      %v195 = vld [vmem:[%s161 + $0x90] sm:$0xff]
      %v196 = vld [vmem:[%s161 + $0x98] sm:$0xff]
      %v197 = vld [vmem:[%s161 + $0xa0] sm:$0xff]
      %v198 = vld [vmem:[%s161 + $0xa8] sm:$0xff]
      %v199 = vld [vmem:[%s161 + $0xb0] sm:$0xff]
      %v200 = vld [vmem:[%s161 + $0xb8] sm:$0xff]
      %v201 = vld [vmem:[%s161 + $0xc0] sm:$0xff]
      %v202 = vld [vmem:[%s161 + $0xc8] sm:$0xff]
      %v203 = vld [vmem:[%s161 + $0xd0] sm:$0xff]
      %v204 = vld [vmem:[%s161 + $0xd8] sm:$0xff]
      %v205 = vld [vmem:[%s161 + $0xe0] sm:$0xff]
      %v206 = vld [vmem:[%s161 + $0xe8] sm:$0xff]
      %v207 = vld [vmem:[%s161 + $0xf0] sm:$0xff]
      %v208 = vld [vmem:[%s161 + $0xf8] sm:$0xff]
      %v209 = vld [vmem:[%s161 + $0x100] sm:$0xff]
      %v210 = vld [vmem:[%s161 + $0x108] sm:$0xff]
      %v211 = vld [vmem:[%s161 + $0x110] sm:$0xff]
      %v212 = vld [vmem:[%s161 + $0x118] sm:$0xff]
      %v213 = vld [vmem:[%s161 + $0x120] sm:$0xff]
      %v214 = vld [vmem:[%s161 + $0x128] sm:$0xff]
      %v215 = vld [vmem:[%s161 + $0x130] sm:$0xff]
      %v216 = vld [vmem:[%s161 + $0x138] sm:$0xff]
      %v217 = vld [vmem:[%s161 + $0x140] sm:$0xff]
      %v218 = vld [vmem:[%s161 + $0x148] sm:$0xff]
      %v219 = vld [vmem:[%s161 + $0x150] sm:$0xff]
      %v220 = vld [vmem:[%s161 + $0x158] sm:$0xff]
      %v221 = vld [vmem:[%s161 + $0x160] sm:$0xff]
      %v222 = vld [vmem:[%s161 + $0x168] sm:$0xff]
      %v223 = vld [vmem:[%s161 + $0x170] sm:$0xff]
      %v224 = vld [vmem:[%s161 + $0x178] sm:$0xff]
      %v225 = vld [vmem:[%s161 + $0x180] sm:$0xff]
      %v226 = vld [vmem:[%s161 + $0x188] sm:$0xff]
      %v227 = vld [vmem:[%s161 + $0x190] sm:$0xff]
      %v228 = vld [vmem:[%s161 + $0x198] sm:$0xff]
      %v229 = vld [vmem:[%s161 + $0x1a0] sm:$0xff]
      %v230 = vld [vmem:[%s161 + $0x1a8] sm:$0xff]
      %v231 = vld [vmem:[%s161 + $0x1b0] sm:$0xff]
      %v232 = vld [vmem:[%s161 + $0x1b8] sm:$0xff]
      %v233 = vld [vmem:[%s161 + $0x1c0] sm:$0xff]
      %v234 = vld [vmem:[%s161 + $0x1c8] sm:$0xff]
      %v235 = vld [vmem:[%s161 + $0x1d0] sm:$0xff]
      %v236 = vld [vmem:[%s161 + $0x1d8] sm:$0xff]
      %v237 = vld [vmem:[%s161 + $0x1e0] sm:$0xff]
      %v238 = vld [vmem:[%s161 + $0x1e8] sm:$0xff]
      %v239 = vld [vmem:[%s161 + $0x1f0] sm:$0xff]
      %v240 = vld [vmem:[%s161 + $0x1f8] sm:$0xff]
      %v241 = vld [vmem:[%s168] sm:$0xff]
      %v242 = vld [vmem:[%s168 + $0x8] sm:$0xff]
      %v243 = vld [vmem:[%s168 + $0x10] sm:$0xff]
      %v244 = vld [vmem:[%s168 + $0x18] sm:$0xff]
      %v245 = vld [vmem:[%s168 + $0x20] sm:$0xff]
      %v246 = vld [vmem:[%s168 + $0x28] sm:$0xff]
      %v247 = vld [vmem:[%s168 + $0x30] sm:$0xff]
      %v248 = vld [vmem:[%s168 + $0x38] sm:$0xff]
      %v249 = vld [vmem:[%s168 + $0x40] sm:$0xff]
      %v250 = vld [vmem:[%s168 + $0x48] sm:$0xff]
      %v251 = vld [vmem:[%s168 + $0x50] sm:$0xff]
      %v252 = vld [vmem:[%s168 + $0x58] sm:$0xff]
      %v253 = vld [vmem:[%s168 + $0x60] sm:$0xff]
      %v254 = vld [vmem:[%s168 + $0x68] sm:$0xff]
      %v255 = vld [vmem:[%s168 + $0x70] sm:$0xff]
      %v256 = vld [vmem:[%s168 + $0x78] sm:$0xff]
      %v257 = vld [vmem:[%s168 + $0x80] sm:$0xff]
      %v258 = vld [vmem:[%s168 + $0x88] sm:$0xff]
      %v259 = vld [vmem:[%s168 + $0x90] sm:$0xff]
      %v260 = vld [vmem:[%s168 + $0x98] sm:$0xff]
      %v261 = vld [vmem:[%s168 + $0xa0] sm:$0xff]
      %v262 = vld [vmem:[%s168 + $0xa8] sm:$0xff]
      %v263 = vld [vmem:[%s168 + $0xb0] sm:$0xff]
      %v264 = vld [vmem:[%s168 + $0xb8] sm:$0xff]
      %v265 = vld [vmem:[%s168 + $0xc0] sm:$0xff]
      %v266 = vld [vmem:[%s168 + $0xc8] sm:$0xff]
      %v267 = vld [vmem:[%s168 + $0xd0] sm:$0xff]
      %v268 = vld [vmem:[%s168 + $0xd8] sm:$0xff]
      %v269 = vld [vmem:[%s168 + $0xe0] sm:$0xff]
      %v270 = vld [vmem:[%s168 + $0xe8] sm:$0xff]
      %v271 = vld [vmem:[%s168 + $0xf0] sm:$0xff]
      %v272 = vld [vmem:[%s168 + $0xf8] sm:$0xff]
      %v273 = vld [vmem:[%s168 + $0x100] sm:$0xff]
      %v274 = vld [vmem:[%s168 + $0x108] sm:$0xff]
      %v275 = vld [vmem:[%s168 + $0x110] sm:$0xff]
      %v276 = vld [vmem:[%s168 + $0x118] sm:$0xff]
      %v277 = vld [vmem:[%s168 + $0x120] sm:$0xff]
      %v278 = vld [vmem:[%s168 + $0x128] sm:$0xff]
      %v279 = vld [vmem:[%s168 + $0x130] sm:$0xff]
      %v280 = vld [vmem:[%s168 + $0x138] sm:$0xff]
      %v281 = vld [vmem:[%s168 + $0x140] sm:$0xff]
      %v282 = vld [vmem:[%s168 + $0x148] sm:$0xff]
      %v283 = vld [vmem:[%s168 + $0x150] sm:$0xff]
      %v284 = vld [vmem:[%s168 + $0x158] sm:$0xff]
      %v285 = vld [vmem:[%s168 + $0x160] sm:$0xff]
      %v286 = vld [vmem:[%s168 + $0x168] sm:$0xff]
      %v287 = vld [vmem:[%s168 + $0x170] sm:$0xff]
      %v288 = vld [vmem:[%s168 + $0x178] sm:$0xff]
      %v289 = vld [vmem:[%s168 + $0x180] sm:$0xff]
      %v290 = vld [vmem:[%s168 + $0x188] sm:$0xff]
      %v291 = vld [vmem:[%s168 + $0x190] sm:$0xff]
      %v292 = vld [vmem:[%s168 + $0x198] sm:$0xff]
      %v293 = vld [vmem:[%s168 + $0x1a0] sm:$0xff]
      %v294 = vld [vmem:[%s168 + $0x1a8] sm:$0xff]
      %v295 = vld [vmem:[%s168 + $0x1b0] sm:$0xff]
      %v296 = vld [vmem:[%s168 + $0x1b8] sm:$0xff]
      %v297 = vld [vmem:[%s168 + $0x1c0] sm:$0xff]
      %v298 = vld [vmem:[%s168 + $0x1c8] sm:$0xff]
      %v299 = vld [vmem:[%s168 + $0x1d0] sm:$0xff]
      %v300 = vld [vmem:[%s168 + $0x1d8] sm:$0xff]
      %v301 = vld [vmem:[%s168 + $0x1e0] sm:$0xff]
      %v302 = vld [vmem:[%s168 + $0x1e8] sm:$0xff]
      %v303 = vld [vmem:[%s168 + $0x1f0] sm:$0xff]
      %v304 = vld [vmem:[%s168 + $0x1f8] sm:$0xff]
      %v305 = vmax.f32 %v177, %v178
      %v306 = vmax.f32 %v179, %v180
      %v307 = vmax.f32 %v181, %v182
      %v308 = vmax.f32 %v183, %v184
      %v309 = vmax.f32 %v185, %v186
      %v310 = vmax.f32 %v187, %v188
      %v311 = vmax.f32 %v189, %v190
      %v312 = vmax.f32 %v191, %v192
      %v313 = vmax.f32 %v193, %v194
      %v314 = vmax.f32 %v195, %v196
      %v315 = vmax.f32 %v197, %v198
      %v316 = vmax.f32 %v199, %v200
      %v317 = vmax.f32 %v201, %v202
      %v318 = vmax.f32 %v203, %v204
      %v319 = vmax.f32 %v205, %v206
      %v320 = vmax.f32 %v207, %v208
      %v321 = vmax.f32 %v209, %v210
      %v322 = vmax.f32 %v211, %v212
      %v323 = vmax.f32 %v213, %v214
      %v324 = vmax.f32 %v215, %v216
      %v325 = vmax.f32 %v217, %v218
      %v326 = vmax.f32 %v219, %v220
      %v327 = vmax.f32 %v221, %v222
      %v328 = vmax.f32 %v223, %v224
      %v329 = vmax.f32 %v225, %v226
      %v330 = vmax.f32 %v227, %v228
      %v331 = vmax.f32 %v229, %v230
      %v332 = vmax.f32 %v231, %v232
      %v333 = vmax.f32 %v233, %v234
      %v334 = vmax.f32 %v235, %v236
      %v335 = vmax.f32 %v237, %v238
      %v336 = vmax.f32 %v239, %v240
      %v337 = vmax.f32 %v241, %v242
      %v338 = vmax.f32 %v243, %v244
      %v339 = vmax.f32 %v245, %v246
      %v340 = vmax.f32 %v247, %v248
      %v341 = vmax.f32 %v249, %v250
      %v342 = vmax.f32 %v251, %v252
      %v343 = vmax.f32 %v253, %v254
      %v344 = vmax.f32 %v255, %v256
      %v345 = vmax.f32 %v257, %v258
      %v346 = vmax.f32 %v259, %v260
      %v347 = vmax.f32 %v261, %v262
      %v348 = vmax.f32 %v263, %v264
      %v349 = vmax.f32 %v265, %v266
      %v350 = vmax.f32 %v267, %v268
      %v351 = vmax.f32 %v269, %v270
      %v352 = vmax.f32 %v271, %v272
      %v353 = vmax.f32 %v273, %v274
      %v354 = vmax.f32 %v275, %v276
      %v355 = vmax.f32 %v277, %v278
      %v356 = vmax.f32 %v279, %v280
      %v357 = vmax.f32 %v281, %v282
      %v358 = vmax.f32 %v283, %v284
      %v359 = vmax.f32 %v285, %v286
      %v360 = vmax.f32 %v287, %v288
      %v361 = vmax.f32 %v289, %v290
      %v362 = vmax.f32 %v291, %v292
      %v363 = vmax.f32 %v293, %v294
      %v364 = vmax.f32 %v295, %v296
      %v365 = vmax.f32 %v297, %v298
      %v366 = vmax.f32 %v299, %v300
      %v367 = vmax.f32 %v301, %v302
      %v368 = vmax.f32 %v303, %v304
      %v369 = vmax.f32 %v305, %v337
      %v370 = vmax.f32 %v306, %v338
      %v371 = vmax.f32 %v307, %v339
      %v372 = vmax.f32 %v308, %v340
      %v373 = vmax.f32 %v309, %v341
      %v374 = vmax.f32 %v310, %v342
      %v375 = vmax.f32 %v311, %v343
      %v376 = vmax.f32 %v312, %v344
      %v377 = vmax.f32 %v313, %v345
      %v378 = vmax.f32 %v314, %v346
      %v379 = vmax.f32 %v315, %v347
      %v380 = vmax.f32 %v316, %v348
      %v381 = vmax.f32 %v317, %v349
      %v382 = vmax.f32 %v318, %v350
      %v383 = vmax.f32 %v319, %v351
      %v384 = vmax.f32 %v320, %v352
      %v385 = vmax.f32 %v321, %v353
      %v386 = vmax.f32 %v322, %v354
      %v387 = vmax.f32 %v323, %v355
      %v388 = vmax.f32 %v324, %v356
      %v389 = vmax.f32 %v325, %v357
      %v390 = vmax.f32 %v326, %v358
      %v391 = vmax.f32 %v327, %v359
      %v392 = vmax.f32 %v328, %v360
      %v393 = vmax.f32 %v329, %v361
      %v394 = vmax.f32 %v330, %v362
      %v395 = vmax.f32 %v331, %v363
      %v396 = vmax.f32 %v332, %v364
      %v397 = vmax.f32 %v333, %v365
      %v398 = vmax.f32 %v334, %v366
      %v399 = vmax.f32 %v335, %v367
      %v400 = vmax.f32 %v336, %v368
      %v401 = vpack.c.bf16 %v369, %v369
      %v402 = vpack.c.bf16 %v370, %v370
      %v403 = vpack.c.bf16 %v371, %v371
      %v404 = vpack.c.bf16 %v372, %v372
      %v405 = vpack.c.bf16 %v373, %v373
      %v406 = vpack.c.bf16 %v374, %v374
      %v407 = vpack.c.bf16 %v375, %v375
      %v408 = vpack.c.bf16 %v376, %v376
      %v409 = vpack.c.bf16 %v377, %v377
      %v410 = vpack.c.bf16 %v378, %v378
      %v411 = vpack.c.bf16 %v379, %v379
      %v412 = vpack.c.bf16 %v380, %v380
      %v413 = vpack.c.bf16 %v381, %v381
      %v414 = vpack.c.bf16 %v382, %v382
      %v415 = vpack.c.bf16 %v383, %v383
      %v416 = vpack.c.bf16 %v384, %v384
      %v417 = vpack.c.bf16 %v385, %v385
      %v418 = vpack.c.bf16 %v386, %v386
      %v419 = vpack.c.bf16 %v387, %v387
      %v420 = vpack.c.bf16 %v388, %v388
      %v421 = vpack.c.bf16 %v389, %v389
      %v422 = vpack.c.bf16 %v390, %v390
      %v423 = vpack.c.bf16 %v391, %v391
      %v424 = vpack.c.bf16 %v392, %v392
      %v425 = vpack.c.bf16 %v393, %v393
      %v426 = vpack.c.bf16 %v394, %v394
      %v427 = vpack.c.bf16 %v395, %v395
      %v428 = vpack.c.bf16 %v396, %v396
      %v429 = vpack.c.bf16 %v397, %v397
      %v430 = vpack.c.bf16 %v398, %v398
      %v431 = vpack.c.bf16 %v399, %v399
      %v432 = vpack.c.bf16 %v400, %v400
      %vm433 = vcmask 27648
      %434 = vst.msk [vmem:[%s175] sm:$0xf] %vm433, %v401
      %435 = vst.msk [vmem:[%s175 + $0x4] sm:$0xf] %vm433, %v402
      %436 = vst.msk [vmem:[%s175 + $0x8] sm:$0xf] %vm433, %v403
      %437 = vst.msk [vmem:[%s175 + $0xc] sm:$0xf] %vm433, %v404
      %438 = vst.msk [vmem:[%s175 + $0x10] sm:$0xf] %vm433, %v405
      %439 = vst.msk [vmem:[%s175 + $0x14] sm:$0xf] %vm433, %v406
      %440 = vst.msk [vmem:[%s175 + $0x18] sm:$0xf] %vm433, %v407
      %441 = vst.msk [vmem:[%s175 + $0x1c] sm:$0xf] %vm433, %v408
      %442 = vst.msk [vmem:[%s175 + $0x20] sm:$0xf] %vm433, %v409
      %443 = vst.msk [vmem:[%s175 + $0x24] sm:$0xf] %vm433, %v410
      %444 = vst.msk [vmem:[%s175 + $0x28] sm:$0xf] %vm433, %v411
      %445 = vst.msk [vmem:[%s175 + $0x2c] sm:$0xf] %vm433, %v412
      %446 = vst.msk [vmem:[%s175 + $0x30] sm:$0xf] %vm433, %v413
      %447 = vst.msk [vmem:[%s175 + $0x34] sm:$0xf] %vm433, %v414
      %448 = vst.msk [vmem:[%s175 + $0x38] sm:$0xf] %vm433, %v415
      %449 = vst.msk [vmem:[%s175 + $0x3c] sm:$0xf] %vm433, %v416
      %450 = vst.msk [vmem:[%s175 + $0x40] sm:$0xf] %vm433, %v417
      %451 = vst.msk [vmem:[%s175 + $0x44] sm:$0xf] %vm433, %v418
      %452 = vst.msk [vmem:[%s175 + $0x48] sm:$0xf] %vm433, %v419
      %453 = vst.msk [vmem:[%s175 + $0x4c] sm:$0xf] %vm433, %v420
      %454 = vst.msk [vmem:[%s175 + $0x50] sm:$0xf] %vm433, %v421
      %455 = vst.msk [vmem:[%s175 + $0x54] sm:$0xf] %vm433, %v422
      %456 = vst.msk [vmem:[%s175 + $0x58] sm:$0xf] %vm433, %v423
      %457 = vst.msk [vmem:[%s175 + $0x5c] sm:$0xf] %vm433, %v424
      %458 = vst.msk [vmem:[%s175 + $0x60] sm:$0xf] %vm433, %v425
      %459 = vst.msk [vmem:[%s175 + $0x64] sm:$0xf] %vm433, %v426
      %460 = vst.msk [vmem:[%s175 + $0x68] sm:$0xf] %vm433, %v427
      %461 = vst.msk [vmem:[%s175 + $0x6c] sm:$0xf] %vm433, %v428
      %462 = vst.msk [vmem:[%s175 + $0x70] sm:$0xf] %vm433, %v429
      %463 = vst.msk [vmem:[%s175 + $0x74] sm:$0xf] %vm433, %v430
      %464 = vst.msk [vmem:[%s175 + $0x78] sm:$0xf] %vm433, %v431
      %465 = vst.msk [vmem:[%s175 + $0x7c] sm:$0xf] %vm433, %v432
      %s466 = smul.u32 4, %s13
      %p467 = scmp.lt.s32.totalorder %s466, 7
      %s468 = scalar_select %p467, %s466, 7
      %s469 = smul.addr %s468, 8
      %s470 = smul.addr %s469, 4
      %s471 = scalar_lea.vmem %s2, %s470
      // Predicated region
      $region29: #{_lambda_.5} parent=27 // pred_check
        %p472 = pneg %p83
      $region30: #{_lambda_.5} parent=27 // pred_check_branch
        %474 = sbr.rel (%p472) target = $region32
      $region31: #{_lambda_.5} parent=27 // pred_region
        %s475 = smul.u32 4, %s13
      $region32: #{_lambda_.5} parent=27 // pred_fallthru
        _
    $region28: #{_lambda_.5} parent=5 // pred_fallthru
      _
    %p476 = scmp.le.s32.totalorder 2, %s8
    // Predicated region
    $region33: #{_lambda_.5} parent=5 // pred_check
      %p477 = pneg %p476
    $region34: #{_lambda_.5} parent=5 // pred_check_branch
      %479 = sbr.rel (%p477) target = $region36
    $region35: #{_lambda_.5} parent=5 // pred_region
      %s480 = ssub.s32 %s8, 2
      // Predicated region
      $region37: #{_lambda_.5} parent=35 // pred_check
        %p481 = pneg %p89
      $region38: #{_lambda_.5} parent=35 // pred_check_branch
        %483 = sbr.rel (%p481) target = $region40
      $region39: #{_lambda_.5} parent=35 // pred_region
        %s484 = smul.u32 4, %s14
        %p485 = scmp.lt.s32.totalorder %s484, 7
        %s486 = scalar_select %p485, %s484, 7
        %s487 = smul.addr %s486, 8
        %s488 = smul.addr %s487, 4
        %s489 = scalar_lea.vmem %s2, %s488
      $region40: #{_lambda_.5} parent=35 // pred_fallthru
        _
    $region36: #{_lambda_.5} parent=5 // pred_fallthru
      _
  $region6: #{_lambda_.5} parent=0 // loop_footer
    %s12 = sadd.s32 1, %s8
  $region7: #{_lambda_.5} parent=0 // loop_footer_branch
    %7 = sbr.rel target = $region3
  $region8: #{_lambda_.5} parent=0 // loop_exit
    _

// kernel: _lambda_.7
$region0: #{_lambda_.7}
  #allocation0 [shape = 'u32[]', space=smem, size = 0x4, offset = 0x4, fixed_abs, tag = 'smem constant byte address 0x4 - core index']
  #allocation1 [shape = 'u32[144,128]{1,0:T(1,128)}', space=vmem, size = 0x12000, scoped, tag = 'internal scratch']
  %s0 = inlined_call_operand.vmem [shape: bf16[512,128], index: 0, kind: input, shape index: {}]
  %s1 = inlined_call_operand.vmem [shape: f32[1,128], index: 1, kind: input, shape index: {}]
  %s2 = inlined_call_operand.vmem [shape: f32[1,128], index: 2, kind: input, shape index: {}]
  %s3 = inlined_call_operand.vmem [shape: bf16[512,128], index: 3, kind: output, shape index: {}]
  %s4 = sld [smem:[#allocation0]]
  $region45: #{_lambda_.7} parent=0
    _
  %s6 = ssub.s32 1, %s4
  %s7 = scalar_select 0, %s6, %s4
  loop: start=0, step=1, limit=4
  $region2: #{_lambda_.7} parent=0 // loop_pre_header
    _
  $region3: #{_lambda_.7} parent=0 // loop_header
    %s9 = sphi 0, %s13
    %p10 = scmp.ge.s32.totalorder %s9, 4
    %s19 = sphi 0, %s21
    %s22 = sphi 0, %s19
    %s23 = sphi 0, %s22
    %s39 = sphi 0, %s23
    %s43 = sphi 0, %s43
    %s45 = sphi 0, %s43
    %s46 = sphi 0, %s45
    %s60 = sphi 0, %s46
    %s64 = sphi 0, %s64
    %s66 = sphi 0, %s64
    %s67 = sphi 0, %s66
    %s81 = sphi 0, %s67
    %s87 = sphi 0, %s89
    %s90 = sphi 0, %s87
    %s91 = sphi 0, %s90
    %s107 = sphi 0, %s91
  $region4: #{_lambda_.7} parent=0 // loop_header_branch
    %12 = sbr.rel (%p10) target = $region8
  $region5: #{_lambda_.7} parent=0 // loop_body
    %s14 = ssub.s32 %s9, 1
    %s15 = ssub.s32 %s9, 2
    %s16 = sadd.s32 %s9, 1
    %s17 = ssub.s32 %s9, %s16
    %p18 = scmp.eq.s32.totalorder %s17, 0
    %s20 = sadd.s32 %s19, 1
    %s21 = scalar_select %p18, %s19, %s20
    %p24 = pneg %p18
    %p25 = scmp.eq.s32.totalorder %s9, 1
    %p26 = por %p24, %p25
    %p27 = scmp.ne.s32.totalorder %s19, %s22
    %p28 = scmp.eq.s32.totalorder %s9, 0
    %p29 = por %p27, %p28
    %p30 = scmp.ne.s32.totalorder %s19, %s22
    %p31 = scmp.eq.s32.totalorder %s14, 1
    %p32 = por %p30, %p31
    %p33 = scmp.ne.s32.totalorder %s22, %s23
    %p34 = scmp.eq.s32.totalorder %s14, 0
    %p35 = por %p33, %p34
    %p36 = scmp.ne.s32.totalorder %s22, %s23
    %p37 = scmp.eq.s32.totalorder %s15, 1
    %p38 = por %p36, %p37
    %p40 = scmp.ne.s32.totalorder %s23, %s39
    %p41 = scmp.eq.s32.totalorder %s15, 0
    %p42 = por %p40, %p41
    %s44 = sadd.s32 %s43, 1
    %p47 = scmp.eq.s32.totalorder %s9, 1
    %p48 = scmp.ne.s32.totalorder %s43, %s45
    %p49 = scmp.eq.s32.totalorder %s9, 0
    %p50 = por %p48, %p49
    %p51 = scmp.ne.s32.totalorder %s43, %s45
    %p52 = scmp.eq.s32.totalorder %s14, 1
    %p53 = por %p51, %p52
    %p54 = scmp.ne.s32.totalorder %s45, %s46
    %p55 = scmp.eq.s32.totalorder %s14, 0
    %p56 = por %p54, %p55
    %p57 = scmp.ne.s32.totalorder %s45, %s46
    %p58 = scmp.eq.s32.totalorder %s15, 1
    %p59 = por %p57, %p58
    %p61 = scmp.ne.s32.totalorder %s46, %s60
    %p62 = scmp.eq.s32.totalorder %s15, 0
    %p63 = por %p61, %p62
    %s65 = sadd.s32 %s64, 1
    %p68 = scmp.eq.s32.totalorder %s9, 1
    %p69 = scmp.ne.s32.totalorder %s64, %s66
    %p70 = scmp.eq.s32.totalorder %s9, 0
    %p71 = por %p69, %p70
    %p72 = scmp.ne.s32.totalorder %s64, %s66
    %p73 = scmp.eq.s32.totalorder %s14, 1
    %p74 = por %p72, %p73
    %p75 = scmp.ne.s32.totalorder %s66, %s67
    %p76 = scmp.eq.s32.totalorder %s14, 0
    %p77 = por %p75, %p76
    %p78 = scmp.ne.s32.totalorder %s66, %s67
    %p79 = scmp.eq.s32.totalorder %s15, 1
    %p80 = por %p78, %p79
    %p82 = scmp.ne.s32.totalorder %s67, %s81
    %p83 = scmp.eq.s32.totalorder %s15, 0
    %p84 = por %p82, %p83
    %s85 = ssub.s32 %s9, %s16
    %p86 = scmp.eq.s32.totalorder %s85, 0
    %s88 = sadd.s32 %s87, 1
    %s89 = scalar_select %p86, %s87, %s88
    %p92 = pneg %p86
    %p93 = scmp.eq.s32.totalorder %s9, 1
    %p94 = por %p92, %p93
    %p95 = scmp.ne.s32.totalorder %s87, %s90
    %p96 = scmp.eq.s32.totalorder %s9, 0
    %p97 = por %p95, %p96
    %p98 = scmp.ne.s32.totalorder %s87, %s90
    %p99 = scmp.eq.s32.totalorder %s14, 1
    %p100 = por %p98, %p99
    %p101 = scmp.ne.s32.totalorder %s90, %s91
    %p102 = scmp.eq.s32.totalorder %s14, 0
    %p103 = por %p101, %p102
    %p104 = scmp.ne.s32.totalorder %s90, %s91
    %p105 = scmp.eq.s32.totalorder %s15, 1
    %p106 = por %p104, %p105
    %p108 = scmp.ne.s32.totalorder %s91, %s107
    %p109 = scmp.eq.s32.totalorder %s15, 0
    %p110 = por %p108, %p109
    %p111 = scmp.le.s32.totalorder 1, %s9
    %p112 = scmp.lt.s32.totalorder %s9, 3
    %p113 = pnand %p111, %p112
    %p114 = pneg %p113
    // Predicated region
    $region9: #{_lambda_.7} parent=5 // pred_check
      _
    $region10: #{_lambda_.7} parent=5 // pred_check_branch
      %116 = sbr.rel (%p113) target = $region12
    $region11: #{_lambda_.7} parent=5 // pred_region
      %s117 = ssub.s32 %s9, 1
      // Predicated region
      $region13: #{_lambda_.7} parent=11 // pred_check
        %p118 = pneg %p56
      $region14: #{_lambda_.7} parent=11 // pred_check_branch
        %120 = sbr.rel (%p118) target = $region16
      $region15: #{_lambda_.7} parent=11 // pred_region
        _
      $region16: #{_lambda_.7} parent=11 // pred_fallthru
        _
      // Predicated region
      $region17: #{_lambda_.7} parent=11 // pred_check
        %p121 = pneg %p77
      $region18: #{_lambda_.7} parent=11 // pred_check_branch
        %123 = sbr.rel (%p121) target = $region20
      $region19: #{_lambda_.7} parent=11 // pred_region
        _
      $region20: #{_lambda_.7} parent=11 // pred_fallthru
        _
    $region12: #{_lambda_.7} parent=5 // pred_fallthru
      _
    %p124 = scmp.lt.s32.totalorder %s9, 2
    // Predicated region
    $region21: #{_lambda_.7} parent=5 // pred_check
      %p125 = pneg %p124
    $region22: #{_lambda_.7} parent=5 // pred_check_branch
      %127 = sbr.rel (%p125) target = $region24
    $region23: #{_lambda_.7} parent=5 // pred_region
      // Predicated region
      $region25: #{_lambda_.7} parent=23 // pred_check
        %p128 = pneg %p29
      $region26: #{_lambda_.7} parent=23 // pred_check_branch
        %130 = sbr.rel (%p128) target = $region28
      $region27: #{_lambda_.7} parent=23 // pred_region
        %s131 = smul.u32 32, %s9
        %p132 = scmp.lt.s32.totalorder %s131, 63
        %s133 = scalar_select %p132, %s131, 63
        %s134 = smul.addr %s133, 4
        %s135 = scalar_lea.vmem %s0, %s134
        %s136 = smul.u32 32, %s9
      $region28: #{_lambda_.7} parent=23 // pred_fallthru
        _
    $region24: #{_lambda_.7} parent=5 // pred_fallthru
      _
    %p137 = scmp.le.s32.totalorder 1, %s9
    %p138 = scmp.lt.s32.totalorder %s9, 3
    %p139 = pnand %p137, %p138
    %p140 = pneg %p139
    // Predicated region
    $region29: #{_lambda_.7} parent=5 // pred_check
      _
    $region30: #{_lambda_.7} parent=5 // pred_check_branch
      %142 = sbr.rel (%p139) target = $region32
    $region31: #{_lambda_.7} parent=5 // pred_region
      %s143 = ssub.s32 %s9, 1
      %s144 = smul.u32 32, %s14
      %p145 = scmp.lt.s32.totalorder %s144, 63
      %s146 = scalar_select %p145, %s144, 63
      %s147 = smul.addr %s146, 4
      %s148 = scalar_lea.vmem %s0, %s147
      %p149 = pneg %p35
      %p150 = pneg %p32
      %p151 = pneg %p56
      %p152 = pneg %p53
      %p153 = pneg %p77
      %p154 = pneg %p74
      %p155 = pneg %p103
      %p156 = pneg %p100
      %s157 = smul.u32 32, %s14
      %p158 = scmp.lt.s32.totalorder %s157, 63
      %s159 = scalar_select %p158, %s157, 63
      %s160 = smul.addr %s159, 4
      %s161 = scalar_lea.vmem %s3, %s160
      %s162 = smul.u32 32, %s14
      %p163 = scmp.lt.s32.totalorder %s162, 63
      %s164 = scalar_select %p163, %s162, 63
      %s165 = smul.addr %s164, 4
      %s166 = scalar_lea.vmem %s0, %s165
      %s167 = smul.u32 32, %s14
      %s168 = smul.u32 32, %s14
      %p169 = scmp.lt.s32.totalorder %s168, 63
      %s170 = scalar_select %p169, %s168, 63
      %s171 = smul.addr %s170, 4
      %s172 = scalar_lea.vmem %s3, %s171
      %s173 = smul.u32 32, %s14
      %v174 = vld [vmem:[%s166] sm:$0xf]
      %v175 = vld [vmem:[%s166 + $0x4] sm:$0xf]
      %v176 = vld [vmem:[%s166 + $0x8] sm:$0xf]
      %v177 = vld [vmem:[%s166 + $0xc] sm:$0xf]
      %v178 = vld [vmem:[%s166 + $0x10] sm:$0xf]
      %v179 = vld [vmem:[%s166 + $0x14] sm:$0xf]
      %v180 = vld [vmem:[%s166 + $0x18] sm:$0xf]
      %v181 = vld [vmem:[%s166 + $0x1c] sm:$0xf]
      %v182 = vld [vmem:[%s166 + $0x20] sm:$0xf]
      %v183 = vld [vmem:[%s166 + $0x24] sm:$0xf]
      %v184 = vld [vmem:[%s166 + $0x28] sm:$0xf]
      %v185 = vld [vmem:[%s166 + $0x2c] sm:$0xf]
      %v186 = vld [vmem:[%s166 + $0x30] sm:$0xf]
      %v187 = vld [vmem:[%s166 + $0x34] sm:$0xf]
      %v188 = vld [vmem:[%s166 + $0x38] sm:$0xf]
      %v189 = vld [vmem:[%s166 + $0x3c] sm:$0xf]
      %v190 = vld [vmem:[%s166 + $0x40] sm:$0xf]
      %v191 = vld [vmem:[%s166 + $0x44] sm:$0xf]
      %v192 = vld [vmem:[%s166 + $0x48] sm:$0xf]
      %v193 = vld [vmem:[%s166 + $0x4c] sm:$0xf]
      %v194 = vld [vmem:[%s166 + $0x50] sm:$0xf]
      %v195 = vld [vmem:[%s166 + $0x54] sm:$0xf]
      %v196 = vld [vmem:[%s166 + $0x58] sm:$0xf]
      %v197 = vld [vmem:[%s166 + $0x5c] sm:$0xf]
      %v198 = vld [vmem:[%s166 + $0x60] sm:$0xf]
      %v199 = vld [vmem:[%s166 + $0x64] sm:$0xf]
      %v200 = vld [vmem:[%s166 + $0x68] sm:$0xf]
      %v201 = vld [vmem:[%s166 + $0x6c] sm:$0xf]
      %v202 = vld [vmem:[%s166 + $0x70] sm:$0xf]
      %v203 = vld [vmem:[%s166 + $0x74] sm:$0xf]
      %v204 = vld [vmem:[%s166 + $0x78] sm:$0xf]
      %v205 = vld [vmem:[%s166 + $0x7c] sm:$0xf]
      %v206 = vld [vmem:[%s1] sm:$0x1]
      %v207 = vunpack.c.l.bf16 %v174
      %v208 = vunpack.c.l.bf16 %v175
      %v209 = vunpack.c.l.bf16 %v176
      %v210 = vunpack.c.l.bf16 %v177
      %v211 = vunpack.c.l.bf16 %v178
      %v212 = vunpack.c.l.bf16 %v179
      %v213 = vunpack.c.l.bf16 %v180
      %v214 = vunpack.c.l.bf16 %v181
      %v215 = vunpack.c.l.bf16 %v182
      %v216 = vunpack.c.l.bf16 %v183
      %v217 = vunpack.c.l.bf16 %v184
      %v218 = vunpack.c.l.bf16 %v185
      %v219 = vunpack.c.l.bf16 %v186
      %v220 = vunpack.c.l.bf16 %v187
      %v221 = vunpack.c.l.bf16 %v188
      %v222 = vunpack.c.l.bf16 %v189
      %v223 = vunpack.c.l.bf16 %v190
      %v224 = vunpack.c.l.bf16 %v191
      %v225 = vunpack.c.l.bf16 %v192
      %v226 = vunpack.c.l.bf16 %v193
      %v227 = vunpack.c.l.bf16 %v194
      %v228 = vunpack.c.l.bf16 %v195
      %v229 = vunpack.c.l.bf16 %v196
      %v230 = vunpack.c.l.bf16 %v197
      %v231 = vunpack.c.l.bf16 %v198
      %v232 = vunpack.c.l.bf16 %v199
      %v233 = vunpack.c.l.bf16 %v200
      %v234 = vunpack.c.l.bf16 %v201
      %v235 = vunpack.c.l.bf16 %v202
      %v236 = vunpack.c.l.bf16 %v203
      %v237 = vunpack.c.l.bf16 %v204
      %v238 = vunpack.c.l.bf16 %v205
      %v240 = vlaneseq
      %v241 = vshrl.u32 %v240, 7
      %v242 = vsub.s32 0, %v241
      %v243 = vrot.slane %v206, %v242
      %v245 = vmul.f32 %v207, %v243
      %v246 = vmul.f32 %v208, %v243
      %v247 = vmul.f32 %v209, %v243
      %v248 = vmul.f32 %v210, %v243
      %v249 = vmul.f32 %v211, %v243
      %v250 = vmul.f32 %v212, %v243
      %v251 = vmul.f32 %v213, %v243
      %v252 = vmul.f32 %v214, %v243
      %v253 = vmul.f32 %v215, %v243
      %v254 = vmul.f32 %v216, %v243
      %v255 = vmul.f32 %v217, %v243
      %v256 = vmul.f32 %v218, %v243
      %v257 = vmul.f32 %v219, %v243
      %v258 = vmul.f32 %v220, %v243
      %v259 = vmul.f32 %v221, %v243
      %v260 = vmul.f32 %v222, %v243
      %v261 = vmul.f32 %v223, %v243
      %v262 = vmul.f32 %v224, %v243
      %v263 = vmul.f32 %v225, %v243
      %v264 = vmul.f32 %v226, %v243
      %v265 = vmul.f32 %v227, %v243
      %v266 = vmul.f32 %v228, %v243
      %v267 = vmul.f32 %v229, %v243
      %v268 = vmul.f32 %v230, %v243
      %v269 = vmul.f32 %v231, %v243
      %v270 = vmul.f32 %v232, %v243
      %v271 = vmul.f32 %v233, %v243
      %v272 = vmul.f32 %v234, %v243
      %v273 = vmul.f32 %v235, %v243
      %v274 = vmul.f32 %v236, %v243
      %v275 = vmul.f32 %v237, %v243
      %v276 = vmul.f32 %v238, %v243
      %v277 = vld [vmem:[%s2] sm:$0x1]
      %v279 = vlaneseq
      %v280 = vshrl.u32 %v279, 7
      %v281 = vsub.s32 0, %v280
      %v282 = vrot.slane %v277, %v281
      %v284 = vadd.f32 %v245, %v282
      %v285 = vadd.f32 %v246, %v282
      %v286 = vadd.f32 %v247, %v282
      %v287 = vadd.f32 %v248, %v282
      %v288 = vadd.f32 %v249, %v282
      %v289 = vadd.f32 %v250, %v282
      %v290 = vadd.f32 %v251, %v282
      %v291 = vadd.f32 %v252, %v282
      %v292 = vadd.f32 %v253, %v282
      %v293 = vadd.f32 %v254, %v282
      %v294 = vadd.f32 %v255, %v282
      %v295 = vadd.f32 %v256, %v282
      %v296 = vadd.f32 %v257, %v282
      %v297 = vadd.f32 %v258, %v282
      %v298 = vadd.f32 %v259, %v282
      %v299 = vadd.f32 %v260, %v282
      %v300 = vadd.f32 %v261, %v282
      %v301 = vadd.f32 %v262, %v282
      %v302 = vadd.f32 %v263, %v282
      %v303 = vadd.f32 %v264, %v282
      %v304 = vadd.f32 %v265, %v282
      %v305 = vadd.f32 %v266, %v282
      %v306 = vadd.f32 %v267, %v282
      %v307 = vadd.f32 %v268, %v282
      %v308 = vadd.f32 %v269, %v282
      %v309 = vadd.f32 %v270, %v282
      %v310 = vadd.f32 %v271, %v282
      %v311 = vadd.f32 %v272, %v282
      %v312 = vadd.f32 %v273, %v282
      %v313 = vadd.f32 %v274, %v282
      %v314 = vadd.f32 %v275, %v282
      %v315 = vadd.f32 %v276, %v282
      %v316 = vmax.f32 %v284, 0.0
      %v317 = vmax.f32 %v285, 0.0
      %v318 = vmax.f32 %v286, 0.0
      %v319 = vmax.f32 %v287, 0.0
      %v320 = vmax.f32 %v288, 0.0
      %v321 = vmax.f32 %v289, 0.0
      %v322 = vmax.f32 %v290, 0.0
      %v323 = vmax.f32 %v291, 0.0
      %v324 = vmax.f32 %v292, 0.0
      %v325 = vmax.f32 %v293, 0.0
      %v326 = vmax.f32 %v294, 0.0
      %v327 = vmax.f32 %v295, 0.0
      %v328 = vmax.f32 %v296, 0.0
      %v329 = vmax.f32 %v297, 0.0
      %v330 = vmax.f32 %v298, 0.0
      %v331 = vmax.f32 %v299, 0.0
      %v332 = vmax.f32 %v300, 0.0
      %v333 = vmax.f32 %v301, 0.0
      %v334 = vmax.f32 %v302, 0.0
      %v335 = vmax.f32 %v303, 0.0
      %v336 = vmax.f32 %v304, 0.0
      %v337 = vmax.f32 %v305, 0.0
      %v338 = vmax.f32 %v306, 0.0
      %v339 = vmax.f32 %v307, 0.0
      %v340 = vmax.f32 %v308, 0.0
      %v341 = vmax.f32 %v309, 0.0
      %v342 = vmax.f32 %v310, 0.0
      %v343 = vmax.f32 %v311, 0.0
      %v344 = vmax.f32 %v312, 0.0
      %v345 = vmax.f32 %v313, 0.0
      %v346 = vmax.f32 %v314, 0.0
      %v347 = vmax.f32 %v315, 0.0
      %v348 = vpack.c.bf16 %v317, %v316
      %v349 = vpack.c.bf16 %v319, %v318
      %v350 = vpack.c.bf16 %v321, %v320
      %v351 = vpack.c.bf16 %v323, %v322
      %v352 = vpack.c.bf16 %v325, %v324
      %v353 = vpack.c.bf16 %v327, %v326
      %v354 = vpack.c.bf16 %v329, %v328
      %v355 = vpack.c.bf16 %v331, %v330
      %v356 = vpack.c.bf16 %v333, %v332
      %v357 = vpack.c.bf16 %v335, %v334
      %v358 = vpack.c.bf16 %v337, %v336
      %v359 = vpack.c.bf16 %v339, %v338
      %v360 = vpack.c.bf16 %v341, %v340
      %v361 = vpack.c.bf16 %v343, %v342
      %v362 = vpack.c.bf16 %v345, %v344
      %v363 = vpack.c.bf16 %v347, %v346
      %v380 = vunpack.c.l.b16 %v348
      %v381 = vunpack.c.h.b16 %v348
      %v382 = vunpack.c.l.b16 %v349
      %v383 = vunpack.c.h.b16 %v349
      %v384 = vunpack.c.l.b16 %v350
      %v385 = vunpack.c.h.b16 %v350
      %v386 = vunpack.c.l.b16 %v351
      %v387 = vunpack.c.h.b16 %v351
      %v388 = vunpack.c.l.b16 %v352
      %v389 = vunpack.c.h.b16 %v352
      %v390 = vunpack.c.l.b16 %v353
      %v391 = vunpack.c.h.b16 %v353
      %v392 = vunpack.c.l.b16 %v354
      %v393 = vunpack.c.h.b16 %v354
      %v394 = vunpack.c.l.b16 %v355
      %v395 = vunpack.c.h.b16 %v355
      %v396 = vunpack.c.l.b16 %v356
      %v397 = vunpack.c.h.b16 %v356
      %v398 = vunpack.c.l.b16 %v357
      %v399 = vunpack.c.h.b16 %v357
      %v400 = vunpack.c.l.b16 %v358
      %v401 = vunpack.c.h.b16 %v358
      %v402 = vunpack.c.l.b16 %v359
      %v403 = vunpack.c.h.b16 %v359
      %v404 = vunpack.c.l.b16 %v360
      %v405 = vunpack.c.h.b16 %v360
      %v406 = vunpack.c.l.b16 %v361
      %v407 = vunpack.c.h.b16 %v361
      %v408 = vunpack.c.l.b16 %v362
      %v409 = vunpack.c.h.b16 %v362
      %v410 = vunpack.c.l.b16 %v363
      %v411 = vunpack.c.h.b16 %v363
      %v412 = vpack.c.b16 %v380, %v380
      %v413 = vpack.c.b16 %v381, %v381
      %v414 = vpack.c.b16 %v382, %v382
      %v415 = vpack.c.b16 %v383, %v383
      %v416 = vpack.c.b16 %v384, %v384
      %v417 = vpack.c.b16 %v385, %v385
      %v418 = vpack.c.b16 %v386, %v386
      %v419 = vpack.c.b16 %v387, %v387
      %v420 = vpack.c.b16 %v388, %v388
      %v421 = vpack.c.b16 %v389, %v389
      %v422 = vpack.c.b16 %v390, %v390
      %v423 = vpack.c.b16 %v391, %v391
      %v424 = vpack.c.b16 %v392, %v392
      %v425 = vpack.c.b16 %v393, %v393
      %v426 = vpack.c.b16 %v394, %v394
      %v427 = vpack.c.b16 %v395, %v395
      %v428 = vpack.c.b16 %v396, %v396
      %v429 = vpack.c.b16 %v397, %v397
      %v430 = vpack.c.b16 %v398, %v398
      %v431 = vpack.c.b16 %v399, %v399
      %v432 = vpack.c.b16 %v400, %v400
      %v433 = vpack.c.b16 %v401, %v401
      %v434 = vpack.c.b16 %v402, %v402
      %v435 = vpack.c.b16 %v403, %v403
      %v436 = vpack.c.b16 %v404, %v404
      %v437 = vpack.c.b16 %v405, %v405
      %v438 = vpack.c.b16 %v406, %v406
      %v439 = vpack.c.b16 %v407, %v407
      %v440 = vpack.c.b16 %v408, %v408
      %v441 = vpack.c.b16 %v409, %v409
      %v442 = vpack.c.b16 %v410, %v410
      %v443 = vpack.c.b16 %v411, %v411
      %476 = vst [vmem:[%s172] sm:$0xf] %v412
      %477 = vst [vmem:[%s172 + $0x4] sm:$0xf] %v413
      %478 = vst [vmem:[%s172 + $0x8] sm:$0xf] %v414
      %479 = vst [vmem:[%s172 + $0xc] sm:$0xf] %v415
      %480 = vst [vmem:[%s172 + $0x10] sm:$0xf] %v416
      %481 = vst [vmem:[%s172 + $0x14] sm:$0xf] %v417
      %482 = vst [vmem:[%s172 + $0x18] sm:$0xf] %v418
      %483 = vst [vmem:[%s172 + $0x1c] sm:$0xf] %v419
      %484 = vst [vmem:[%s172 + $0x20] sm:$0xf] %v420
      %485 = vst [vmem:[%s172 + $0x24] sm:$0xf] %v421
      %486 = vst [vmem:[%s172 + $0x28] sm:$0xf] %v422
      %487 = vst [vmem:[%s172 + $0x2c] sm:$0xf] %v423
      %488 = vst [vmem:[%s172 + $0x30] sm:$0xf] %v424
      %489 = vst [vmem:[%s172 + $0x34] sm:$0xf] %v425
      %490 = vst [vmem:[%s172 + $0x38] sm:$0xf] %v426
      %491 = vst [vmem:[%s172 + $0x3c] sm:$0xf] %v427
      %492 = vst [vmem:[%s172 + $0x40] sm:$0xf] %v428
      %493 = vst [vmem:[%s172 + $0x44] sm:$0xf] %v429
      %494 = vst [vmem:[%s172 + $0x48] sm:$0xf] %v430
      %495 = vst [vmem:[%s172 + $0x4c] sm:$0xf] %v431
      %496 = vst [vmem:[%s172 + $0x50] sm:$0xf] %v432
      %497 = vst [vmem:[%s172 + $0x54] sm:$0xf] %v433
      %498 = vst [vmem:[%s172 + $0x58] sm:$0xf] %v434
      %499 = vst [vmem:[%s172 + $0x5c] sm:$0xf] %v435
      %500 = vst [vmem:[%s172 + $0x60] sm:$0xf] %v436
      %501 = vst [vmem:[%s172 + $0x64] sm:$0xf] %v437
      %502 = vst [vmem:[%s172 + $0x68] sm:$0xf] %v438
      %503 = vst [vmem:[%s172 + $0x6c] sm:$0xf] %v439
      %504 = vst [vmem:[%s172 + $0x70] sm:$0xf] %v440
      %505 = vst [vmem:[%s172 + $0x74] sm:$0xf] %v441
      %506 = vst [vmem:[%s172 + $0x78] sm:$0xf] %v442
      %507 = vst [vmem:[%s172 + $0x7c] sm:$0xf] %v443
      %s508 = smul.u32 32, %s14
      %p509 = scmp.lt.s32.totalorder %s508, 63
      %s510 = scalar_select %p509, %s508, 63
      %s511 = smul.addr %s510, 4
      %s512 = scalar_lea.vmem %s3, %s511
      // Predicated region
      $region33: #{_lambda_.7} parent=31 // pred_check
        %p513 = pneg %p100
      $region34: #{_lambda_.7} parent=31 // pred_check_branch
        %515 = sbr.rel (%p513) target = $region36
      $region35: #{_lambda_.7} parent=31 // pred_region
        %s516 = smul.u32 32, %s14
      $region36: #{_lambda_.7} parent=31 // pred_fallthru
        _
    $region32: #{_lambda_.7} parent=5 // pred_fallthru
      _
    %p517 = scmp.le.s32.totalorder 2, %s9
    // Predicated region
    $region37: #{_lambda_.7} parent=5 // pred_check
      %p518 = pneg %p517
    $region38: #{_lambda_.7} parent=5 // pred_check_branch
      %520 = sbr.rel (%p518) target = $region40
    $region39: #{_lambda_.7} parent=5 // pred_region
      %s521 = ssub.s32 %s9, 2
      // Predicated region
      $region41: #{_lambda_.7} parent=39 // pred_check
        %p522 = pneg %p106
      $region42: #{_lambda_.7} parent=39 // pred_check_branch
        %524 = sbr.rel (%p522) target = $region44
      $region43: #{_lambda_.7} parent=39 // pred_region
        %s525 = smul.u32 32, %s15
        %p526 = scmp.lt.s32.totalorder %s525, 63
        %s527 = scalar_select %p526, %s525, 63
        %s528 = smul.addr %s527, 4
        %s529 = scalar_lea.vmem %s3, %s528
      $region44: #{_lambda_.7} parent=39 // pred_fallthru
        _
    $region40: #{_lambda_.7} parent=5 // pred_fallthru
      _
  $region6: #{_lambda_.7} parent=0 // loop_footer
    %s13 = sadd.s32 1, %s9
  $region7: #{_lambda_.7} parent=0 // loop_footer_branch
    %8 = sbr.rel target = $region3
  $region8: #{_lambda_.7} parent=0 // loop_exit
    _

// kernel: _lambda_.9
$region0: #{_lambda_.9}
  #allocation0 [shape = 'u32[]', space=smem, size = 0x4, offset = 0x4, fixed_abs, tag = 'smem constant byte address 0x4 - core index']
  #allocation1 [shape = 'u32[144,128]{1,0:T(1,128)}', space=vmem, size = 0x12000, scoped, tag = 'internal scratch']
  %s0 = inlined_call_operand.vmem [shape: bf16[512,128], index: 0, kind: input, shape index: {}]
  %s1 = inlined_call_operand.vmem [shape: f32[1,128], index: 1, kind: input, shape index: {}]
  %s2 = inlined_call_operand.vmem [shape: f32[1,128], index: 2, kind: input, shape index: {}]
  %s3 = inlined_call_operand.vmem [shape: f32[512,128], index: 3, kind: output, shape index: {}]
  %s4 = sld [smem:[#allocation0]]
  $region45: #{_lambda_.9} parent=0
    _
  %s6 = ssub.s32 1, %s4
  %s7 = scalar_select 0, %s6, %s4
  loop: start=0, step=1, limit=4
  $region2: #{_lambda_.9} parent=0 // loop_pre_header
    _
  $region3: #{_lambda_.9} parent=0 // loop_header
    %s9 = sphi 0, %s13
    %p10 = scmp.ge.s32.totalorder %s9, 4
    %s19 = sphi 0, %s21
    %s22 = sphi 0, %s19
    %s23 = sphi 0, %s22
    %s39 = sphi 0, %s23
    %s43 = sphi 0, %s43
    %s45 = sphi 0, %s43
    %s46 = sphi 0, %s45
    %s60 = sphi 0, %s46
    %s64 = sphi 0, %s64
    %s66 = sphi 0, %s64
    %s67 = sphi 0, %s66
    %s81 = sphi 0, %s67
    %s87 = sphi 0, %s89
    %s90 = sphi 0, %s87
    %s91 = sphi 0, %s90
    %s107 = sphi 0, %s91
  $region4: #{_lambda_.9} parent=0 // loop_header_branch
    %12 = sbr.rel (%p10) target = $region8
  $region5: #{_lambda_.9} parent=0 // loop_body
    %s14 = ssub.s32 %s9, 1
    %s15 = ssub.s32 %s9, 2
    %s16 = sadd.s32 %s9, 1
    %s17 = ssub.s32 %s9, %s16
    %p18 = scmp.eq.s32.totalorder %s17, 0
    %s20 = sadd.s32 %s19, 1
    %s21 = scalar_select %p18, %s19, %s20
    %p24 = pneg %p18
    %p25 = scmp.eq.s32.totalorder %s9, 1
    %p26 = por %p24, %p25
    %p27 = scmp.ne.s32.totalorder %s19, %s22
    %p28 = scmp.eq.s32.totalorder %s9, 0
    %p29 = por %p27, %p28
    %p30 = scmp.ne.s32.totalorder %s19, %s22
    %p31 = scmp.eq.s32.totalorder %s14, 1
    %p32 = por %p30, %p31
    %p33 = scmp.ne.s32.totalorder %s22, %s23
    %p34 = scmp.eq.s32.totalorder %s14, 0
    %p35 = por %p33, %p34
    %p36 = scmp.ne.s32.totalorder %s22, %s23
    %p37 = scmp.eq.s32.totalorder %s15, 1
    %p38 = por %p36, %p37
    %p40 = scmp.ne.s32.totalorder %s23, %s39
    %p41 = scmp.eq.s32.totalorder %s15, 0
    %p42 = por %p40, %p41
    %s44 = sadd.s32 %s43, 1
    %p47 = scmp.eq.s32.totalorder %s9, 1
    %p48 = scmp.ne.s32.totalorder %s43, %s45
    %p49 = scmp.eq.s32.totalorder %s9, 0
    %p50 = por %p48, %p49
    %p51 = scmp.ne.s32.totalorder %s43, %s45
    %p52 = scmp.eq.s32.totalorder %s14, 1
    %p53 = por %p51, %p52
    %p54 = scmp.ne.s32.totalorder %s45, %s46
    %p55 = scmp.eq.s32.totalorder %s14, 0
    %p56 = por %p54, %p55
    %p57 = scmp.ne.s32.totalorder %s45, %s46
    %p58 = scmp.eq.s32.totalorder %s15, 1
    %p59 = por %p57, %p58
    %p61 = scmp.ne.s32.totalorder %s46, %s60
    %p62 = scmp.eq.s32.totalorder %s15, 0
    %p63 = por %p61, %p62
    %s65 = sadd.s32 %s64, 1
    %p68 = scmp.eq.s32.totalorder %s9, 1
    %p69 = scmp.ne.s32.totalorder %s64, %s66
    %p70 = scmp.eq.s32.totalorder %s9, 0
    %p71 = por %p69, %p70
    %p72 = scmp.ne.s32.totalorder %s64, %s66
    %p73 = scmp.eq.s32.totalorder %s14, 1
    %p74 = por %p72, %p73
    %p75 = scmp.ne.s32.totalorder %s66, %s67
    %p76 = scmp.eq.s32.totalorder %s14, 0
    %p77 = por %p75, %p76
    %p78 = scmp.ne.s32.totalorder %s66, %s67
    %p79 = scmp.eq.s32.totalorder %s15, 1
    %p80 = por %p78, %p79
    %p82 = scmp.ne.s32.totalorder %s67, %s81
    %p83 = scmp.eq.s32.totalorder %s15, 0
    %p84 = por %p82, %p83
    %s85 = ssub.s32 %s9, %s16
    %p86 = scmp.eq.s32.totalorder %s85, 0
    %s88 = sadd.s32 %s87, 1
    %s89 = scalar_select %p86, %s87, %s88
    %p92 = pneg %p86
    %p93 = scmp.eq.s32.totalorder %s9, 1
    %p94 = por %p92, %p93
    %p95 = scmp.ne.s32.totalorder %s87, %s90
    %p96 = scmp.eq.s32.totalorder %s9, 0
    %p97 = por %p95, %p96
    %p98 = scmp.ne.s32.totalorder %s87, %s90
    %p99 = scmp.eq.s32.totalorder %s14, 1
    %p100 = por %p98, %p99
    %p101 = scmp.ne.s32.totalorder %s90, %s91
    %p102 = scmp.eq.s32.totalorder %s14, 0
    %p103 = por %p101, %p102
    %p104 = scmp.ne.s32.totalorder %s90, %s91
    %p105 = scmp.eq.s32.totalorder %s15, 1
    %p106 = por %p104, %p105
    %p108 = scmp.ne.s32.totalorder %s91, %s107
    %p109 = scmp.eq.s32.totalorder %s15, 0
    %p110 = por %p108, %p109
    %p111 = scmp.le.s32.totalorder 1, %s9
    %p112 = scmp.lt.s32.totalorder %s9, 3
    %p113 = pnand %p111, %p112
    %p114 = pneg %p113
    // Predicated region
    $region9: #{_lambda_.9} parent=5 // pred_check
      _
    $region10: #{_lambda_.9} parent=5 // pred_check_branch
      %116 = sbr.rel (%p113) target = $region12
    $region11: #{_lambda_.9} parent=5 // pred_region
      %s117 = ssub.s32 %s9, 1
      // Predicated region
      $region13: #{_lambda_.9} parent=11 // pred_check
        %p118 = pneg %p56
      $region14: #{_lambda_.9} parent=11 // pred_check_branch
        %120 = sbr.rel (%p118) target = $region16
      $region15: #{_lambda_.9} parent=11 // pred_region
        _
      $region16: #{_lambda_.9} parent=11 // pred_fallthru
        _
      // Predicated region
      $region17: #{_lambda_.9} parent=11 // pred_check
        %p121 = pneg %p77
      $region18: #{_lambda_.9} parent=11 // pred_check_branch
        %123 = sbr.rel (%p121) target = $region20
      $region19: #{_lambda_.9} parent=11 // pred_region
        _
      $region20: #{_lambda_.9} parent=11 // pred_fallthru
        _
    $region12: #{_lambda_.9} parent=5 // pred_fallthru
      _
    %p124 = scmp.lt.s32.totalorder %s9, 2
    // Predicated region
    $region21: #{_lambda_.9} parent=5 // pred_check
      %p125 = pneg %p124
    $region22: #{_lambda_.9} parent=5 // pred_check_branch
      %127 = sbr.rel (%p125) target = $region24
    $region23: #{_lambda_.9} parent=5 // pred_region
      // Predicated region
      $region25: #{_lambda_.9} parent=23 // pred_check
        %p128 = pneg %p29
      $region26: #{_lambda_.9} parent=23 // pred_check_branch
        %130 = sbr.rel (%p128) target = $region28
      $region27: #{_lambda_.9} parent=23 // pred_region
        %s131 = smul.u32 32, %s9
        %p132 = scmp.lt.s32.totalorder %s131, 63
        %s133 = scalar_select %p132, %s131, 63
        %s134 = smul.addr %s133, 4
        %s135 = scalar_lea.vmem %s0, %s134
        %s136 = smul.u32 32, %s9
      $region28: #{_lambda_.9} parent=23 // pred_fallthru
        _
    $region24: #{_lambda_.9} parent=5 // pred_fallthru
      _
    %p137 = scmp.le.s32.totalorder 1, %s9
    %p138 = scmp.lt.s32.totalorder %s9, 3
    %p139 = pnand %p137, %p138
    %p140 = pneg %p139
    // Predicated region
    $region29: #{_lambda_.9} parent=5 // pred_check
      _
    $region30: #{_lambda_.9} parent=5 // pred_check_branch
      %142 = sbr.rel (%p139) target = $region32
    $region31: #{_lambda_.9} parent=5 // pred_region
      %s143 = ssub.s32 %s9, 1
      %s144 = smul.u32 32, %s14
      %p145 = scmp.lt.s32.totalorder %s144, 63
      %s146 = scalar_select %p145, %s144, 63
      %s147 = smul.addr %s146, 4
      %s148 = scalar_lea.vmem %s0, %s147
      %p149 = pneg %p35
      %p150 = pneg %p32
      %p151 = pneg %p56
      %p152 = pneg %p53
      %p153 = pneg %p77
      %p154 = pneg %p74
      %p155 = pneg %p103
      %p156 = pneg %p100
      %s157 = smul.u32 32, %s14
      %p158 = scmp.lt.s32.totalorder %s157, 63
      %s159 = scalar_select %p158, %s157, 63
      %s160 = smul.addr %s159, 8
      %s161 = scalar_lea.vmem %s3, %s160
      %s162 = smul.u32 32, %s14
      %p163 = scmp.lt.s32.totalorder %s162, 63
      %s164 = scalar_select %p163, %s162, 63
      %s165 = smul.addr %s164, 4
      %s166 = scalar_lea.vmem %s0, %s165
      %s167 = smul.u32 32, %s14
      %s168 = smul.u32 32, %s14
      %p169 = scmp.lt.s32.totalorder %s168, 63
      %s170 = scalar_select %p169, %s168, 63
      %s171 = smul.addr %s170, 8
      %s172 = scalar_lea.vmem %s3, %s171
      %s173 = smul.u32 32, %s14
      %v174 = vld [vmem:[%s166] sm:$0xf]
      %v175 = vld [vmem:[%s166 + $0x4] sm:$0xf]
      %v176 = vld [vmem:[%s166 + $0x8] sm:$0xf]
      %v177 = vld [vmem:[%s166 + $0xc] sm:$0xf]
      %v178 = vld [vmem:[%s166 + $0x10] sm:$0xf]
      %v179 = vld [vmem:[%s166 + $0x14] sm:$0xf]
      %v180 = vld [vmem:[%s166 + $0x18] sm:$0xf]
      %v181 = vld [vmem:[%s166 + $0x1c] sm:$0xf]
      %v182 = vld [vmem:[%s166 + $0x20] sm:$0xf]
      %v183 = vld [vmem:[%s166 + $0x24] sm:$0xf]
      %v184 = vld [vmem:[%s166 + $0x28] sm:$0xf]
      %v185 = vld [vmem:[%s166 + $0x2c] sm:$0xf]
      %v186 = vld [vmem:[%s166 + $0x30] sm:$0xf]
      %v187 = vld [vmem:[%s166 + $0x34] sm:$0xf]
      %v188 = vld [vmem:[%s166 + $0x38] sm:$0xf]
      %v189 = vld [vmem:[%s166 + $0x3c] sm:$0xf]
      %v190 = vld [vmem:[%s166 + $0x40] sm:$0xf]
      %v191 = vld [vmem:[%s166 + $0x44] sm:$0xf]
      %v192 = vld [vmem:[%s166 + $0x48] sm:$0xf]
      %v193 = vld [vmem:[%s166 + $0x4c] sm:$0xf]
      %v194 = vld [vmem:[%s166 + $0x50] sm:$0xf]
      %v195 = vld [vmem:[%s166 + $0x54] sm:$0xf]
      %v196 = vld [vmem:[%s166 + $0x58] sm:$0xf]
      %v197 = vld [vmem:[%s166 + $0x5c] sm:$0xf]
      %v198 = vld [vmem:[%s166 + $0x60] sm:$0xf]
      %v199 = vld [vmem:[%s166 + $0x64] sm:$0xf]
      %v200 = vld [vmem:[%s166 + $0x68] sm:$0xf]
      %v201 = vld [vmem:[%s166 + $0x6c] sm:$0xf]
      %v202 = vld [vmem:[%s166 + $0x70] sm:$0xf]
      %v203 = vld [vmem:[%s166 + $0x74] sm:$0xf]
      %v204 = vld [vmem:[%s166 + $0x78] sm:$0xf]
      %v205 = vld [vmem:[%s166 + $0x7c] sm:$0xf]
      %v206 = vld [vmem:[%s1] sm:$0x1]
      %v207 = vunpack.c.l.bf16 %v174
      %v208 = vunpack.c.l.bf16 %v175
      %v209 = vunpack.c.l.bf16 %v176
      %v210 = vunpack.c.l.bf16 %v177
      %v211 = vunpack.c.l.bf16 %v178
      %v212 = vunpack.c.l.bf16 %v179
      %v213 = vunpack.c.l.bf16 %v180
      %v214 = vunpack.c.l.bf16 %v181
      %v215 = vunpack.c.l.bf16 %v182
      %v216 = vunpack.c.l.bf16 %v183
      %v217 = vunpack.c.l.bf16 %v184
      %v218 = vunpack.c.l.bf16 %v185
      %v219 = vunpack.c.l.bf16 %v186
      %v220 = vunpack.c.l.bf16 %v187
      %v221 = vunpack.c.l.bf16 %v188
      %v222 = vunpack.c.l.bf16 %v189
      %v223 = vunpack.c.l.bf16 %v190
      %v224 = vunpack.c.l.bf16 %v191
      %v225 = vunpack.c.l.bf16 %v192
      %v226 = vunpack.c.l.bf16 %v193
      %v227 = vunpack.c.l.bf16 %v194
      %v228 = vunpack.c.l.bf16 %v195
      %v229 = vunpack.c.l.bf16 %v196
      %v230 = vunpack.c.l.bf16 %v197
      %v231 = vunpack.c.l.bf16 %v198
      %v232 = vunpack.c.l.bf16 %v199
      %v233 = vunpack.c.l.bf16 %v200
      %v234 = vunpack.c.l.bf16 %v201
      %v235 = vunpack.c.l.bf16 %v202
      %v236 = vunpack.c.l.bf16 %v203
      %v237 = vunpack.c.l.bf16 %v204
      %v238 = vunpack.c.l.bf16 %v205
      %v240 = vlaneseq
      %v241 = vshrl.u32 %v240, 7
      %v242 = vsub.s32 0, %v241
      %v243 = vrot.slane %v206, %v242
      %v245 = vmul.f32 %v207, %v243
      %v246 = vmul.f32 %v208, %v243
      %v247 = vmul.f32 %v209, %v243
      %v248 = vmul.f32 %v210, %v243
      %v249 = vmul.f32 %v211, %v243
      %v250 = vmul.f32 %v212, %v243
      %v251 = vmul.f32 %v213, %v243
      %v252 = vmul.f32 %v214, %v243
      %v253 = vmul.f32 %v215, %v243
      %v254 = vmul.f32 %v216, %v243
      %v255 = vmul.f32 %v217, %v243
      %v256 = vmul.f32 %v218, %v243
      %v257 = vmul.f32 %v219, %v243
      %v258 = vmul.f32 %v220, %v243
      %v259 = vmul.f32 %v221, %v243
      %v260 = vmul.f32 %v222, %v243
      %v261 = vmul.f32 %v223, %v243
      %v262 = vmul.f32 %v224, %v243
      %v263 = vmul.f32 %v225, %v243
      %v264 = vmul.f32 %v226, %v243
      %v265 = vmul.f32 %v227, %v243
      %v266 = vmul.f32 %v228, %v243
      %v267 = vmul.f32 %v229, %v243
      %v268 = vmul.f32 %v230, %v243
      %v269 = vmul.f32 %v231, %v243
      %v270 = vmul.f32 %v232, %v243
      %v271 = vmul.f32 %v233, %v243
      %v272 = vmul.f32 %v234, %v243
      %v273 = vmul.f32 %v235, %v243
      %v274 = vmul.f32 %v236, %v243
      %v275 = vmul.f32 %v237, %v243
      %v276 = vmul.f32 %v238, %v243
      %v277 = vld [vmem:[%s2] sm:$0x1]
      %v279 = vlaneseq
      %v280 = vshrl.u32 %v279, 7
      %v281 = vsub.s32 0, %v280
      %v282 = vrot.slane %v277, %v281
      %v284 = vadd.f32 %v245, %v282
      %v285 = vadd.f32 %v246, %v282
      %v286 = vadd.f32 %v247, %v282
      %v287 = vadd.f32 %v248, %v282
      %v288 = vadd.f32 %v249, %v282
      %v289 = vadd.f32 %v250, %v282
      %v290 = vadd.f32 %v251, %v282
      %v291 = vadd.f32 %v252, %v282
      %v292 = vadd.f32 %v253, %v282
      %v293 = vadd.f32 %v254, %v282
      %v294 = vadd.f32 %v255, %v282
      %v295 = vadd.f32 %v256, %v282
      %v296 = vadd.f32 %v257, %v282
      %v297 = vadd.f32 %v258, %v282
      %v298 = vadd.f32 %v259, %v282
      %v299 = vadd.f32 %v260, %v282
      %v300 = vadd.f32 %v261, %v282
      %v301 = vadd.f32 %v262, %v282
      %v302 = vadd.f32 %v263, %v282
      %v303 = vadd.f32 %v264, %v282
      %v304 = vadd.f32 %v265, %v282
      %v305 = vadd.f32 %v266, %v282
      %v306 = vadd.f32 %v267, %v282
      %v307 = vadd.f32 %v268, %v282
      %v308 = vadd.f32 %v269, %v282
      %v309 = vadd.f32 %v270, %v282
      %v310 = vadd.f32 %v271, %v282
      %v311 = vadd.f32 %v272, %v282
      %v312 = vadd.f32 %v273, %v282
      %v313 = vadd.f32 %v274, %v282
      %v314 = vadd.f32 %v275, %v282
      %v315 = vadd.f32 %v276, %v282
      %v316 = vmax.f32 %v284, 0.0
      %v317 = vmax.f32 %v285, 0.0
      %v318 = vmax.f32 %v286, 0.0
      %v319 = vmax.f32 %v287, 0.0
      %v320 = vmax.f32 %v288, 0.0
      %v321 = vmax.f32 %v289, 0.0
      %v322 = vmax.f32 %v290, 0.0
      %v323 = vmax.f32 %v291, 0.0
      %v324 = vmax.f32 %v292, 0.0
      %v325 = vmax.f32 %v293, 0.0
      %v326 = vmax.f32 %v294, 0.0
      %v327 = vmax.f32 %v295, 0.0
      %v328 = vmax.f32 %v296, 0.0
      %v329 = vmax.f32 %v297, 0.0
      %v330 = vmax.f32 %v298, 0.0
      %v331 = vmax.f32 %v299, 0.0
      %v332 = vmax.f32 %v300, 0.0
      %v333 = vmax.f32 %v301, 0.0
      %v334 = vmax.f32 %v302, 0.0
      %v335 = vmax.f32 %v303, 0.0
      %v336 = vmax.f32 %v304, 0.0
      %v337 = vmax.f32 %v305, 0.0
      %v338 = vmax.f32 %v306, 0.0
      %v339 = vmax.f32 %v307, 0.0
      %v340 = vmax.f32 %v308, 0.0
      %v341 = vmax.f32 %v309, 0.0
      %v342 = vmax.f32 %v310, 0.0
      %v343 = vmax.f32 %v311, 0.0
      %v344 = vmax.f32 %v312, 0.0
      %v345 = vmax.f32 %v313, 0.0
      %v346 = vmax.f32 %v314, 0.0
      %v347 = vmax.f32 %v315, 0.0
      %348 = vst [vmem:[%s172] sm:$0xff] %v316
      %349 = vst [vmem:[%s172 + $0x8] sm:$0xff] %v317
      %350 = vst [vmem:[%s172 + $0x10] sm:$0xff] %v318
      %351 = vst [vmem:[%s172 + $0x18] sm:$0xff] %v319
      %352 = vst [vmem:[%s172 + $0x20] sm:$0xff] %v320
      %353 = vst [vmem:[%s172 + $0x28] sm:$0xff] %v321
      %354 = vst [vmem:[%s172 + $0x30] sm:$0xff] %v322
      %355 = vst [vmem:[%s172 + $0x38] sm:$0xff] %v323
      %356 = vst [vmem:[%s172 + $0x40] sm:$0xff] %v324
      %357 = vst [vmem:[%s172 + $0x48] sm:$0xff] %v325
      %358 = vst [vmem:[%s172 + $0x50] sm:$0xff] %v326
      %359 = vst [vmem:[%s172 + $0x58] sm:$0xff] %v327
      %360 = vst [vmem:[%s172 + $0x60] sm:$0xff] %v328
      %361 = vst [vmem:[%s172 + $0x68] sm:$0xff] %v329
      %362 = vst [vmem:[%s172 + $0x70] sm:$0xff] %v330
      %363 = vst [vmem:[%s172 + $0x78] sm:$0xff] %v331
      %364 = vst [vmem:[%s172 + $0x80] sm:$0xff] %v332
      %365 = vst [vmem:[%s172 + $0x88] sm:$0xff] %v333
      %366 = vst [vmem:[%s172 + $0x90] sm:$0xff] %v334
      %367 = vst [vmem:[%s172 + $0x98] sm:$0xff] %v335
      %368 = vst [vmem:[%s172 + $0xa0] sm:$0xff] %v336
      %369 = vst [vmem:[%s172 + $0xa8] sm:$0xff] %v337
      %370 = vst [vmem:[%s172 + $0xb0] sm:$0xff] %v338
      %371 = vst [vmem:[%s172 + $0xb8] sm:$0xff] %v339
      %372 = vst [vmem:[%s172 + $0xc0] sm:$0xff] %v340
      %373 = vst [vmem:[%s172 + $0xc8] sm:$0xff] %v341
      %374 = vst [vmem:[%s172 + $0xd0] sm:$0xff] %v342
      %375 = vst [vmem:[%s172 + $0xd8] sm:$0xff] %v343
      %376 = vst [vmem:[%s172 + $0xe0] sm:$0xff] %v344
      %377 = vst [vmem:[%s172 + $0xe8] sm:$0xff] %v345
      %378 = vst [vmem:[%s172 + $0xf0] sm:$0xff] %v346
      %379 = vst [vmem:[%s172 + $0xf8] sm:$0xff] %v347
      %s380 = smul.u32 32, %s14
      %p381 = scmp.lt.s32.totalorder %s380, 63
      %s382 = scalar_select %p381, %s380, 63
      %s383 = smul.addr %s382, 8
      %s384 = scalar_lea.vmem %s3, %s383
      // Predicated region
      $region33: #{_lambda_.9} parent=31 // pred_check
        %p385 = pneg %p100
      $region34: #{_lambda_.9} parent=31 // pred_check_branch
        %387 = sbr.rel (%p385) target = $region36
      $region35: #{_lambda_.9} parent=31 // pred_region
        %s388 = smul.u32 32, %s14
      $region36: #{_lambda_.9} parent=31 // pred_fallthru
        _
    $region32: #{_lambda_.9} parent=5 // pred_fallthru
      _
    %p389 = scmp.le.s32.totalorder 2, %s9
    // Predicated region
    $region37: #{_lambda_.9} parent=5 // pred_check
      %p390 = pneg %p389
    $region38: #{_lambda_.9} parent=5 // pred_check_branch
      %392 = sbr.rel (%p390) target = $region40
    $region39: #{_lambda_.9} parent=5 // pred_region
      %s393 = ssub.s32 %s9, 2
      // Predicated region
      $region41: #{_lambda_.9} parent=39 // pred_check
        %p394 = pneg %p106
      $region42: #{_lambda_.9} parent=39 // pred_check_branch
        %396 = sbr.rel (%p394) target = $region44
      $region43: #{_lambda_.9} parent=39 // pred_region
        %s397 = smul.u32 32, %s15
        %p398 = scmp.lt.s32.totalorder %s397, 63
        %s399 = scalar_select %p398, %s397, 63
        %s400 = smul.addr %s399, 8
        %s401 = scalar_lea.vmem %s3, %s400
      $region44: #{_lambda_.9} parent=39 // pred_fallthru
        _
    $region40: #{_lambda_.9} parent=5 // pred_fallthru
      _
  $region6: #{_lambda_.9} parent=0 // loop_footer
    %s13 = sadd.s32 1, %s9
  $region7: #{_lambda_.9} parent=0 // loop_footer_branch
    %8 = sbr.rel target = $region3
  $region8: #{_lambda_.9} parent=0 // loop_exit
    _

// kernel: _lambda_.6
$region0: #{_lambda_.6}
  #allocation0 [shape = 'u32[]', space=smem, size = 0x4, offset = 0x4, fixed_abs, tag = 'smem constant byte address 0x4 - core index']
  #allocation1 [shape = 'u32[144,128]{1,0:T(1,128)}', space=vmem, size = 0x12000, scoped, tag = 'internal scratch']
  #allocation2 [shape = 'f32[64,128]{1,0:T(8,128)}', space=vmem, size = 0x8000, scoped, tag = 'scratch operand']
  %s0 = inlined_call_operand.vmem [shape: bf16[2,6,10,10,128], index: 0, kind: input, shape index: {}]
  %s1 = inlined_call_operand.vmem [shape: bf16[3,3,3,128,128], index: 1, kind: input, shape index: {}]
  %s2 = inlined_call_operand.vmem [shape: f32[1,128], index: 2, kind: input, shape index: {}]
  %s3 = inlined_call_operand.vmem [shape: bf16[2,4,64,128], index: 3, kind: output, shape index: {0}]
  %s4 = inlined_call_operand.vmem [shape: f32[2,4,2,128], index: 4, kind: output, shape index: {1}]
  %5 = xla_tuple %s3, %s4
  %s6 = sld [smem:[#allocation0]]
  $region61: #{_lambda_.6} parent=0
    _
  %s8 = ssub.s32 1, %s6
  %s9 = scalar_select 0, %s8, %s6
  loop: start=0, step=1, limit=26
  $region2: #{_lambda_.6} parent=0 // loop_pre_header
    _
  $region3: #{_lambda_.6} parent=0 // loop_header
    %s11 = sphi 0, %s15
    %p12 = scmp.ge.s32.totalorder %s11, 26
    %s18 = sphi 0, %s37
    %s19 = sphi 0, %s33
    %s20 = sphi 0, %s29
    %s21 = sphi 0, %s18
    %s22 = sphi 0, %s19
    %s23 = sphi 0, %s20
    %s24 = sphi 0, %s21
    %s25 = sphi 0, %s22
    %s26 = sphi 0, %s23
    %s44 = sphi 0, %s46
    %s47 = sphi 0, %s44
    %s48 = sphi 0, %s47
    %s64 = sphi 0, %s48
    %s70 = sphi 0, %s72
    %s73 = sphi 0, %s70
    %s74 = sphi 0, %s73
    %s90 = sphi 0, %s74
    %s94 = sphi 0, %s94
    %s96 = sphi 0, %s94
    %s97 = sphi 0, %s96
    %s111 = sphi 0, %s97
    %s119 = sphi 0, %s121
    %s122 = sphi 0, %s119
    %s123 = sphi 0, %s122
    %s139 = sphi 0, %s123
    %s147 = sphi 0, %s149
    %s150 = sphi 0, %s147
    %s151 = sphi 0, %s150
    %s167 = sphi 0, %s151
  $region4: #{_lambda_.6} parent=0 // loop_header_branch
    %14 = sbr.rel (%p12) target = $region8
  $region5: #{_lambda_.6} parent=0 // loop_body
    %s16 = ssub.s32 %s11, 1
    %s17 = ssub.s32 %s11, 2
    %s27 = sadd.s32 1, %s20
    %p28 = scmp.ge.s32.totalorder %s27, 3
    %s29 = scalar_select %p28, 0, %s27
    %s30 = sadd.s32 1, %s19
    %s31 = scalar_select %p28, %s30, %s19
    %p32 = scmp.ge.s32.totalorder %s31, 4
    %s33 = scalar_select %p32, 0, %s31
    %s34 = sadd.s32 1, %s18
    %s35 = scalar_select %p32, %s34, %s18
    %p36 = scmp.ge.s32.totalorder %s35, 2
    %s37 = scalar_select %p36, 0, %s35
    %s38 = sadd.s32 %s19, %s20
    %s39 = sadd.s32 %s33, %s29
    %s40 = ssub.s32 %s18, %s37
    %s41 = ssub.s32 %s38, %s39
    %s42 = sor.u32 %s40, %s41
    %p43 = scmp.eq.s32.totalorder %s42, 0
    %s45 = sadd.s32 %s44, 1
    %s46 = scalar_select %p43, %s44, %s45
    %p49 = pneg %p43
    %p50 = scmp.eq.s32.totalorder %s11, 23
    %p51 = por %p49, %p50
    %p52 = scmp.ne.s32.totalorder %s44, %s47
    %p53 = scmp.eq.s32.totalorder %s11, 0
    %p54 = por %p52, %p53
    %p55 = scmp.ne.s32.totalorder %s44, %s47
    %p56 = scmp.eq.s32.totalorder %s16, 23
    %p57 = por %p55, %p56
    %p58 = scmp.ne.s32.totalorder %s47, %s48
    %p59 = scmp.eq.s32.totalorder %s16, 0
    %p60 = por %p58, %p59
    %p61 = scmp.ne.s32.totalorder %s47, %s48
    %p62 = scmp.eq.s32.totalorder %s17, 23
    %p63 = por %p61, %p62
    %p65 = scmp.ne.s32.totalorder %s48, %s64
    %p66 = scmp.eq.s32.totalorder %s17, 0
    %p67 = por %p65, %p66
    %s68 = ssub.s32 %s20, %s29
    %p69 = scmp.eq.s32.totalorder %s68, 0
    %s71 = sadd.s32 %s70, 1
    %s72 = scalar_select %p69, %s70, %s71
    %p75 = pneg %p69
    %p76 = scmp.eq.s32.totalorder %s11, 23
    %p77 = por %p75, %p76
    %p78 = scmp.ne.s32.totalorder %s70, %s73
    %p79 = scmp.eq.s32.totalorder %s11, 0
    %p80 = por %p78, %p79
    %p81 = scmp.ne.s32.totalorder %s70, %s73
    %p82 = scmp.eq.s32.totalorder %s16, 23
    %p83 = por %p81, %p82
    %p84 = scmp.ne.s32.totalorder %s73, %s74
    %p85 = scmp.eq.s32.totalorder %s16, 0
    %p86 = por %p84, %p85
    %p87 = scmp.ne.s32.totalorder %s73, %s74
    %p88 = scmp.eq.s32.totalorder %s17, 23
    %p89 = por %p87, %p88
    %p91 = scmp.ne.s32.totalorder %s74, %s90
    %p92 = scmp.eq.s32.totalorder %s17, 0
    %p93 = por %p91, %p92
    %s95 = sadd.s32 %s94, 1
    %p98 = scmp.eq.s32.totalorder %s11, 23
    %p99 = scmp.ne.s32.totalorder %s94, %s96
    %p100 = scmp.eq.s32.totalorder %s11, 0
    %p101 = por %p99, %p100
    %p102 = scmp.ne.s32.totalorder %s94, %s96
    %p103 = scmp.eq.s32.totalorder %s16, 23
    %p104 = por %p102, %p103
    %p105 = scmp.ne.s32.totalorder %s96, %s97
    %p106 = scmp.eq.s32.totalorder %s16, 0
    %p107 = por %p105, %p106
    %p108 = scmp.ne.s32.totalorder %s96, %s97
    %p109 = scmp.eq.s32.totalorder %s17, 23
    %p110 = por %p108, %p109
    %p112 = scmp.ne.s32.totalorder %s97, %s111
    %p113 = scmp.eq.s32.totalorder %s17, 0
    %p114 = por %p112, %p113
    %s115 = ssub.s32 %s18, %s37
    %s116 = ssub.s32 %s19, %s33
    %s117 = sor.u32 %s115, %s116
    %p118 = scmp.eq.s32.totalorder %s117, 0
    %s120 = sadd.s32 %s119, 1
    %s121 = scalar_select %p118, %s119, %s120
    %p124 = pneg %p118
    %p125 = scmp.eq.s32.totalorder %s11, 23
    %p126 = por %p124, %p125
    %p127 = scmp.ne.s32.totalorder %s119, %s122
    %p128 = scmp.eq.s32.totalorder %s11, 0
    %p129 = por %p127, %p128
    %p130 = scmp.ne.s32.totalorder %s119, %s122
    %p131 = scmp.eq.s32.totalorder %s16, 23
    %p132 = por %p130, %p131
    %p133 = scmp.ne.s32.totalorder %s122, %s123
    %p134 = scmp.eq.s32.totalorder %s16, 0
    %p135 = por %p133, %p134
    %p136 = scmp.ne.s32.totalorder %s122, %s123
    %p137 = scmp.eq.s32.totalorder %s17, 23
    %p138 = por %p136, %p137
    %p140 = scmp.ne.s32.totalorder %s123, %s139
    %p141 = scmp.eq.s32.totalorder %s17, 0
    %p142 = por %p140, %p141
    %s143 = ssub.s32 %s18, %s37
    %s144 = ssub.s32 %s19, %s33
    %s145 = sor.u32 %s143, %s144
    %p146 = scmp.eq.s32.totalorder %s145, 0
    %s148 = sadd.s32 %s147, 1
    %s149 = scalar_select %p146, %s147, %s148
    %p152 = pneg %p146
    %p153 = scmp.eq.s32.totalorder %s11, 23
    %p154 = por %p152, %p153
    %p155 = scmp.ne.s32.totalorder %s147, %s150
    %p156 = scmp.eq.s32.totalorder %s11, 0
    %p157 = por %p155, %p156
    %p158 = scmp.ne.s32.totalorder %s147, %s150
    %p159 = scmp.eq.s32.totalorder %s16, 23
    %p160 = por %p158, %p159
    %p161 = scmp.ne.s32.totalorder %s150, %s151
    %p162 = scmp.eq.s32.totalorder %s16, 0
    %p163 = por %p161, %p162
    %p164 = scmp.ne.s32.totalorder %s150, %s151
    %p165 = scmp.eq.s32.totalorder %s17, 23
    %p166 = por %p164, %p165
    %p168 = scmp.ne.s32.totalorder %s151, %s167
    %p169 = scmp.eq.s32.totalorder %s17, 0
    %p170 = por %p168, %p169
    %p171 = scmp.le.s32.totalorder 1, %s11
    %p172 = scmp.lt.s32.totalorder %s11, 25
    %p173 = pnand %p171, %p172
    %p174 = pneg %p173
    // Predicated region
    $region9: #{_lambda_.6} parent=5 // pred_check
      _
    $region10: #{_lambda_.6} parent=5 // pred_check_branch
      %176 = sbr.rel (%p173) target = $region12
    $region11: #{_lambda_.6} parent=5 // pred_region
      %s177 = ssub.s32 %s11, 1
      // Predicated region
      $region13: #{_lambda_.6} parent=11 // pred_check
        %p178 = pneg %p107
      $region14: #{_lambda_.6} parent=11 // pred_check_branch
        %180 = sbr.rel (%p178) target = $region16
      $region15: #{_lambda_.6} parent=11 // pred_region
        _
      $region16: #{_lambda_.6} parent=11 // pred_fallthru
        _
    $region12: #{_lambda_.6} parent=5 // pred_fallthru
      _
    %p181 = scmp.lt.s32.totalorder %s11, 24
    // Predicated region
    $region17: #{_lambda_.6} parent=5 // pred_check
      %p182 = pneg %p181
    $region18: #{_lambda_.6} parent=5 // pred_check_branch
      %184 = sbr.rel (%p182) target = $region20
    $region19: #{_lambda_.6} parent=5 // pred_region
      // Predicated region
      $region21: #{_lambda_.6} parent=19 // pred_check
        %p185 = pneg %p54
      $region22: #{_lambda_.6} parent=19 // pred_check_branch
        %187 = sbr.rel (%p185) target = $region24
      $region23: #{_lambda_.6} parent=19 // pred_region
        %s188 = sadd.s32 %s19, %s20
        %p189 = scmp.lt.s32.totalorder %s18, 1
        %s190 = scalar_select %p189, %s18, 1
        %p191 = scmp.lt.s32.totalorder %s188, 5
        %s192 = scalar_select %p191, %s188, 5
        %s193 = smul.addr %s192, 20
        %s194 = smul.addr %s190, 120
        %s195 = sadd.s32 %s193, %s194
        %s196 = smul.addr %s195, 4
        %s197 = scalar_lea.vmem %s0, %s196
        %s198 = sadd.s32 %s19, %s20
      $region24: #{_lambda_.6} parent=19 // pred_fallthru
        _
      // Predicated region
      $region25: #{_lambda_.6} parent=19 // pred_check
        %p199 = pneg %p80
      $region26: #{_lambda_.6} parent=19 // pred_check_branch
        %201 = sbr.rel (%p199) target = $region28
      $region27: #{_lambda_.6} parent=19 // pred_region
        %p202 = scmp.lt.s32.totalorder %s20, 2
        %s203 = scalar_select %p202, %s20, 2
        %s204 = smul.addr %s203, 144
        %s205 = smul.addr %s204, 4
        %s206 = scalar_lea.vmem %s1, %s205
      $region28: #{_lambda_.6} parent=19 // pred_fallthru
        _
    $region20: #{_lambda_.6} parent=5 // pred_fallthru
      _
    %p207 = scmp.le.s32.totalorder 1, %s11
    %p208 = scmp.lt.s32.totalorder %s11, 25
    %p209 = pnand %p207, %p208
    %p210 = pneg %p209
    // Predicated region
    $region29: #{_lambda_.6} parent=5 // pred_check
      _
    $region30: #{_lambda_.6} parent=5 // pred_check_branch
      %212 = sbr.rel (%p209) target = $region32
    $region31: #{_lambda_.6} parent=5 // pred_region
      %s213 = ssub.s32 %s11, 1
      %s214 = sadd.s32 %s22, %s23
      %p215 = scmp.lt.s32.totalorder %s21, 1
      %s216 = scalar_select %p215, %s21, 1
      %p217 = scmp.lt.s32.totalorder %s214, 5
      %s218 = scalar_select %p217, %s214, 5
      %s219 = smul.addr %s218, 20
      %s220 = smul.addr %s216, 120
      %s221 = sadd.s32 %s219, %s220
      %s222 = smul.addr %s221, 4
      %s223 = scalar_lea.vmem %s0, %s222
      %p224 = pneg %p60
      %p225 = pneg %p57
      %p226 = scmp.lt.s32.totalorder %s23, 2
      %s227 = scalar_select %p226, %s23, 2
      %s228 = smul.addr %s227, 144
      %s229 = smul.addr %s228, 4
      %s230 = scalar_lea.vmem %s1, %s229
      %p231 = pneg %p86
      %p232 = pneg %p83
      %p233 = pneg %p107
      %p234 = pneg %p104
      %p235 = pneg %p135
      %p236 = pneg %p132
      %p237 = scmp.lt.s32.totalorder %s21, 1
      %s238 = scalar_select %p237, %s21, 1
      %p239 = scmp.lt.s32.totalorder %s22, 3
      %s240 = scalar_select %p239, %s22, 3
      %s241 = smul.addr %s240, 8
      %s242 = smul.addr %s238, 32
      %s243 = sadd.s32 %s241, %s242
      %s244 = smul.addr %s243, 4
      %s245 = scalar_lea.vmem %s3, %s244
      %p246 = pneg %p163
      %p247 = pneg %p160
      %p248 = scmp.lt.s32.totalorder %s21, 1
      %s249 = scalar_select %p248, %s21, 1
      %p250 = scmp.lt.s32.totalorder %s22, 3
      %s251 = scalar_select %p250, %s22, 3
      %s252 = smul.addr %s249, 4
      %s253 = sadd.s32 %s251, %s252
      %s254 = smul.addr %s253, 2
      %s255 = scalar_lea.vmem %s4, %s254
      %s256 = sadd.s32 %s22, %s23
      %p257 = scmp.lt.s32.totalorder %s21, 1
      %s258 = scalar_select %p257, %s21, 1
      %p259 = scmp.lt.s32.totalorder %s256, 5
      %s260 = scalar_select %p259, %s256, 5
      %s261 = smul.addr %s260, 20
      %s262 = smul.addr %s258, 120
      %s263 = sadd.s32 %s261, %s262
      %s264 = smul.addr %s263, 4
      %s265 = scalar_lea.vmem %s0, %s264
      %s266 = sadd.s32 %s22, %s23
      %p267 = scmp.lt.s32.totalorder %s23, 2
      %s268 = scalar_select %p267, %s23, 2
      %s269 = smul.addr %s268, 144
      %s270 = smul.addr %s269, 4
      %s271 = scalar_lea.vmem %s1, %s270
      %p272 = scmp.lt.s32.totalorder %s21, 1
      %s273 = scalar_select %p272, %s21, 1
      %p274 = scmp.lt.s32.totalorder %s22, 3
      %s275 = scalar_select %p274, %s22, 3
      %s276 = smul.addr %s275, 8
      %s277 = smul.addr %s273, 32
      %s278 = sadd.s32 %s276, %s277
      %s279 = smul.addr %s278, 4
      %s280 = scalar_lea.vmem %s3, %s279
      %p281 = scmp.lt.s32.totalorder %s21, 1
      %s282 = scalar_select %p281, %s21, 1
      %p283 = scmp.lt.s32.totalorder %s22, 3
      %s284 = scalar_select %p283, %s22, 3
      %s285 = smul.addr %s282, 4
      %s286 = sadd.s32 %s284, %s285
      %s287 = smul.addr %s286, 2
      %s288 = scalar_lea.vmem %s4, %s287
      %p290 = scmp.eq.s32.totalorder %s23, 0
      // Predicated region
      $region33: #{_lambda_.6} parent=31 // pred_check
        %p291 = pneg %p290
      $region34: #{_lambda_.6} parent=31 // pred_check_branch
        %293 = sbr.rel (%p291) target = $region36
      $region35: #{_lambda_.6} parent=31 // pred_region
        %294 = vst [vmem:[#allocation2] sm:$0xff] 0.0
        %295 = vst [vmem:[#allocation2 + $0x8] sm:$0xff] 0.0
        %296 = vst [vmem:[#allocation2 + $0x10] sm:$0xff] 0.0
        %297 = vst [vmem:[#allocation2 + $0x18] sm:$0xff] 0.0
        %298 = vst [vmem:[#allocation2 + $0x20] sm:$0xff] 0.0
        %299 = vst [vmem:[#allocation2 + $0x28] sm:$0xff] 0.0
        %300 = vst [vmem:[#allocation2 + $0x30] sm:$0xff] 0.0
        %301 = vst [vmem:[#allocation2 + $0x38] sm:$0xff] 0.0
      $region36: #{_lambda_.6} parent=31 // pred_fallthru
        _
      %v302 = vld [vmem:[%s265] sm:$0xf]
      %v303 = vld [vmem:[%s265 + $0x8] sm:$0xf]
      %v304 = vld [vmem:[%s265 + $0x10] sm:$0xf]
      %v305 = vld [vmem:[%s265 + $0x18] sm:$0xf]
      %v306 = vld [vmem:[%s265 + $0x20] sm:$0xf]
      %v307 = vld [vmem:[%s265 + $0x28] sm:$0xf]
      %v308 = vld [vmem:[%s265 + $0x30] sm:$0xf]
      %v309 = vld [vmem:[%s265 + $0x38] sm:$0xf]
      %v310 = vld [vmem:[%s271] sm:$0xf]
      %v311 = vld [vmem:[%s271 + $0x4] sm:$0xf]
      %v312 = vld [vmem:[%s271 + $0x8] sm:$0xf]
      %v313 = vld [vmem:[%s271 + $0xc] sm:$0xf]
      %v314 = vld [vmem:[%s271 + $0x10] sm:$0xf]
      %v315 = vld [vmem:[%s271 + $0x14] sm:$0xf]
      %v316 = vld [vmem:[%s271 + $0x18] sm:$0xf]
      %v317 = vld [vmem:[%s271 + $0x1c] sm:$0xf]
      %v318 = vld [vmem:[%s271 + $0x20] sm:$0xf]
      %v319 = vld [vmem:[%s271 + $0x24] sm:$0xf]
      %v320 = vld [vmem:[%s271 + $0x28] sm:$0xf]
      %v321 = vld [vmem:[%s271 + $0x2c] sm:$0xf]
      %v322 = vld [vmem:[%s271 + $0x30] sm:$0xf]
      %v323 = vld [vmem:[%s271 + $0x34] sm:$0xf]
      %v324 = vld [vmem:[%s271 + $0x38] sm:$0xf]
      %v325 = vld [vmem:[%s271 + $0x3c] sm:$0xf]
      %v326 = vld [vmem:[%s265 + $0x4] sm:$0x1]
      %v327 = vld [vmem:[%s265 + $0xc] sm:$0x1]
      %v328 = vld [vmem:[%s265 + $0x14] sm:$0x1]
      %v329 = vld [vmem:[%s265 + $0x1c] sm:$0x1]
      %v330 = vld [vmem:[%s265 + $0x24] sm:$0x1]
      %v331 = vld [vmem:[%s265 + $0x2c] sm:$0x1]
      %v332 = vld [vmem:[%s265 + $0x34] sm:$0x1]
      %v333 = vld [vmem:[%s265 + $0x3c] sm:$0x1]
      %vm334 = vsmask.f32 3328
      %vm335 = vsmask.f32 7440
      %vm336 = vmor %vm334, %vm335
      %v338 = vshrl.u32 %v302, 16
      %v340 = vrot.slane %v338, 4
      %v341 = vshll.u32 %v302, 16
      %v343 = vrot.slane %v341, 5
      %v344 = vor.u32 %v340, %v343
      %v345 = vrot.slane %v344, 4
      %v347 = vshll.u32 %v326, 16
      %v349 = vrot.slane %v347, 5
      %v350 = vsel %vm336, %v345, %v349
      %v352 = vshrl.u32 %v303, 16
      %v354 = vrot.slane %v352, 4
      %v355 = vshll.u32 %v303, 16
      %v357 = vrot.slane %v355, 5
      %v358 = vor.u32 %v354, %v357
      %v359 = vrot.slane %v358, 4
      %v361 = vshll.u32 %v327, 16
      %v363 = vrot.slane %v361, 5
      %v364 = vsel %vm336, %v359, %v363
      %v366 = vshrl.u32 %v304, 16
      %v368 = vrot.slane %v366, 4
      %v369 = vshll.u32 %v304, 16
      %v371 = vrot.slane %v369, 5
      %v372 = vor.u32 %v368, %v371
      %v373 = vrot.slane %v372, 4
      %v375 = vshll.u32 %v328, 16
      %v377 = vrot.slane %v375, 5
      %v378 = vsel %vm336, %v373, %v377
      %v380 = vshrl.u32 %v305, 16
      %v382 = vrot.slane %v380, 4
      %v383 = vshll.u32 %v305, 16
      %v385 = vrot.slane %v383, 5
      %v386 = vor.u32 %v382, %v385
      %v387 = vrot.slane %v386, 4
      %v389 = vshll.u32 %v329, 16
      %v391 = vrot.slane %v389, 5
      %v392 = vsel %vm336, %v387, %v391
      %v394 = vshrl.u32 %v306, 16
      %v396 = vrot.slane %v394, 4
      %v397 = vshll.u32 %v306, 16
      %v399 = vrot.slane %v397, 5
      %v400 = vor.u32 %v396, %v399
      %v401 = vrot.slane %v400, 4
      %v403 = vshll.u32 %v330, 16
      %v405 = vrot.slane %v403, 5
      %v406 = vsel %vm336, %v401, %v405
      %v408 = vshrl.u32 %v307, 16
      %v410 = vrot.slane %v408, 4
      %v411 = vshll.u32 %v307, 16
      %v413 = vrot.slane %v411, 5
      %v414 = vor.u32 %v410, %v413
      %v415 = vrot.slane %v414, 4
      %v417 = vshll.u32 %v331, 16
      %v419 = vrot.slane %v417, 5
      %v420 = vsel %vm336, %v415, %v419
      %v422 = vshrl.u32 %v308, 16
      %v424 = vrot.slane %v422, 4
      %v425 = vshll.u32 %v308, 16
      %v427 = vrot.slane %v425, 5
      %v428 = vor.u32 %v424, %v427
      %v429 = vrot.slane %v428, 4
      %v431 = vshll.u32 %v332, 16
      %v433 = vrot.slane %v431, 5
      %v434 = vsel %vm336, %v429, %v433
      %v436 = vshrl.u32 %v309, 16
      %v438 = vrot.slane %v436, 4
      %v439 = vshll.u32 %v309, 16
      %v441 = vrot.slane %v439, 5
      %v442 = vor.u32 %v438, %v441
      %v443 = vrot.slane %v442, 4
      %v445 = vshll.u32 %v333, 16
      %v447 = vrot.slane %v445, 5
      %v448 = vsel %vm336, %v443, %v447
      %s449 = scalar_lea.vmem %s271, 64
      %v450 = vld [vmem:[%s449] sm:$0xf]
      %v451 = vld [vmem:[%s449 + $0x4] sm:$0xf]
      %v452 = vld [vmem:[%s449 + $0x8] sm:$0xf]
      %v453 = vld [vmem:[%s449 + $0xc] sm:$0xf]
      %v454 = vld [vmem:[%s449 + $0x10] sm:$0xf]
      %v455 = vld [vmem:[%s449 + $0x14] sm:$0xf]
      %v456 = vld [vmem:[%s449 + $0x18] sm:$0xf]
      %v457 = vld [vmem:[%s449 + $0x1c] sm:$0xf]
      %v458 = vld [vmem:[%s449 + $0x20] sm:$0xf]
      %v459 = vld [vmem:[%s449 + $0x24] sm:$0xf]
      %v460 = vld [vmem:[%s449 + $0x28] sm:$0xf]
      %v461 = vld [vmem:[%s449 + $0x2c] sm:$0xf]
      %v462 = vld [vmem:[%s449 + $0x30] sm:$0xf]
      %v463 = vld [vmem:[%s449 + $0x34] sm:$0xf]
      %v464 = vld [vmem:[%s449 + $0x38] sm:$0xf]
      %v465 = vld [vmem:[%s449 + $0x3c] sm:$0xf]
      %v466 = vunpack.c.l.b16 %v350
      %v467 = vunpack.c.l.b16 %v364
      %v468 = vunpack.c.l.b16 %v378
      %v469 = vunpack.c.l.b16 %v392
      %v470 = vunpack.c.l.b16 %v406
      %v471 = vunpack.c.l.b16 %v420
      %v472 = vunpack.c.l.b16 %v434
      %v473 = vunpack.c.l.b16 %v448
      %v474 = vpack.c.b16 %v467, %v466
      %v475 = vpack.c.b16 %v469, %v468
      %v476 = vpack.c.b16 %v471, %v470
      %v477 = vpack.c.b16 %v473, %v472
      %v498 = vunpack.c.l.b16 %v450
      %v499 = vunpack.c.l.b16 %v451
      %v500 = vunpack.c.l.b16 %v452
      %v501 = vunpack.c.l.b16 %v453
      %v502 = vunpack.c.l.b16 %v454
      %v503 = vunpack.c.l.b16 %v455
      %v504 = vunpack.c.l.b16 %v456
      %v505 = vunpack.c.l.b16 %v457
      %v506 = vunpack.c.l.b16 %v458
      %v507 = vunpack.c.l.b16 %v459
      %v508 = vunpack.c.l.b16 %v460
      %v509 = vunpack.c.l.b16 %v461
      %v510 = vunpack.c.l.b16 %v462
      %v511 = vunpack.c.l.b16 %v463
      %v512 = vunpack.c.l.b16 %v464
      %v513 = vunpack.c.l.b16 %v465
      %v514 = vpack.c.b16 %v499, %v498
      %v515 = vpack.c.b16 %v501, %v500
      %v516 = vpack.c.b16 %v503, %v502
      %v517 = vpack.c.b16 %v505, %v504
      %v518 = vpack.c.b16 %v507, %v506
      %v519 = vpack.c.b16 %v509, %v508
      %v520 = vpack.c.b16 %v511, %v510
      %v521 = vpack.c.b16 %v513, %v512
      %530 = vmatprep.subr.bf16.mxu0 0
      %531 = vmatpush1.bf16.msra.mxu0 %v514
      %532 = vmatprep.subr.bf16.mxu0 0
      %533 = vmatpush1.bf16.msra.mxu0 %v515
      %534 = vmatprep.subr.bf16.mxu0 0
      %535 = vmatpush1.bf16.msra.mxu0 %v516
      %536 = vmatprep.subr.bf16.mxu0 0
      %537 = vmatpush1.bf16.msra.mxu0 %v517
      %538 = vmatprep.subr.bf16.mxu0 0
      %539 = vmatpush1.bf16.msra.mxu0 %v518
      %540 = vmatprep.subr.bf16.mxu0 0
      %541 = vmatpush1.bf16.msra.mxu0 %v519
      %542 = vmatprep.subr.bf16.mxu0 0
      %543 = vmatpush1.bf16.msra.mxu0 %v520
      %544 = vmatprep.subr.bf16.mxu0 0
      %545 = vmatpush1.bf16.msra.mxu0 %v521
      %546 = vmatprep.subr.bf16.mxu0 0
      %547 = vmatpush1.bf16.msra.mxu0 0
      %548 = vmatprep.subr.bf16.mxu0 0
      %549 = vmatpush1.bf16.msra.mxu0 0
      %550 = vmatprep.subr.bf16.mxu0 0
      %551 = vmatpush1.bf16.msra.mxu0 0
      %552 = vmatprep.subr.bf16.mxu0 0
      %553 = vmatpush1.bf16.msra.mxu0 0
      %554 = vmatprep.subr.bf16.mxu0 0
      %555 = vmatpush1.bf16.msra.mxu0 0
      %556 = vmatprep.subr.bf16.mxu0 0
      %557 = vmatpush1.bf16.msra.mxu0 0
      %558 = vmatprep.subr.bf16.mxu0 0
      %559 = vmatpush1.bf16.msra.mxu0 0
      %560 = vmatprep.subr.bf16.mxu0 0
      %561 = vmatpush1.bf16.msra.mxu0 0
      %562 = vmatprep.mubr.bf16.mxu0 0
      %563 = vmatmul.mubr.bf16.gmra.mrb[0].mxu0 %v474
      %v564 = vpop.f32.mrb[0].mxu0
      %v565 = vadd.f32 0.0, %v564
      %v566 = vpop.f32.mrb[0].mxu0
      %v567 = vpop.f32.mrb[0].mxu0
      %v568 = vadd.f32 0.0, %v567
      %v569 = vpop.f32.mrb[0].mxu0
      %570 = vmatprep.mubr.bf16.mxu0 0
      %571 = vmatmul.mubr.bf16.gmra.mrb[0].mxu0 %v475
      %v572 = vpop.f32.mrb[0].mxu0
      %v573 = vadd.f32 0.0, %v572
      %v574 = vpop.f32.mrb[0].mxu0
      %v575 = vpop.f32.mrb[0].mxu0
      %v576 = vadd.f32 0.0, %v575
      %v577 = vpop.f32.mrb[0].mxu0
      %578 = vmatprep.mubr.bf16.mxu0 0
      %579 = vmatmul.mubr.bf16.gmra.mrb[0].mxu0 %v476
      %v580 = vpop.f32.mrb[0].mxu0
      %v581 = vadd.f32 0.0, %v580
      %v582 = vpop.f32.mrb[0].mxu0
      %v583 = vpop.f32.mrb[0].mxu0
      %v584 = vadd.f32 0.0, %v583
      %v585 = vpop.f32.mrb[0].mxu0
      %586 = vmatprep.mubr.bf16.mxu0 0
      %587 = vmatmul.mubr.bf16.gmra.mrb[0].mxu0 %v477
      %v588 = vpop.f32.mrb[0].mxu0
      %v589 = vadd.f32 0.0, %v588
      %v590 = vpop.f32.mrb[0].mxu0
      %v591 = vpop.f32.mrb[0].mxu0
      %v592 = vadd.f32 0.0, %v591
      %v593 = vpop.f32.mrb[0].mxu0
      %594 = vdwg.mxu0
      %v603 = vunpack.c.l.b16 %v302
      %v604 = vunpack.c.l.b16 %v303
      %v605 = vunpack.c.l.b16 %v304
      %v606 = vunpack.c.l.b16 %v305
      %v607 = vunpack.c.l.b16 %v306
      %v608 = vunpack.c.l.b16 %v307
      %v609 = vunpack.c.l.b16 %v308
      %v610 = vunpack.c.l.b16 %v309
      %v611 = vpack.c.b16 %v604, %v603
      %v612 = vpack.c.b16 %v606, %v605
      %v613 = vpack.c.b16 %v608, %v607
      %v614 = vpack.c.b16 %v610, %v609
      %v635 = vunpack.c.l.b16 %v310
      %v636 = vunpack.c.l.b16 %v311
      %v637 = vunpack.c.l.b16 %v312
      %v638 = vunpack.c.l.b16 %v313
      %v639 = vunpack.c.l.b16 %v314
      %v640 = vunpack.c.l.b16 %v315
      %v641 = vunpack.c.l.b16 %v316
      %v642 = vunpack.c.l.b16 %v317
      %v643 = vunpack.c.l.b16 %v318
      %v644 = vunpack.c.l.b16 %v319
      %v645 = vunpack.c.l.b16 %v320
      %v646 = vunpack.c.l.b16 %v321
      %v647 = vunpack.c.l.b16 %v322
      %v648 = vunpack.c.l.b16 %v323
      %v649 = vunpack.c.l.b16 %v324
      %v650 = vunpack.c.l.b16 %v325
      %v651 = vpack.c.b16 %v636, %v635
      %v652 = vpack.c.b16 %v638, %v637
      %v653 = vpack.c.b16 %v640, %v639
      %v654 = vpack.c.b16 %v642, %v641
      %v655 = vpack.c.b16 %v644, %v643
      %v656 = vpack.c.b16 %v646, %v645
      %v657 = vpack.c.b16 %v648, %v647
      %v658 = vpack.c.b16 %v650, %v649
      %667 = vmatprep.subr.bf16.mxu0 0
      %668 = vmatpush1.bf16.msra.mxu0 %v651
      %669 = vmatprep.subr.bf16.mxu0 0
      %670 = vmatpush1.bf16.msra.mxu0 %v652
      %671 = vmatprep.subr.bf16.mxu0 0
      %672 = vmatpush1.bf16.msra.mxu0 %v653
      %673 = vmatprep.subr.bf16.mxu0 0
      %674 = vmatpush1.bf16.msra.mxu0 %v654
      %675 = vmatprep.subr.bf16.mxu0 0
      %676 = vmatpush1.bf16.msra.mxu0 %v655
      %677 = vmatprep.subr.bf16.mxu0 0
      %678 = vmatpush1.bf16.msra.mxu0 %v656
      %679 = vmatprep.subr.bf16.mxu0 0
      %680 = vmatpush1.bf16.msra.mxu0 %v657
      %681 = vmatprep.subr.bf16.mxu0 0
      %682 = vmatpush1.bf16.msra.mxu0 %v658
      %683 = vmatprep.subr.bf16.mxu0 0
      %684 = vmatpush1.bf16.msra.mxu0 0
      %685 = vmatprep.subr.bf16.mxu0 0
      %686 = vmatpush1.bf16.msra.mxu0 0
      %687 = vmatprep.subr.bf16.mxu0 0
      %688 = vmatpush1.bf16.msra.mxu0 0
      %689 = vmatprep.subr.bf16.mxu0 0
      %690 = vmatpush1.bf16.msra.mxu0 0
      %691 = vmatprep.subr.bf16.mxu0 0
      %692 = vmatpush1.bf16.msra.mxu0 0
      %693 = vmatprep.subr.bf16.mxu0 0
      %694 = vmatpush1.bf16.msra.mxu0 0
      %695 = vmatprep.subr.bf16.mxu0 0
      %696 = vmatpush1.bf16.msra.mxu0 0
      %697 = vmatprep.subr.bf16.mxu0 0
      %698 = vmatpush1.bf16.msra.mxu0 0
      %699 = vmatprep.mubr.bf16.mxu0 0
      %700 = vmatmul.mubr.bf16.gmra.mrb[0].mxu0 %v611
      %v701 = vpop.f32.mrb[0].mxu0
      %v702 = vadd.f32 %v565, %v701
      %v703 = vpop.f32.mrb[0].mxu0
      %v704 = vpop.f32.mrb[0].mxu0
      %v705 = vadd.f32 %v568, %v704
      %v706 = vpop.f32.mrb[0].mxu0
      %707 = vmatprep.mubr.bf16.mxu0 0
      %708 = vmatmul.mubr.bf16.gmra.mrb[0].mxu0 %v612
      %v709 = vpop.f32.mrb[0].mxu0
      %v710 = vadd.f32 %v573, %v709
      %v711 = vpop.f32.mrb[0].mxu0
      %v712 = vpop.f32.mrb[0].mxu0
      %v713 = vadd.f32 %v576, %v712
      %v714 = vpop.f32.mrb[0].mxu0
      %715 = vmatprep.mubr.bf16.mxu0 0
      %716 = vmatmul.mubr.bf16.gmra.mrb[0].mxu0 %v613
      %v717 = vpop.f32.mrb[0].mxu0
      %v718 = vadd.f32 %v581, %v717
      %v719 = vpop.f32.mrb[0].mxu0
      %v720 = vpop.f32.mrb[0].mxu0
      %v721 = vadd.f32 %v584, %v720
      %v722 = vpop.f32.mrb[0].mxu0
      %723 = vmatprep.mubr.bf16.mxu0 0
      %724 = vmatmul.mubr.bf16.gmra.mrb[0].mxu0 %v614
      %v725 = vpop.f32.mrb[0].mxu0
      %v726 = vadd.f32 %v589, %v725
      %v727 = vpop.f32.mrb[0].mxu0
      %v728 = vpop.f32.mrb[0].mxu0
      %v729 = vadd.f32 %v592, %v728
      %v730 = vpop.f32.mrb[0].mxu0
      %731 = vdwg.mxu0
      %v732 = vld [vmem:[%s265] sm:$0xe]
      %v733 = vld [vmem:[%s265 + $0x8] sm:$0xe]
      %v734 = vld [vmem:[%s265 + $0x10] sm:$0xe]
      %v735 = vld [vmem:[%s265 + $0x18] sm:$0xe]
      %v736 = vld [vmem:[%s265 + $0x20] sm:$0xe]
      %v737 = vld [vmem:[%s265 + $0x28] sm:$0xe]
      %v738 = vld [vmem:[%s265 + $0x30] sm:$0xe]
      %v739 = vld [vmem:[%s265 + $0x38] sm:$0xe]
      %vm756 = vcmask 1042432
      %vm757 = vcmask 1046532
      %vm758 = vmor %vm756, %vm757
      %v759 = vrot.slane %v732, 5
      %v760 = vrot.slane %v759, 4
      %v761 = vrot.slane %v326, 5
      %v762 = vsel %vm758, %v760, %v761
      %v763 = vrot.slane %v733, 5
      %v764 = vrot.slane %v763, 4
      %v765 = vrot.slane %v327, 5
      %v766 = vsel %vm758, %v764, %v765
      %v767 = vrot.slane %v734, 5
      %v768 = vrot.slane %v767, 4
      %v769 = vrot.slane %v328, 5
      %v770 = vsel %vm758, %v768, %v769
      %v771 = vrot.slane %v735, 5
      %v772 = vrot.slane %v771, 4
      %v773 = vrot.slane %v329, 5
      %v774 = vsel %vm758, %v772, %v773
      %v775 = vrot.slane %v736, 5
      %v776 = vrot.slane %v775, 4
      %v777 = vrot.slane %v330, 5
      %v778 = vsel %vm758, %v776, %v777
      %v779 = vrot.slane %v737, 5
      %v780 = vrot.slane %v779, 4
      %v781 = vrot.slane %v331, 5
      %v782 = vsel %vm758, %v780, %v781
      %v783 = vrot.slane %v738, 5
      %v784 = vrot.slane %v783, 4
      %v785 = vrot.slane %v332, 5
      %v786 = vsel %vm758, %v784, %v785
      %v787 = vrot.slane %v739, 5
      %v788 = vrot.slane %v787, 4
      %v789 = vrot.slane %v333, 5
      %v790 = vsel %vm758, %v788, %v789
      %s791 = scalar_lea.vmem %s271, 128
      %v792 = vld [vmem:[%s791] sm:$0xf]
      %v793 = vld [vmem:[%s791 + $0x4] sm:$0xf]
      %v794 = vld [vmem:[%s791 + $0x8] sm:$0xf]
      %v795 = vld [vmem:[%s791 + $0xc] sm:$0xf]
      %v796 = vld [vmem:[%s791 + $0x10] sm:$0xf]
      %v797 = vld [vmem:[%s791 + $0x14] sm:$0xf]
      %v798 = vld [vmem:[%s791 + $0x18] sm:$0xf]
      %v799 = vld [vmem:[%s791 + $0x1c] sm:$0xf]
      %v800 = vld [vmem:[%s791 + $0x20] sm:$0xf]
      %v801 = vld [vmem:[%s791 + $0x24] sm:$0xf]
      %v802 = vld [vmem:[%s791 + $0x28] sm:$0xf]
      %v803 = vld [vmem:[%s791 + $0x2c] sm:$0xf]
      %v804 = vld [vmem:[%s791 + $0x30] sm:$0xf]
      %v805 = vld [vmem:[%s791 + $0x34] sm:$0xf]
      %v806 = vld [vmem:[%s791 + $0x38] sm:$0xf]
      %v807 = vld [vmem:[%s791 + $0x3c] sm:$0xf]
      %v808 = vunpack.c.l.b16 %v762
      %v809 = vunpack.c.l.b16 %v766
      %v810 = vunpack.c.l.b16 %v770
      %v811 = vunpack.c.l.b16 %v774
      %v812 = vunpack.c.l.b16 %v778
      %v813 = vunpack.c.l.b16 %v782
      %v814 = vunpack.c.l.b16 %v786
      %v815 = vunpack.c.l.b16 %v790
      %v816 = vpack.c.b16 %v809, %v808
      %v817 = vpack.c.b16 %v811, %v810
      %v818 = vpack.c.b16 %v813, %v812
      %v819 = vpack.c.b16 %v815, %v814
      %v840 = vunpack.c.l.b16 %v792
      %v841 = vunpack.c.l.b16 %v793
      %v842 = vunpack.c.l.b16 %v794
      %v843 = vunpack.c.l.b16 %v795
      %v844 = vunpack.c.l.b16 %v796
      %v845 = vunpack.c.l.b16 %v797
      %v846 = vunpack.c.l.b16 %v798
      %v847 = vunpack.c.l.b16 %v799
      %v848 = vunpack.c.l.b16 %v800
      %v849 = vunpack.c.l.b16 %v801
      %v850 = vunpack.c.l.b16 %v802
      %v851 = vunpack.c.l.b16 %v803
      %v852 = vunpack.c.l.b16 %v804
      %v853 = vunpack.c.l.b16 %v805
      %v854 = vunpack.c.l.b16 %v806
      %v855 = vunpack.c.l.b16 %v807
      %v856 = vpack.c.b16 %v841, %v840
      %v857 = vpack.c.b16 %v843, %v842
      %v858 = vpack.c.b16 %v845, %v844
      %v859 = vpack.c.b16 %v847, %v846
      %v860 = vpack.c.b16 %v849, %v848
      %v861 = vpack.c.b16 %v851, %v850
      %v862 = vpack.c.b16 %v853, %v852
      %v863 = vpack.c.b16 %v855, %v854
      %872 = vmatprep.subr.bf16.mxu0 0
      %873 = vmatpush1.bf16.msra.mxu0 %v856
      %874 = vmatprep.subr.bf16.mxu0 0
      %875 = vmatpush1.bf16.msra.mxu0 %v857
      %876 = vmatprep.subr.bf16.mxu0 0
      %877 = vmatpush1.bf16.msra.mxu0 %v858
      %878 = vmatprep.subr.bf16.mxu0 0
      %879 = vmatpush1.bf16.msra.mxu0 %v859
      %880 = vmatprep.subr.bf16.mxu0 0
      %881 = vmatpush1.bf16.msra.mxu0 %v860
      %882 = vmatprep.subr.bf16.mxu0 0
      %883 = vmatpush1.bf16.msra.mxu0 %v861
      %884 = vmatprep.subr.bf16.mxu0 0
      %885 = vmatpush1.bf16.msra.mxu0 %v862
      %886 = vmatprep.subr.bf16.mxu0 0
      %887 = vmatpush1.bf16.msra.mxu0 %v863
      %888 = vmatprep.subr.bf16.mxu0 0
      %889 = vmatpush1.bf16.msra.mxu0 0
      %890 = vmatprep.subr.bf16.mxu0 0
      %891 = vmatpush1.bf16.msra.mxu0 0
      %892 = vmatprep.subr.bf16.mxu0 0
      %893 = vmatpush1.bf16.msra.mxu0 0
      %894 = vmatprep.subr.bf16.mxu0 0
      %895 = vmatpush1.bf16.msra.mxu0 0
      %896 = vmatprep.subr.bf16.mxu0 0
      %897 = vmatpush1.bf16.msra.mxu0 0
      %898 = vmatprep.subr.bf16.mxu0 0
      %899 = vmatpush1.bf16.msra.mxu0 0
      %900 = vmatprep.subr.bf16.mxu0 0
      %901 = vmatpush1.bf16.msra.mxu0 0
      %902 = vmatprep.subr.bf16.mxu0 0
      %903 = vmatpush1.bf16.msra.mxu0 0
      %904 = vmatprep.mubr.bf16.mxu0 0
      %905 = vmatmul.mubr.bf16.gmra.mrb[0].mxu0 %v816
      %v906 = vpop.f32.mrb[0].mxu0
      %v907 = vadd.f32 0.0, %v906
      %v908 = vpop.f32.mrb[0].mxu0
      %v909 = vpop.f32.mrb[0].mxu0
      %v910 = vadd.f32 0.0, %v909
      %v911 = vpop.f32.mrb[0].mxu0
      %912 = vmatprep.mubr.bf16.mxu0 0
      %913 = vmatmul.mubr.bf16.gmra.mrb[0].mxu0 %v817
      %v914 = vpop.f32.mrb[0].mxu0
      %v915 = vadd.f32 0.0, %v914
      %v916 = vpop.f32.mrb[0].mxu0
      %v917 = vpop.f32.mrb[0].mxu0
      %v918 = vadd.f32 0.0, %v917
      %v919 = vpop.f32.mrb[0].mxu0
      %920 = vmatprep.mubr.bf16.mxu0 0
      %921 = vmatmul.mubr.bf16.gmra.mrb[0].mxu0 %v818
      %v922 = vpop.f32.mrb[0].mxu0
      %v923 = vadd.f32 0.0, %v922
      %v924 = vpop.f32.mrb[0].mxu0
      %v925 = vpop.f32.mrb[0].mxu0
      %v926 = vadd.f32 0.0, %v925
      %v927 = vpop.f32.mrb[0].mxu0
      %928 = vmatprep.mubr.bf16.mxu0 0
      %929 = vmatmul.mubr.bf16.gmra.mrb[0].mxu0 %v819
      %v930 = vpop.f32.mrb[0].mxu0
      %v931 = vadd.f32 0.0, %v930
      %v932 = vpop.f32.mrb[0].mxu0
      %v933 = vpop.f32.mrb[0].mxu0
      %v934 = vadd.f32 0.0, %v933
      %v935 = vpop.f32.mrb[0].mxu0
      %936 = vdwg.mxu0
      %v937 = vadd.f32 %v702, %v907
      %v938 = vadd.f32 %v705, %v910
      %v939 = vadd.f32 %v710, %v915
      %v940 = vadd.f32 %v713, %v918
      %v941 = vadd.f32 %v718, %v923
      %v942 = vadd.f32 %v721, %v926
      %v943 = vadd.f32 %v726, %v931
      %v944 = vadd.f32 %v729, %v934
      %s945 = scalar_lea.vmem %s265, 8
      %v946 = vld [vmem:[%s945] sm:$0xf]
      %v947 = vld [vmem:[%s945 + $0x8] sm:$0xf]
      %v948 = vld [vmem:[%s945 + $0x10] sm:$0xf]
      %v949 = vld [vmem:[%s945 + $0x18] sm:$0xf]
      %v950 = vld [vmem:[%s945 + $0x20] sm:$0xf]
      %v951 = vld [vmem:[%s945 + $0x28] sm:$0xf]
      %v952 = vld [vmem:[%s945 + $0x30] sm:$0xf]
      %v953 = vld [vmem:[%s945 + $0x38] sm:$0xf]
      %s954 = scalar_lea.vmem %s271, 192
      %v955 = vld [vmem:[%s954] sm:$0xf]
      %v956 = vld [vmem:[%s954 + $0x4] sm:$0xf]
      %v957 = vld [vmem:[%s954 + $0x8] sm:$0xf]
      %v958 = vld [vmem:[%s954 + $0xc] sm:$0xf]
      %v959 = vld [vmem:[%s954 + $0x10] sm:$0xf]
      %v960 = vld [vmem:[%s954 + $0x14] sm:$0xf]
      %v961 = vld [vmem:[%s954 + $0x18] sm:$0xf]
      %v962 = vld [vmem:[%s954 + $0x1c] sm:$0xf]
      %v963 = vld [vmem:[%s954 + $0x20] sm:$0xf]
      %v964 = vld [vmem:[%s954 + $0x24] sm:$0xf]
      %v965 = vld [vmem:[%s954 + $0x28] sm:$0xf]
      %v966 = vld [vmem:[%s954 + $0x2c] sm:$0xf]
      %v967 = vld [vmem:[%s954 + $0x30] sm:$0xf]
      %v968 = vld [vmem:[%s954 + $0x34] sm:$0xf]
      %v969 = vld [vmem:[%s954 + $0x38] sm:$0xf]
      %v970 = vld [vmem:[%s954 + $0x3c] sm:$0xf]
      %v979 = vunpack.c.l.b16 %v946
      %v980 = vunpack.c.l.b16 %v947
      %v981 = vunpack.c.l.b16 %v948
      %v982 = vunpack.c.l.b16 %v949
      %v983 = vunpack.c.l.b16 %v950
      %v984 = vunpack.c.l.b16 %v951
      %v985 = vunpack.c.l.b16 %v952
      %v986 = vunpack.c.l.b16 %v953
      %v987 = vpack.c.b16 %v980, %v979
      %v988 = vpack.c.b16 %v982, %v981
      %v989 = vpack.c.b16 %v984, %v983
      %v990 = vpack.c.b16 %v986, %v985
      %v1011 = vunpack.c.l.b16 %v955
      %v1012 = vunpack.c.l.b16 %v956
      %v1013 = vunpack.c.l.b16 %v957
      %v1014 = vunpack.c.l.b16 %v958
      %v1015 = vunpack.c.l.b16 %v959
      %v1016 = vunpack.c.l.b16 %v960
      %v1017 = vunpack.c.l.b16 %v961
      %v1018 = vunpack.c.l.b16 %v962
      %v1019 = vunpack.c.l.b16 %v963
      %v1020 = vunpack.c.l.b16 %v964
      %v1021 = vunpack.c.l.b16 %v965
      %v1022 = vunpack.c.l.b16 %v966
      %v1023 = vunpack.c.l.b16 %v967
      %v1024 = vunpack.c.l.b16 %v968
      %v1025 = vunpack.c.l.b16 %v969
      %v1026 = vunpack.c.l.b16 %v970
      %v1027 = vpack.c.b16 %v1012, %v1011
      %v1028 = vpack.c.b16 %v1014, %v1013
      %v1029 = vpack.c.b16 %v1016, %v1015
      %v1030 = vpack.c.b16 %v1018, %v1017
      %v1031 = vpack.c.b16 %v1020, %v1019
      %v1032 = vpack.c.b16 %v1022, %v1021
      %v1033 = vpack.c.b16 %v1024, %v1023
      %v1034 = vpack.c.b16 %v1026, %v1025
      %1043 = vmatprep.subr.bf16.mxu0 0
      %1044 = vmatpush1.bf16.msra.mxu0 %v1027
      %1045 = vmatprep.subr.bf16.mxu0 0
      %1046 = vmatpush1.bf16.msra.mxu0 %v1028
      %1047 = vmatprep.subr.bf16.mxu0 0
      %1048 = vmatpush1.bf16.msra.mxu0 %v1029
      %1049 = vmatprep.subr.bf16.mxu0 0
      %1050 = vmatpush1.bf16.msra.mxu0 %v1030
      %1051 = vmatprep.subr.bf16.mxu0 0
      %1052 = vmatpush1.bf16.msra.mxu0 %v1031
      %1053 = vmatprep.subr.bf16.mxu0 0
      %1054 = vmatpush1.bf16.msra.mxu0 %v1032
      %1055 = vmatprep.subr.bf16.mxu0 0
      %1056 = vmatpush1.bf16.msra.mxu0 %v1033
      %1057 = vmatprep.subr.bf16.mxu0 0
      %1058 = vmatpush1.bf16.msra.mxu0 %v1034
      %1059 = vmatprep.subr.bf16.mxu0 0
      %1060 = vmatpush1.bf16.msra.mxu0 0
      %1061 = vmatprep.subr.bf16.mxu0 0
      %1062 = vmatpush1.bf16.msra.mxu0 0
      %1063 = vmatprep.subr.bf16.mxu0 0
      %1064 = vmatpush1.bf16.msra.mxu0 0
      %1065 = vmatprep.subr.bf16.mxu0 0
      %1066 = vmatpush1.bf16.msra.mxu0 0
      %1067 = vmatprep.subr.bf16.mxu0 0
      %1068 = vmatpush1.bf16.msra.mxu0 0
      %1069 = vmatprep.subr.bf16.mxu0 0
      %1070 = vmatpush1.bf16.msra.mxu0 0
      %1071 = vmatprep.subr.bf16.mxu0 0
      %1072 = vmatpush1.bf16.msra.mxu0 0
      %1073 = vmatprep.subr.bf16.mxu0 0
      %1074 = vmatpush1.bf16.msra.mxu0 0
      %1075 = vmatprep.mubr.bf16.mxu0 0
      %1076 = vmatmul.mubr.bf16.gmra.mrb[0].mxu0 %v987
      %v1077 = vpop.f32.mrb[0].mxu0
      %v1078 = vadd.f32 0.0, %v1077
      %v1079 = vpop.f32.mrb[0].mxu0
      %v1080 = vpop.f32.mrb[0].mxu0
      %v1081 = vadd.f32 0.0, %v1080
      %v1082 = vpop.f32.mrb[0].mxu0
      %1083 = vmatprep.mubr.bf16.mxu0 0
      %1084 = vmatmul.mubr.bf16.gmra.mrb[0].mxu0 %v988
      %v1085 = vpop.f32.mrb[0].mxu0
      %v1086 = vadd.f32 0.0, %v1085
      %v1087 = vpop.f32.mrb[0].mxu0
      %v1088 = vpop.f32.mrb[0].mxu0
      %v1089 = vadd.f32 0.0, %v1088
      %v1090 = vpop.f32.mrb[0].mxu0
      %1091 = vmatprep.mubr.bf16.mxu0 0
      %1092 = vmatmul.mubr.bf16.gmra.mrb[0].mxu0 %v989
      %v1093 = vpop.f32.mrb[0].mxu0
      %v1094 = vadd.f32 0.0, %v1093
      %v1095 = vpop.f32.mrb[0].mxu0
      %v1096 = vpop.f32.mrb[0].mxu0
      %v1097 = vadd.f32 0.0, %v1096
      %v1098 = vpop.f32.mrb[0].mxu0
      %1099 = vmatprep.mubr.bf16.mxu0 0
      %1100 = vmatmul.mubr.bf16.gmra.mrb[0].mxu0 %v990
      %v1101 = vpop.f32.mrb[0].mxu0
      %v1102 = vadd.f32 0.0, %v1101
      %v1103 = vpop.f32.mrb[0].mxu0
      %v1104 = vpop.f32.mrb[0].mxu0
      %v1105 = vadd.f32 0.0, %v1104
      %v1106 = vpop.f32.mrb[0].mxu0
      %1107 = vdwg.mxu0
      %v1108 = vadd.f32 %v937, %v1078
      %v1109 = vadd.f32 %v938, %v1081
      %v1110 = vadd.f32 %v939, %v1086
      %v1111 = vadd.f32 %v940, %v1089
      %v1112 = vadd.f32 %v941, %v1094
      %v1113 = vadd.f32 %v942, %v1097
      %v1114 = vadd.f32 %v943, %v1102
      %v1115 = vadd.f32 %v944, %v1105
      %v1116 = vld [vmem:[%s945] sm:$0xf]
      %v1117 = vld [vmem:[%s945 + $0x4] sm:$0x1]
      %v1118 = vld [vmem:[%s945 + $0x8] sm:$0xf]
      %v1119 = vld [vmem:[%s945 + $0xc] sm:$0x1]
      %v1120 = vld [vmem:[%s945 + $0x10] sm:$0xf]
      %v1121 = vld [vmem:[%s945 + $0x14] sm:$0x1]
      %v1122 = vld [vmem:[%s945 + $0x18] sm:$0xf]
      %v1123 = vld [vmem:[%s945 + $0x1c] sm:$0x1]
      %v1124 = vld [vmem:[%s945 + $0x20] sm:$0xf]
      %v1125 = vld [vmem:[%s945 + $0x24] sm:$0x1]
      %v1126 = vld [vmem:[%s945 + $0x28] sm:$0xf]
      %v1127 = vld [vmem:[%s945 + $0x2c] sm:$0x1]
      %v1128 = vld [vmem:[%s945 + $0x30] sm:$0xf]
      %v1129 = vld [vmem:[%s945 + $0x34] sm:$0x1]
      %v1130 = vld [vmem:[%s945 + $0x38] sm:$0xf]
      %v1131 = vld [vmem:[%s945 + $0x3c] sm:$0x1]
      %v1133 = vshrl.u32 %v1116, 16
      %v1135 = vrot.slane %v1133, 4
      %v1136 = vshll.u32 %v1116, 16
      %v1138 = vrot.slane %v1136, 5
      %v1139 = vor.u32 %v1135, %v1138
      %v1140 = vrot.slane %v1139, 4
      %v1142 = vshll.u32 %v1117, 16
      %v1144 = vrot.slane %v1142, 5
      %v1145 = vsel %vm336, %v1140, %v1144
      %v1147 = vshrl.u32 %v1118, 16
      %v1149 = vrot.slane %v1147, 4
      %v1150 = vshll.u32 %v1118, 16
      %v1152 = vrot.slane %v1150, 5
      %v1153 = vor.u32 %v1149, %v1152
      %v1154 = vrot.slane %v1153, 4
      %v1156 = vshll.u32 %v1119, 16
      %v1158 = vrot.slane %v1156, 5
      %v1159 = vsel %vm336, %v1154, %v1158
      %v1161 = vshrl.u32 %v1120, 16
      %v1163 = vrot.slane %v1161, 4
      %v1164 = vshll.u32 %v1120, 16
      %v1166 = vrot.slane %v1164, 5
      %v1167 = vor.u32 %v1163, %v1166
      %v1168 = vrot.slane %v1167, 4
      %v1170 = vshll.u32 %v1121, 16
      %v1172 = vrot.slane %v1170, 5
      %v1173 = vsel %vm336, %v1168, %v1172
      %v1175 = vshrl.u32 %v1122, 16
      %v1177 = vrot.slane %v1175, 4
      %v1178 = vshll.u32 %v1122, 16
      %v1180 = vrot.slane %v1178, 5
      %v1181 = vor.u32 %v1177, %v1180
      %v1182 = vrot.slane %v1181, 4
      %v1184 = vshll.u32 %v1123, 16
      %v1186 = vrot.slane %v1184, 5
      %v1187 = vsel %vm336, %v1182, %v1186
      %v1189 = vshrl.u32 %v1124, 16
      %v1191 = vrot.slane %v1189, 4
      %v1192 = vshll.u32 %v1124, 16
      %v1194 = vrot.slane %v1192, 5
      %v1195 = vor.u32 %v1191, %v1194
      %v1196 = vrot.slane %v1195, 4
      %v1198 = vshll.u32 %v1125, 16
      %v1200 = vrot.slane %v1198, 5
      %v1201 = vsel %vm336, %v1196, %v1200
      %v1203 = vshrl.u32 %v1126, 16
      %v1205 = vrot.slane %v1203, 4
      %v1206 = vshll.u32 %v1126, 16
      %v1208 = vrot.slane %v1206, 5
      %v1209 = vor.u32 %v1205, %v1208
      %v1210 = vrot.slane %v1209, 4
      %v1212 = vshll.u32 %v1127, 16
      %v1214 = vrot.slane %v1212, 5
      %v1215 = vsel %vm336, %v1210, %v1214
      %v1217 = vshrl.u32 %v1128, 16
      %v1219 = vrot.slane %v1217, 4
      %v1220 = vshll.u32 %v1128, 16
      %v1222 = vrot.slane %v1220, 5
      %v1223 = vor.u32 %v1219, %v1222
      %v1224 = vrot.slane %v1223, 4
      %v1226 = vshll.u32 %v1129, 16
      %v1228 = vrot.slane %v1226, 5
      %v1229 = vsel %vm336, %v1224, %v1228
      %v1231 = vshrl.u32 %v1130, 16
      %v1233 = vrot.slane %v1231, 4
      %v1234 = vshll.u32 %v1130, 16
      %v1236 = vrot.slane %v1234, 5
      %v1237 = vor.u32 %v1233, %v1236
      %v1238 = vrot.slane %v1237, 4
      %v1240 = vshll.u32 %v1131, 16
      %v1242 = vrot.slane %v1240, 5
      %v1243 = vsel %vm336, %v1238, %v1242
      %s1244 = scalar_lea.vmem %s271, 256
      %v1245 = vld [vmem:[%s1244] sm:$0xf]
      %v1246 = vld [vmem:[%s1244 + $0x4] sm:$0xf]
      %v1247 = vld [vmem:[%s1244 + $0x8] sm:$0xf]
      %v1248 = vld [vmem:[%s1244 + $0xc] sm:$0xf]
      %v1249 = vld [vmem:[%s1244 + $0x10] sm:$0xf]
      %v1250 = vld [vmem:[%s1244 + $0x14] sm:$0xf]
      %v1251 = vld [vmem:[%s1244 + $0x18] sm:$0xf]
      %v1252 = vld [vmem:[%s1244 + $0x1c] sm:$0xf]
      %v1253 = vld [vmem:[%s1244 + $0x20] sm:$0xf]
      %v1254 = vld [vmem:[%s1244 + $0x24] sm:$0xf]
      %v1255 = vld [vmem:[%s1244 + $0x28] sm:$0xf]
      %v1256 = vld [vmem:[%s1244 + $0x2c] sm:$0xf]
      %v1257 = vld [vmem:[%s1244 + $0x30] sm:$0xf]
      %v1258 = vld [vmem:[%s1244 + $0x34] sm:$0xf]
      %v1259 = vld [vmem:[%s1244 + $0x38] sm:$0xf]
      %v1260 = vld [vmem:[%s1244 + $0x3c] sm:$0xf]
      %v1261 = vunpack.c.l.b16 %v1145
      %v1262 = vunpack.c.l.b16 %v1159
      %v1263 = vunpack.c.l.b16 %v1173
      %v1264 = vunpack.c.l.b16 %v1187
      %v1265 = vunpack.c.l.b16 %v1201
      %v1266 = vunpack.c.l.b16 %v1215
      %v1267 = vunpack.c.l.b16 %v1229
      %v1268 = vunpack.c.l.b16 %v1243
      %v1269 = vpack.c.b16 %v1262, %v1261
      %v1270 = vpack.c.b16 %v1264, %v1263
      %v1271 = vpack.c.b16 %v1266, %v1265
      %v1272 = vpack.c.b16 %v1268, %v1267
      %v1293 = vunpack.c.l.b16 %v1245
      %v1294 = vunpack.c.l.b16 %v1246
      %v1295 = vunpack.c.l.b16 %v1247
      %v1296 = vunpack.c.l.b16 %v1248
      %v1297 = vunpack.c.l.b16 %v1249
      %v1298 = vunpack.c.l.b16 %v1250
      %v1299 = vunpack.c.l.b16 %v1251
      %v1300 = vunpack.c.l.b16 %v1252
      %v1301 = vunpack.c.l.b16 %v1253
      %v1302 = vunpack.c.l.b16 %v1254
      %v1303 = vunpack.c.l.b16 %v1255
      %v1304 = vunpack.c.l.b16 %v1256
      %v1305 = vunpack.c.l.b16 %v1257
      %v1306 = vunpack.c.l.b16 %v1258
      %v1307 = vunpack.c.l.b16 %v1259
      %v1308 = vunpack.c.l.b16 %v1260
      %v1309 = vpack.c.b16 %v1294, %v1293
      %v1310 = vpack.c.b16 %v1296, %v1295
      %v1311 = vpack.c.b16 %v1298, %v1297
      %v1312 = vpack.c.b16 %v1300, %v1299
      %v1313 = vpack.c.b16 %v1302, %v1301
      %v1314 = vpack.c.b16 %v1304, %v1303
      %v1315 = vpack.c.b16 %v1306, %v1305
      %v1316 = vpack.c.b16 %v1308, %v1307
      %1325 = vmatprep.subr.bf16.mxu0 0
      %1326 = vmatpush1.bf16.msra.mxu0 %v1309
      %1327 = vmatprep.subr.bf16.mxu0 0
      %1328 = vmatpush1.bf16.msra.mxu0 %v1310
      %1329 = vmatprep.subr.bf16.mxu0 0
      %1330 = vmatpush1.bf16.msra.mxu0 %v1311
      %1331 = vmatprep.subr.bf16.mxu0 0
      %1332 = vmatpush1.bf16.msra.mxu0 %v1312
      %1333 = vmatprep.subr.bf16.mxu0 0
      %1334 = vmatpush1.bf16.msra.mxu0 %v1313
      %1335 = vmatprep.subr.bf16.mxu0 0
      %1336 = vmatpush1.bf16.msra.mxu0 %v1314
      %1337 = vmatprep.subr.bf16.mxu0 0
      %1338 = vmatpush1.bf16.msra.mxu0 %v1315
      %1339 = vmatprep.subr.bf16.mxu0 0
      %1340 = vmatpush1.bf16.msra.mxu0 %v1316
      %1341 = vmatprep.subr.bf16.mxu0 0
      %1342 = vmatpush1.bf16.msra.mxu0 0
      %1343 = vmatprep.subr.bf16.mxu0 0
      %1344 = vmatpush1.bf16.msra.mxu0 0
      %1345 = vmatprep.subr.bf16.mxu0 0
      %1346 = vmatpush1.bf16.msra.mxu0 0
      %1347 = vmatprep.subr.bf16.mxu0 0
      %1348 = vmatpush1.bf16.msra.mxu0 0
      %1349 = vmatprep.subr.bf16.mxu0 0
      %1350 = vmatpush1.bf16.msra.mxu0 0
      %1351 = vmatprep.subr.bf16.mxu0 0
      %1352 = vmatpush1.bf16.msra.mxu0 0
      %1353 = vmatprep.subr.bf16.mxu0 0
      %1354 = vmatpush1.bf16.msra.mxu0 0
      %1355 = vmatprep.subr.bf16.mxu0 0
      %1356 = vmatpush1.bf16.msra.mxu0 0
      %1357 = vmatprep.mubr.bf16.mxu0 0
      %1358 = vmatmul.mubr.bf16.gmra.mrb[0].mxu0 %v1269
      %v1359 = vpop.f32.mrb[0].mxu0
      %v1360 = vadd.f32 0.0, %v1359
      %v1361 = vpop.f32.mrb[0].mxu0
      %v1362 = vpop.f32.mrb[0].mxu0
      %v1363 = vadd.f32 0.0, %v1362
      %v1364 = vpop.f32.mrb[0].mxu0
      %1365 = vmatprep.mubr.bf16.mxu0 0
      %1366 = vmatmul.mubr.bf16.gmra.mrb[0].mxu0 %v1270
      %v1367 = vpop.f32.mrb[0].mxu0
      %v1368 = vadd.f32 0.0, %v1367
      %v1369 = vpop.f32.mrb[0].mxu0
      %v1370 = vpop.f32.mrb[0].mxu0
      %v1371 = vadd.f32 0.0, %v1370
      %v1372 = vpop.f32.mrb[0].mxu0
      %1373 = vmatprep.mubr.bf16.mxu0 0
      %1374 = vmatmul.mubr.bf16.gmra.mrb[0].mxu0 %v1271
      %v1375 = vpop.f32.mrb[0].mxu0
      %v1376 = vadd.f32 0.0, %v1375
      %v1377 = vpop.f32.mrb[0].mxu0
      %v1378 = vpop.f32.mrb[0].mxu0
      %v1379 = vadd.f32 0.0, %v1378
      %v1380 = vpop.f32.mrb[0].mxu0
      %1381 = vmatprep.mubr.bf16.mxu0 0
      %1382 = vmatmul.mubr.bf16.gmra.mrb[0].mxu0 %v1272
      %v1383 = vpop.f32.mrb[0].mxu0
      %v1384 = vadd.f32 0.0, %v1383
      %v1385 = vpop.f32.mrb[0].mxu0
      %v1386 = vpop.f32.mrb[0].mxu0
      %v1387 = vadd.f32 0.0, %v1386
      %v1388 = vpop.f32.mrb[0].mxu0
      %1389 = vdwg.mxu0
      %v1390 = vadd.f32 %v1108, %v1360
      %v1391 = vadd.f32 %v1109, %v1363
      %v1392 = vadd.f32 %v1110, %v1368
      %v1393 = vadd.f32 %v1111, %v1371
      %v1394 = vadd.f32 %v1112, %v1376
      %v1395 = vadd.f32 %v1113, %v1379
      %v1396 = vadd.f32 %v1114, %v1384
      %v1397 = vadd.f32 %v1115, %v1387
      %v1398 = vld [vmem:[%s945] sm:$0xe]
      %v1399 = vld [vmem:[%s945 + $0x8] sm:$0xe]
      %v1400 = vld [vmem:[%s945 + $0x10] sm:$0xe]
      %v1401 = vld [vmem:[%s945 + $0x18] sm:$0xe]
      %v1402 = vld [vmem:[%s945 + $0x20] sm:$0xe]
      %v1403 = vld [vmem:[%s945 + $0x28] sm:$0xe]
      %v1404 = vld [vmem:[%s945 + $0x30] sm:$0xe]
      %v1405 = vld [vmem:[%s945 + $0x38] sm:$0xe]
      %v1422 = vrot.slane %v1398, 5
      %v1423 = vrot.slane %v1422, 4
      %v1424 = vrot.slane %v1117, 5
      %v1425 = vsel %vm758, %v1423, %v1424
      %v1426 = vrot.slane %v1399, 5
      %v1427 = vrot.slane %v1426, 4
      %v1428 = vrot.slane %v1119, 5
      %v1429 = vsel %vm758, %v1427, %v1428
      %v1430 = vrot.slane %v1400, 5
      %v1431 = vrot.slane %v1430, 4
      %v1432 = vrot.slane %v1121, 5
      %v1433 = vsel %vm758, %v1431, %v1432
      %v1434 = vrot.slane %v1401, 5
      %v1435 = vrot.slane %v1434, 4
      %v1436 = vrot.slane %v1123, 5
      %v1437 = vsel %vm758, %v1435, %v1436
      %v1438 = vrot.slane %v1402, 5
      %v1439 = vrot.slane %v1438, 4
      %v1440 = vrot.slane %v1125, 5
      %v1441 = vsel %vm758, %v1439, %v1440
      %v1442 = vrot.slane %v1403, 5
      %v1443 = vrot.slane %v1442, 4
      %v1444 = vrot.slane %v1127, 5
      %v1445 = vsel %vm758, %v1443, %v1444
      %v1446 = vrot.slane %v1404, 5
      %v1447 = vrot.slane %v1446, 4
      %v1448 = vrot.slane %v1129, 5
      %v1449 = vsel %vm758, %v1447, %v1448
      %v1450 = vrot.slane %v1405, 5
      %v1451 = vrot.slane %v1450, 4
      %v1452 = vrot.slane %v1131, 5
      %v1453 = vsel %vm758, %v1451, %v1452
      %s1454 = scalar_lea.vmem %s271, 320
      %v1455 = vld [vmem:[%s1454] sm:$0xf]
      %v1456 = vld [vmem:[%s1454 + $0x4] sm:$0xf]
      %v1457 = vld [vmem:[%s1454 + $0x8] sm:$0xf]
      %v1458 = vld [vmem:[%s1454 + $0xc] sm:$0xf]
      %v1459 = vld [vmem:[%s1454 + $0x10] sm:$0xf]
      %v1460 = vld [vmem:[%s1454 + $0x14] sm:$0xf]
      %v1461 = vld [vmem:[%s1454 + $0x18] sm:$0xf]
      %v1462 = vld [vmem:[%s1454 + $0x1c] sm:$0xf]
      %v1463 = vld [vmem:[%s1454 + $0x20] sm:$0xf]
      %v1464 = vld [vmem:[%s1454 + $0x24] sm:$0xf]
      %v1465 = vld [vmem:[%s1454 + $0x28] sm:$0xf]
      %v1466 = vld [vmem:[%s1454 + $0x2c] sm:$0xf]
      %v1467 = vld [vmem:[%s1454 + $0x30] sm:$0xf]
      %v1468 = vld [vmem:[%s1454 + $0x34] sm:$0xf]
      %v1469 = vld [vmem:[%s1454 + $0x38] sm:$0xf]
      %v1470 = vld [vmem:[%s1454 + $0x3c] sm:$0xf]
      %v1471 = vunpack.c.l.b16 %v1425
      %v1472 = vunpack.c.l.b16 %v1429
      %v1473 = vunpack.c.l.b16 %v1433
      %v1474 = vunpack.c.l.b16 %v1437
      %v1475 = vunpack.c.l.b16 %v1441
      %v1476 = vunpack.c.l.b16 %v1445
      %v1477 = vunpack.c.l.b16 %v1449
      %v1478 = vunpack.c.l.b16 %v1453
      %v1479 = vpack.c.b16 %v1472, %v1471
      %v1480 = vpack.c.b16 %v1474, %v1473
      %v1481 = vpack.c.b16 %v1476, %v1475
      %v1482 = vpack.c.b16 %v1478, %v1477
      %v1503 = vunpack.c.l.b16 %v1455
      %v1504 = vunpack.c.l.b16 %v1456
      %v1505 = vunpack.c.l.b16 %v1457
      %v1506 = vunpack.c.l.b16 %v1458
      %v1507 = vunpack.c.l.b16 %v1459
      %v1508 = vunpack.c.l.b16 %v1460
      %v1509 = vunpack.c.l.b16 %v1461
      %v1510 = vunpack.c.l.b16 %v1462
      %v1511 = vunpack.c.l.b16 %v1463
      %v1512 = vunpack.c.l.b16 %v1464
      %v1513 = vunpack.c.l.b16 %v1465
      %v1514 = vunpack.c.l.b16 %v1466
      %v1515 = vunpack.c.l.b16 %v1467
      %v1516 = vunpack.c.l.b16 %v1468
      %v1517 = vunpack.c.l.b16 %v1469
      %v1518 = vunpack.c.l.b16 %v1470
      %v1519 = vpack.c.b16 %v1504, %v1503
      %v1520 = vpack.c.b16 %v1506, %v1505
      %v1521 = vpack.c.b16 %v1508, %v1507
      %v1522 = vpack.c.b16 %v1510, %v1509
      %v1523 = vpack.c.b16 %v1512, %v1511
      %v1524 = vpack.c.b16 %v1514, %v1513
      %v1525 = vpack.c.b16 %v1516, %v1515
      %v1526 = vpack.c.b16 %v1518, %v1517
      %1535 = vmatprep.subr.bf16.mxu0 0
      %1536 = vmatpush1.bf16.msra.mxu0 %v1519
      %1537 = vmatprep.subr.bf16.mxu0 0
      %1538 = vmatpush1.bf16.msra.mxu0 %v1520
      %1539 = vmatprep.subr.bf16.mxu0 0
      %1540 = vmatpush1.bf16.msra.mxu0 %v1521
      %1541 = vmatprep.subr.bf16.mxu0 0
      %1542 = vmatpush1.bf16.msra.mxu0 %v1522
      %1543 = vmatprep.subr.bf16.mxu0 0
      %1544 = vmatpush1.bf16.msra.mxu0 %v1523
      %1545 = vmatprep.subr.bf16.mxu0 0
      %1546 = vmatpush1.bf16.msra.mxu0 %v1524
      %1547 = vmatprep.subr.bf16.mxu0 0
      %1548 = vmatpush1.bf16.msra.mxu0 %v1525
      %1549 = vmatprep.subr.bf16.mxu0 0
      %1550 = vmatpush1.bf16.msra.mxu0 %v1526
      %1551 = vmatprep.subr.bf16.mxu0 0
      %1552 = vmatpush1.bf16.msra.mxu0 0
      %1553 = vmatprep.subr.bf16.mxu0 0
      %1554 = vmatpush1.bf16.msra.mxu0 0
      %1555 = vmatprep.subr.bf16.mxu0 0
      %1556 = vmatpush1.bf16.msra.mxu0 0
      %1557 = vmatprep.subr.bf16.mxu0 0
      %1558 = vmatpush1.bf16.msra.mxu0 0
      %1559 = vmatprep.subr.bf16.mxu0 0
      %1560 = vmatpush1.bf16.msra.mxu0 0
      %1561 = vmatprep.subr.bf16.mxu0 0
      %1562 = vmatpush1.bf16.msra.mxu0 0
      %1563 = vmatprep.subr.bf16.mxu0 0
      %1564 = vmatpush1.bf16.msra.mxu0 0
      %1565 = vmatprep.subr.bf16.mxu0 0
      %1566 = vmatpush1.bf16.msra.mxu0 0
      %1567 = vmatprep.mubr.bf16.mxu0 0
      %1568 = vmatmul.mubr.bf16.gmra.mrb[0].mxu0 %v1479
      %v1569 = vpop.f32.mrb[0].mxu0
      %v1570 = vadd.f32 0.0, %v1569
      %v1571 = vpop.f32.mrb[0].mxu0
      %v1572 = vpop.f32.mrb[0].mxu0
      %v1573 = vadd.f32 0.0, %v1572
      %v1574 = vpop.f32.mrb[0].mxu0
      %1575 = vmatprep.mubr.bf16.mxu0 0
      %1576 = vmatmul.mubr.bf16.gmra.mrb[0].mxu0 %v1480
      %v1577 = vpop.f32.mrb[0].mxu0
      %v1578 = vadd.f32 0.0, %v1577
      %v1579 = vpop.f32.mrb[0].mxu0
      %v1580 = vpop.f32.mrb[0].mxu0
      %v1581 = vadd.f32 0.0, %v1580
      %v1582 = vpop.f32.mrb[0].mxu0
      %1583 = vmatprep.mubr.bf16.mxu0 0
      %1584 = vmatmul.mubr.bf16.gmra.mrb[0].mxu0 %v1481
      %v1585 = vpop.f32.mrb[0].mxu0
      %v1586 = vadd.f32 0.0, %v1585
      %v1587 = vpop.f32.mrb[0].mxu0
      %v1588 = vpop.f32.mrb[0].mxu0
      %v1589 = vadd.f32 0.0, %v1588
      %v1590 = vpop.f32.mrb[0].mxu0
      %1591 = vmatprep.mubr.bf16.mxu0 0
      %1592 = vmatmul.mubr.bf16.gmra.mrb[0].mxu0 %v1482
      %v1593 = vpop.f32.mrb[0].mxu0
      %v1594 = vadd.f32 0.0, %v1593
      %v1595 = vpop.f32.mrb[0].mxu0
      %v1596 = vpop.f32.mrb[0].mxu0
      %v1597 = vadd.f32 0.0, %v1596
      %v1598 = vpop.f32.mrb[0].mxu0
      %1599 = vdwg.mxu0
      %v1600 = vadd.f32 %v1390, %v1570
      %v1601 = vadd.f32 %v1391, %v1573
      %v1602 = vadd.f32 %v1392, %v1578
      %v1603 = vadd.f32 %v1393, %v1581
      %v1604 = vadd.f32 %v1394, %v1586
      %v1605 = vadd.f32 %v1395, %v1589
      %v1606 = vadd.f32 %v1396, %v1594
      %v1607 = vadd.f32 %v1397, %v1597
      %s1608 = scalar_lea.vmem %s265, 16
      %v1609 = vld [vmem:[%s1608] sm:$0xf]
      %v1610 = vld [vmem:[%s1608 + $0x8] sm:$0xf]
      %v1611 = vld [vmem:[%s1608 + $0x10] sm:$0xf]
      %v1612 = vld [vmem:[%s1608 + $0x18] sm:$0xf]
      %v1613 = vld [vmem:[%s1608 + $0x20] sm:$0xf]
      %v1614 = vld [vmem:[%s1608 + $0x28] sm:$0xf]
      %v1615 = vld [vmem:[%s1608 + $0x30] sm:$0xf]
      %v1616 = vld [vmem:[%s1608 + $0x38] sm:$0xf]
      %s1617 = scalar_lea.vmem %s271, 384
      %v1618 = vld [vmem:[%s1617] sm:$0xf]
      %v1619 = vld [vmem:[%s1617 + $0x4] sm:$0xf]
      %v1620 = vld [vmem:[%s1617 + $0x8] sm:$0xf]
      %v1621 = vld [vmem:[%s1617 + $0xc] sm:$0xf]
      %v1622 = vld [vmem:[%s1617 + $0x10] sm:$0xf]
      %v1623 = vld [vmem:[%s1617 + $0x14] sm:$0xf]
      %v1624 = vld [vmem:[%s1617 + $0x18] sm:$0xf]
      %v1625 = vld [vmem:[%s1617 + $0x1c] sm:$0xf]
      %v1626 = vld [vmem:[%s1617 + $0x20] sm:$0xf]
      %v1627 = vld [vmem:[%s1617 + $0x24] sm:$0xf]
      %v1628 = vld [vmem:[%s1617 + $0x28] sm:$0xf]
      %v1629 = vld [vmem:[%s1617 + $0x2c] sm:$0xf]
      %v1630 = vld [vmem:[%s1617 + $0x30] sm:$0xf]
      %v1631 = vld [vmem:[%s1617 + $0x34] sm:$0xf]
      %v1632 = vld [vmem:[%s1617 + $0x38] sm:$0xf]
      %v1633 = vld [vmem:[%s1617 + $0x3c] sm:$0xf]
      %v1642 = vunpack.c.l.b16 %v1609
      %v1643 = vunpack.c.l.b16 %v1610
      %v1644 = vunpack.c.l.b16 %v1611
      %v1645 = vunpack.c.l.b16 %v1612
      %v1646 = vunpack.c.l.b16 %v1613
      %v1647 = vunpack.c.l.b16 %v1614
      %v1648 = vunpack.c.l.b16 %v1615
      %v1649 = vunpack.c.l.b16 %v1616
      %v1650 = vpack.c.b16 %v1643, %v1642
      %v1651 = vpack.c.b16 %v1645, %v1644
      %v1652 = vpack.c.b16 %v1647, %v1646
      %v1653 = vpack.c.b16 %v1649, %v1648
      %v1674 = vunpack.c.l.b16 %v1618
      %v1675 = vunpack.c.l.b16 %v1619
      %v1676 = vunpack.c.l.b16 %v1620
      %v1677 = vunpack.c.l.b16 %v1621
      %v1678 = vunpack.c.l.b16 %v1622
      %v1679 = vunpack.c.l.b16 %v1623
      %v1680 = vunpack.c.l.b16 %v1624
      %v1681 = vunpack.c.l.b16 %v1625
      %v1682 = vunpack.c.l.b16 %v1626
      %v1683 = vunpack.c.l.b16 %v1627
      %v1684 = vunpack.c.l.b16 %v1628
      %v1685 = vunpack.c.l.b16 %v1629
      %v1686 = vunpack.c.l.b16 %v1630
      %v1687 = vunpack.c.l.b16 %v1631
      %v1688 = vunpack.c.l.b16 %v1632
      %v1689 = vunpack.c.l.b16 %v1633
      %v1690 = vpack.c.b16 %v1675, %v1674
      %v1691 = vpack.c.b16 %v1677, %v1676
      %v1692 = vpack.c.b16 %v1679, %v1678
      %v1693 = vpack.c.b16 %v1681, %v1680
      %v1694 = vpack.c.b16 %v1683, %v1682
      %v1695 = vpack.c.b16 %v1685, %v1684
      %v1696 = vpack.c.b16 %v1687, %v1686
      %v1697 = vpack.c.b16 %v1689, %v1688
      %1706 = vmatprep.subr.bf16.mxu0 0
      %1707 = vmatpush1.bf16.msra.mxu0 %v1690
      %1708 = vmatprep.subr.bf16.mxu0 0
      %1709 = vmatpush1.bf16.msra.mxu0 %v1691
      %1710 = vmatprep.subr.bf16.mxu0 0
      %1711 = vmatpush1.bf16.msra.mxu0 %v1692
      %1712 = vmatprep.subr.bf16.mxu0 0
      %1713 = vmatpush1.bf16.msra.mxu0 %v1693
      %1714 = vmatprep.subr.bf16.mxu0 0
      %1715 = vmatpush1.bf16.msra.mxu0 %v1694
      %1716 = vmatprep.subr.bf16.mxu0 0
      %1717 = vmatpush1.bf16.msra.mxu0 %v1695
      %1718 = vmatprep.subr.bf16.mxu0 0
      %1719 = vmatpush1.bf16.msra.mxu0 %v1696
      %1720 = vmatprep.subr.bf16.mxu0 0
      %1721 = vmatpush1.bf16.msra.mxu0 %v1697
      %1722 = vmatprep.subr.bf16.mxu0 0
      %1723 = vmatpush1.bf16.msra.mxu0 0
      %1724 = vmatprep.subr.bf16.mxu0 0
      %1725 = vmatpush1.bf16.msra.mxu0 0
      %1726 = vmatprep.subr.bf16.mxu0 0
      %1727 = vmatpush1.bf16.msra.mxu0 0
      %1728 = vmatprep.subr.bf16.mxu0 0
      %1729 = vmatpush1.bf16.msra.mxu0 0
      %1730 = vmatprep.subr.bf16.mxu0 0
      %1731 = vmatpush1.bf16.msra.mxu0 0
      %1732 = vmatprep.subr.bf16.mxu0 0
      %1733 = vmatpush1.bf16.msra.mxu0 0
      %1734 = vmatprep.subr.bf16.mxu0 0
      %1735 = vmatpush1.bf16.msra.mxu0 0
      %1736 = vmatprep.subr.bf16.mxu0 0
      %1737 = vmatpush1.bf16.msra.mxu0 0
      %1738 = vmatprep.mubr.bf16.mxu0 0
      %1739 = vmatmul.mubr.bf16.gmra.mrb[0].mxu0 %v1650
      %v1740 = vpop.f32.mrb[0].mxu0
      %v1741 = vadd.f32 0.0, %v1740
      %v1742 = vpop.f32.mrb[0].mxu0
      %v1743 = vpop.f32.mrb[0].mxu0
      %v1744 = vadd.f32 0.0, %v1743
      %v1745 = vpop.f32.mrb[0].mxu0
      %1746 = vmatprep.mubr.bf16.mxu0 0
      %1747 = vmatmul.mubr.bf16.gmra.mrb[0].mxu0 %v1651
      %v1748 = vpop.f32.mrb[0].mxu0
      %v1749 = vadd.f32 0.0, %v1748
      %v1750 = vpop.f32.mrb[0].mxu0
      %v1751 = vpop.f32.mrb[0].mxu0
      %v1752 = vadd.f32 0.0, %v1751
      %v1753 = vpop.f32.mrb[0].mxu0
      %1754 = vmatprep.mubr.bf16.mxu0 0
      %1755 = vmatmul.mubr.bf16.gmra.mrb[0].mxu0 %v1652
      %v1756 = vpop.f32.mrb[0].mxu0
      %v1757 = vadd.f32 0.0, %v1756
      %v1758 = vpop.f32.mrb[0].mxu0
      %v1759 = vpop.f32.mrb[0].mxu0
      %v1760 = vadd.f32 0.0, %v1759
      %v1761 = vpop.f32.mrb[0].mxu0
      %1762 = vmatprep.mubr.bf16.mxu0 0
      %1763 = vmatmul.mubr.bf16.gmra.mrb[0].mxu0 %v1653
      %v1764 = vpop.f32.mrb[0].mxu0
      %v1765 = vadd.f32 0.0, %v1764
      %v1766 = vpop.f32.mrb[0].mxu0
      %v1767 = vpop.f32.mrb[0].mxu0
      %v1768 = vadd.f32 0.0, %v1767
      %v1769 = vpop.f32.mrb[0].mxu0
      %1770 = vdwg.mxu0
      %v1771 = vadd.f32 %v1600, %v1741
      %v1772 = vadd.f32 %v1601, %v1744
      %v1773 = vadd.f32 %v1602, %v1749
      %v1774 = vadd.f32 %v1603, %v1752
      %v1775 = vadd.f32 %v1604, %v1757
      %v1776 = vadd.f32 %v1605, %v1760
      %v1777 = vadd.f32 %v1606, %v1765
      %v1778 = vadd.f32 %v1607, %v1768
      %v1779 = vld [vmem:[%s1608] sm:$0xf]
      %v1780 = vld [vmem:[%s1608 + $0x4] sm:$0x1]
      %v1781 = vld [vmem:[%s1608 + $0x8] sm:$0xf]
      %v1782 = vld [vmem:[%s1608 + $0xc] sm:$0x1]
      %v1783 = vld [vmem:[%s1608 + $0x10] sm:$0xf]
      %v1784 = vld [vmem:[%s1608 + $0x14] sm:$0x1]
      %v1785 = vld [vmem:[%s1608 + $0x18] sm:$0xf]
      %v1786 = vld [vmem:[%s1608 + $0x1c] sm:$0x1]
      %v1787 = vld [vmem:[%s1608 + $0x20] sm:$0xf]
      %v1788 = vld [vmem:[%s1608 + $0x24] sm:$0x1]
      %v1789 = vld [vmem:[%s1608 + $0x28] sm:$0xf]
      %v1790 = vld [vmem:[%s1608 + $0x2c] sm:$0x1]
      %v1791 = vld [vmem:[%s1608 + $0x30] sm:$0xf]
      %v1792 = vld [vmem:[%s1608 + $0x34] sm:$0x1]
      %v1793 = vld [vmem:[%s1608 + $0x38] sm:$0xf]
      %v1794 = vld [vmem:[%s1608 + $0x3c] sm:$0x1]
      %v1796 = vshrl.u32 %v1779, 16
      %v1798 = vrot.slane %v1796, 4
      %v1799 = vshll.u32 %v1779, 16
      %v1801 = vrot.slane %v1799, 5
      %v1802 = vor.u32 %v1798, %v1801
      %v1803 = vrot.slane %v1802, 4
      %v1805 = vshll.u32 %v1780, 16
      %v1807 = vrot.slane %v1805, 5
      %v1808 = vsel %vm336, %v1803, %v1807
      %v1810 = vshrl.u32 %v1781, 16
      %v1812 = vrot.slane %v1810, 4
      %v1813 = vshll.u32 %v1781, 16
      %v1815 = vrot.slane %v1813, 5
      %v1816 = vor.u32 %v1812, %v1815
      %v1817 = vrot.slane %v1816, 4
      %v1819 = vshll.u32 %v1782, 16
      %v1821 = vrot.slane %v1819, 5
      %v1822 = vsel %vm336, %v1817, %v1821
      %v1824 = vshrl.u32 %v1783, 16
      %v1826 = vrot.slane %v1824, 4
      %v1827 = vshll.u32 %v1783, 16
      %v1829 = vrot.slane %v1827, 5
      %v1830 = vor.u32 %v1826, %v1829
      %v1831 = vrot.slane %v1830, 4
      %v1833 = vshll.u32 %v1784, 16
      %v1835 = vrot.slane %v1833, 5
      %v1836 = vsel %vm336, %v1831, %v1835
      %v1838 = vshrl.u32 %v1785, 16
      %v1840 = vrot.slane %v1838, 4
      %v1841 = vshll.u32 %v1785, 16
      %v1843 = vrot.slane %v1841, 5
      %v1844 = vor.u32 %v1840, %v1843
      %v1845 = vrot.slane %v1844, 4
      %v1847 = vshll.u32 %v1786, 16
      %v1849 = vrot.slane %v1847, 5
      %v1850 = vsel %vm336, %v1845, %v1849
      %v1852 = vshrl.u32 %v1787, 16
      %v1854 = vrot.slane %v1852, 4
      %v1855 = vshll.u32 %v1787, 16
      %v1857 = vrot.slane %v1855, 5
      %v1858 = vor.u32 %v1854, %v1857
      %v1859 = vrot.slane %v1858, 4
      %v1861 = vshll.u32 %v1788, 16
      %v1863 = vrot.slane %v1861, 5
      %v1864 = vsel %vm336, %v1859, %v1863
      %v1866 = vshrl.u32 %v1789, 16
      %v1868 = vrot.slane %v1866, 4
      %v1869 = vshll.u32 %v1789, 16
      %v1871 = vrot.slane %v1869, 5
      %v1872 = vor.u32 %v1868, %v1871
      %v1873 = vrot.slane %v1872, 4
      %v1875 = vshll.u32 %v1790, 16
      %v1877 = vrot.slane %v1875, 5
      %v1878 = vsel %vm336, %v1873, %v1877
      %v1880 = vshrl.u32 %v1791, 16
      %v1882 = vrot.slane %v1880, 4
      %v1883 = vshll.u32 %v1791, 16
      %v1885 = vrot.slane %v1883, 5
      %v1886 = vor.u32 %v1882, %v1885
      %v1887 = vrot.slane %v1886, 4
      %v1889 = vshll.u32 %v1792, 16
      %v1891 = vrot.slane %v1889, 5
      %v1892 = vsel %vm336, %v1887, %v1891
      %v1894 = vshrl.u32 %v1793, 16
      %v1896 = vrot.slane %v1894, 4
      %v1897 = vshll.u32 %v1793, 16
      %v1899 = vrot.slane %v1897, 5
      %v1900 = vor.u32 %v1896, %v1899
      %v1901 = vrot.slane %v1900, 4
      %v1903 = vshll.u32 %v1794, 16
      %v1905 = vrot.slane %v1903, 5
      %v1906 = vsel %vm336, %v1901, %v1905
      %s1907 = scalar_lea.vmem %s271, 448
      %v1908 = vld [vmem:[%s1907] sm:$0xf]
      %v1909 = vld [vmem:[%s1907 + $0x4] sm:$0xf]
      %v1910 = vld [vmem:[%s1907 + $0x8] sm:$0xf]
      %v1911 = vld [vmem:[%s1907 + $0xc] sm:$0xf]
      %v1912 = vld [vmem:[%s1907 + $0x10] sm:$0xf]
      %v1913 = vld [vmem:[%s1907 + $0x14] sm:$0xf]
      %v1914 = vld [vmem:[%s1907 + $0x18] sm:$0xf]
      %v1915 = vld [vmem:[%s1907 + $0x1c] sm:$0xf]
      %v1916 = vld [vmem:[%s1907 + $0x20] sm:$0xf]
      %v1917 = vld [vmem:[%s1907 + $0x24] sm:$0xf]
      %v1918 = vld [vmem:[%s1907 + $0x28] sm:$0xf]
      %v1919 = vld [vmem:[%s1907 + $0x2c] sm:$0xf]
      %v1920 = vld [vmem:[%s1907 + $0x30] sm:$0xf]
      %v1921 = vld [vmem:[%s1907 + $0x34] sm:$0xf]
      %v1922 = vld [vmem:[%s1907 + $0x38] sm:$0xf]
      %v1923 = vld [vmem:[%s1907 + $0x3c] sm:$0xf]
      %v1924 = vunpack.c.l.b16 %v1808
      %v1925 = vunpack.c.l.b16 %v1822
      %v1926 = vunpack.c.l.b16 %v1836
      %v1927 = vunpack.c.l.b16 %v1850
      %v1928 = vunpack.c.l.b16 %v1864
      %v1929 = vunpack.c.l.b16 %v1878
      %v1930 = vunpack.c.l.b16 %v1892
      %v1931 = vunpack.c.l.b16 %v1906
      %v1932 = vpack.c.b16 %v1925, %v1924
      %v1933 = vpack.c.b16 %v1927, %v1926
      %v1934 = vpack.c.b16 %v1929, %v1928
      %v1935 = vpack.c.b16 %v1931, %v1930
      %v1956 = vunpack.c.l.b16 %v1908
      %v1957 = vunpack.c.l.b16 %v1909
      %v1958 = vunpack.c.l.b16 %v1910
      %v1959 = vunpack.c.l.b16 %v1911
      %v1960 = vunpack.c.l.b16 %v1912
      %v1961 = vunpack.c.l.b16 %v1913
      %v1962 = vunpack.c.l.b16 %v1914
      %v1963 = vunpack.c.l.b16 %v1915
      %v1964 = vunpack.c.l.b16 %v1916
      %v1965 = vunpack.c.l.b16 %v1917
      %v1966 = vunpack.c.l.b16 %v1918
      %v1967 = vunpack.c.l.b16 %v1919
      %v1968 = vunpack.c.l.b16 %v1920
      %v1969 = vunpack.c.l.b16 %v1921
      %v1970 = vunpack.c.l.b16 %v1922
      %v1971 = vunpack.c.l.b16 %v1923
      %v1972 = vpack.c.b16 %v1957, %v1956
      %v1973 = vpack.c.b16 %v1959, %v1958
      %v1974 = vpack.c.b16 %v1961, %v1960
      %v1975 = vpack.c.b16 %v1963, %v1962
      %v1976 = vpack.c.b16 %v1965, %v1964
      %v1977 = vpack.c.b16 %v1967, %v1966
      %v1978 = vpack.c.b16 %v1969, %v1968
      %v1979 = vpack.c.b16 %v1971, %v1970
      %1988 = vmatprep.subr.bf16.mxu0 0
      %1989 = vmatpush1.bf16.msra.mxu0 %v1972
      %1990 = vmatprep.subr.bf16.mxu0 0
      %1991 = vmatpush1.bf16.msra.mxu0 %v1973
      %1992 = vmatprep.subr.bf16.mxu0 0
      %1993 = vmatpush1.bf16.msra.mxu0 %v1974
      %1994 = vmatprep.subr.bf16.mxu0 0
      %1995 = vmatpush1.bf16.msra.mxu0 %v1975
      %1996 = vmatprep.subr.bf16.mxu0 0
      %1997 = vmatpush1.bf16.msra.mxu0 %v1976
      %1998 = vmatprep.subr.bf16.mxu0 0
      %1999 = vmatpush1.bf16.msra.mxu0 %v1977
      %2000 = vmatprep.subr.bf16.mxu0 0
      %2001 = vmatpush1.bf16.msra.mxu0 %v1978
      %2002 = vmatprep.subr.bf16.mxu0 0
      %2003 = vmatpush1.bf16.msra.mxu0 %v1979
      %2004 = vmatprep.subr.bf16.mxu0 0
      %2005 = vmatpush1.bf16.msra.mxu0 0
      %2006 = vmatprep.subr.bf16.mxu0 0
      %2007 = vmatpush1.bf16.msra.mxu0 0
      %2008 = vmatprep.subr.bf16.mxu0 0
      %2009 = vmatpush1.bf16.msra.mxu0 0
      %2010 = vmatprep.subr.bf16.mxu0 0
      %2011 = vmatpush1.bf16.msra.mxu0 0
      %2012 = vmatprep.subr.bf16.mxu0 0
      %2013 = vmatpush1.bf16.msra.mxu0 0
      %2014 = vmatprep.subr.bf16.mxu0 0
      %2015 = vmatpush1.bf16.msra.mxu0 0
      %2016 = vmatprep.subr.bf16.mxu0 0
      %2017 = vmatpush1.bf16.msra.mxu0 0
      %2018 = vmatprep.subr.bf16.mxu0 0
      %2019 = vmatpush1.bf16.msra.mxu0 0
      %2020 = vmatprep.mubr.bf16.mxu0 0
      %2021 = vmatmul.mubr.bf16.gmra.mrb[0].mxu0 %v1932
      %v2022 = vpop.f32.mrb[0].mxu0
      %v2023 = vadd.f32 0.0, %v2022
      %v2024 = vpop.f32.mrb[0].mxu0
      %v2025 = vpop.f32.mrb[0].mxu0
      %v2026 = vadd.f32 0.0, %v2025
      %v2027 = vpop.f32.mrb[0].mxu0
      %2028 = vmatprep.mubr.bf16.mxu0 0
      %2029 = vmatmul.mubr.bf16.gmra.mrb[0].mxu0 %v1933
      %v2030 = vpop.f32.mrb[0].mxu0
      %v2031 = vadd.f32 0.0, %v2030
      %v2032 = vpop.f32.mrb[0].mxu0
      %v2033 = vpop.f32.mrb[0].mxu0
      %v2034 = vadd.f32 0.0, %v2033
      %v2035 = vpop.f32.mrb[0].mxu0
      %2036 = vmatprep.mubr.bf16.mxu0 0
      %2037 = vmatmul.mubr.bf16.gmra.mrb[0].mxu0 %v1934
      %v2038 = vpop.f32.mrb[0].mxu0
      %v2039 = vadd.f32 0.0, %v2038
      %v2040 = vpop.f32.mrb[0].mxu0
      %v2041 = vpop.f32.mrb[0].mxu0
      %v2042 = vadd.f32 0.0, %v2041
      %v2043 = vpop.f32.mrb[0].mxu0
      %2044 = vmatprep.mubr.bf16.mxu0 0
      %2045 = vmatmul.mubr.bf16.gmra.mrb[0].mxu0 %v1935
      %v2046 = vpop.f32.mrb[0].mxu0
      %v2047 = vadd.f32 0.0, %v2046
      %v2048 = vpop.f32.mrb[0].mxu0
      %v2049 = vpop.f32.mrb[0].mxu0
      %v2050 = vadd.f32 0.0, %v2049
      %v2051 = vpop.f32.mrb[0].mxu0
      %2052 = vdwg.mxu0
      %v2053 = vadd.f32 %v1771, %v2023
      %v2054 = vadd.f32 %v1772, %v2026
      %v2055 = vadd.f32 %v1773, %v2031
      %v2056 = vadd.f32 %v1774, %v2034
      %v2057 = vadd.f32 %v1775, %v2039
      %v2058 = vadd.f32 %v1776, %v2042
      %v2059 = vadd.f32 %v1777, %v2047
      %v2060 = vadd.f32 %v1778, %v2050
      %v2061 = vld [vmem:[%s1608] sm:$0xe]
      %v2062 = vld [vmem:[%s1608 + $0x8] sm:$0xe]
      %v2063 = vld [vmem:[%s1608 + $0x10] sm:$0xe]
      %v2064 = vld [vmem:[%s1608 + $0x18] sm:$0xe]
      %v2065 = vld [vmem:[%s1608 + $0x20] sm:$0xe]
      %v2066 = vld [vmem:[%s1608 + $0x28] sm:$0xe]
      %v2067 = vld [vmem:[%s1608 + $0x30] sm:$0xe]
      %v2068 = vld [vmem:[%s1608 + $0x38] sm:$0xe]
      %v2085 = vrot.slane %v2061, 5
      %v2086 = vrot.slane %v2085, 4
      %v2087 = vrot.slane %v1780, 5
      %v2088 = vsel %vm758, %v2086, %v2087
      %v2089 = vrot.slane %v2062, 5
      %v2090 = vrot.slane %v2089, 4
      %v2091 = vrot.slane %v1782, 5
      %v2092 = vsel %vm758, %v2090, %v2091
      %v2093 = vrot.slane %v2063, 5
      %v2094 = vrot.slane %v2093, 4
      %v2095 = vrot.slane %v1784, 5
      %v2096 = vsel %vm758, %v2094, %v2095
      %v2097 = vrot.slane %v2064, 5
      %v2098 = vrot.slane %v2097, 4
      %v2099 = vrot.slane %v1786, 5
      %v2100 = vsel %vm758, %v2098, %v2099
      %v2101 = vrot.slane %v2065, 5
      %v2102 = vrot.slane %v2101, 4
      %v2103 = vrot.slane %v1788, 5
      %v2104 = vsel %vm758, %v2102, %v2103
      %v2105 = vrot.slane %v2066, 5
      %v2106 = vrot.slane %v2105, 4
      %v2107 = vrot.slane %v1790, 5
      %v2108 = vsel %vm758, %v2106, %v2107
      %v2109 = vrot.slane %v2067, 5
      %v2110 = vrot.slane %v2109, 4
      %v2111 = vrot.slane %v1792, 5
      %v2112 = vsel %vm758, %v2110, %v2111
      %v2113 = vrot.slane %v2068, 5
      %v2114 = vrot.slane %v2113, 4
      %v2115 = vrot.slane %v1794, 5
      %v2116 = vsel %vm758, %v2114, %v2115
      %s2117 = scalar_lea.vmem %s271, 512
      %v2118 = vld [vmem:[%s2117] sm:$0xf]
      %v2119 = vld [vmem:[%s2117 + $0x4] sm:$0xf]
      %v2120 = vld [vmem:[%s2117 + $0x8] sm:$0xf]
      %v2121 = vld [vmem:[%s2117 + $0xc] sm:$0xf]
      %v2122 = vld [vmem:[%s2117 + $0x10] sm:$0xf]
      %v2123 = vld [vmem:[%s2117 + $0x14] sm:$0xf]
      %v2124 = vld [vmem:[%s2117 + $0x18] sm:$0xf]
      %v2125 = vld [vmem:[%s2117 + $0x1c] sm:$0xf]
      %v2126 = vld [vmem:[%s2117 + $0x20] sm:$0xf]
      %v2127 = vld [vmem:[%s2117 + $0x24] sm:$0xf]
      %v2128 = vld [vmem:[%s2117 + $0x28] sm:$0xf]
      %v2129 = vld [vmem:[%s2117 + $0x2c] sm:$0xf]
      %v2130 = vld [vmem:[%s2117 + $0x30] sm:$0xf]
      %v2131 = vld [vmem:[%s2117 + $0x34] sm:$0xf]
      %v2132 = vld [vmem:[%s2117 + $0x38] sm:$0xf]
      %v2133 = vld [vmem:[%s2117 + $0x3c] sm:$0xf]
      %v2134 = vunpack.c.l.b16 %v2088
      %v2135 = vunpack.c.l.b16 %v2092
      %v2136 = vunpack.c.l.b16 %v2096
      %v2137 = vunpack.c.l.b16 %v2100
      %v2138 = vunpack.c.l.b16 %v2104
      %v2139 = vunpack.c.l.b16 %v2108
      %v2140 = vunpack.c.l.b16 %v2112
      %v2141 = vunpack.c.l.b16 %v2116
      %v2142 = vpack.c.b16 %v2135, %v2134
      %v2143 = vpack.c.b16 %v2137, %v2136
      %v2144 = vpack.c.b16 %v2139, %v2138
      %v2145 = vpack.c.b16 %v2141, %v2140
      %v2166 = vunpack.c.l.b16 %v2118
      %v2167 = vunpack.c.l.b16 %v2119
      %v2168 = vunpack.c.l.b16 %v2120
      %v2169 = vunpack.c.l.b16 %v2121
      %v2170 = vunpack.c.l.b16 %v2122
      %v2171 = vunpack.c.l.b16 %v2123
      %v2172 = vunpack.c.l.b16 %v2124
      %v2173 = vunpack.c.l.b16 %v2125
      %v2174 = vunpack.c.l.b16 %v2126
      %v2175 = vunpack.c.l.b16 %v2127
      %v2176 = vunpack.c.l.b16 %v2128
      %v2177 = vunpack.c.l.b16 %v2129
      %v2178 = vunpack.c.l.b16 %v2130
      %v2179 = vunpack.c.l.b16 %v2131
      %v2180 = vunpack.c.l.b16 %v2132
      %v2181 = vunpack.c.l.b16 %v2133
      %v2182 = vpack.c.b16 %v2167, %v2166
      %v2183 = vpack.c.b16 %v2169, %v2168
      %v2184 = vpack.c.b16 %v2171, %v2170
      %v2185 = vpack.c.b16 %v2173, %v2172
      %v2186 = vpack.c.b16 %v2175, %v2174
      %v2187 = vpack.c.b16 %v2177, %v2176
      %v2188 = vpack.c.b16 %v2179, %v2178
      %v2189 = vpack.c.b16 %v2181, %v2180
      %2198 = vmatprep.subr.bf16.mxu0 0
      %2199 = vmatpush1.bf16.msra.mxu0 %v2182
      %2200 = vmatprep.subr.bf16.mxu0 0
      %2201 = vmatpush1.bf16.msra.mxu0 %v2183
      %2202 = vmatprep.subr.bf16.mxu0 0
      %2203 = vmatpush1.bf16.msra.mxu0 %v2184
      %2204 = vmatprep.subr.bf16.mxu0 0
      %2205 = vmatpush1.bf16.msra.mxu0 %v2185
      %2206 = vmatprep.subr.bf16.mxu0 0
      %2207 = vmatpush1.bf16.msra.mxu0 %v2186
      %2208 = vmatprep.subr.bf16.mxu0 0
      %2209 = vmatpush1.bf16.msra.mxu0 %v2187
      %2210 = vmatprep.subr.bf16.mxu0 0
      %2211 = vmatpush1.bf16.msra.mxu0 %v2188
      %2212 = vmatprep.subr.bf16.mxu0 0
      %2213 = vmatpush1.bf16.msra.mxu0 %v2189
      %2214 = vmatprep.subr.bf16.mxu0 0
      %2215 = vmatpush1.bf16.msra.mxu0 0
      %2216 = vmatprep.subr.bf16.mxu0 0
      %2217 = vmatpush1.bf16.msra.mxu0 0
      %2218 = vmatprep.subr.bf16.mxu0 0
      %2219 = vmatpush1.bf16.msra.mxu0 0
      %2220 = vmatprep.subr.bf16.mxu0 0
      %2221 = vmatpush1.bf16.msra.mxu0 0
      %2222 = vmatprep.subr.bf16.mxu0 0
      %2223 = vmatpush1.bf16.msra.mxu0 0
      %2224 = vmatprep.subr.bf16.mxu0 0
      %2225 = vmatpush1.bf16.msra.mxu0 0
      %2226 = vmatprep.subr.bf16.mxu0 0
      %2227 = vmatpush1.bf16.msra.mxu0 0
      %2228 = vmatprep.subr.bf16.mxu0 0
      %2229 = vmatpush1.bf16.msra.mxu0 0
      %2230 = vmatprep.mubr.bf16.mxu0 0
      %2231 = vmatmul.mubr.bf16.gmra.mrb[0].mxu0 %v2142
      %v2232 = vpop.f32.mrb[0].mxu0
      %v2233 = vadd.f32 0.0, %v2232
      %v2234 = vpop.f32.mrb[0].mxu0
      %v2235 = vpop.f32.mrb[0].mxu0
      %v2236 = vadd.f32 0.0, %v2235
      %v2237 = vpop.f32.mrb[0].mxu0
      %2238 = vmatprep.mubr.bf16.mxu0 0
      %2239 = vmatmul.mubr.bf16.gmra.mrb[0].mxu0 %v2143
      %v2240 = vpop.f32.mrb[0].mxu0
      %v2241 = vadd.f32 0.0, %v2240
      %v2242 = vpop.f32.mrb[0].mxu0
      %v2243 = vpop.f32.mrb[0].mxu0
      %v2244 = vadd.f32 0.0, %v2243
      %v2245 = vpop.f32.mrb[0].mxu0
      %2246 = vmatprep.mubr.bf16.mxu0 0
      %2247 = vmatmul.mubr.bf16.gmra.mrb[0].mxu0 %v2144
      %v2248 = vpop.f32.mrb[0].mxu0
      %v2249 = vadd.f32 0.0, %v2248
      %v2250 = vpop.f32.mrb[0].mxu0
      %v2251 = vpop.f32.mrb[0].mxu0
      %v2252 = vadd.f32 0.0, %v2251
      %v2253 = vpop.f32.mrb[0].mxu0
      %2254 = vmatprep.mubr.bf16.mxu0 0
      %2255 = vmatmul.mubr.bf16.gmra.mrb[0].mxu0 %v2145
      %v2256 = vpop.f32.mrb[0].mxu0
      %v2257 = vadd.f32 0.0, %v2256
      %v2258 = vpop.f32.mrb[0].mxu0
      %v2259 = vpop.f32.mrb[0].mxu0
      %v2260 = vadd.f32 0.0, %v2259
      %v2261 = vpop.f32.mrb[0].mxu0
      %2262 = vdwg.mxu0
      %v2263 = vadd.f32 %v2053, %v2233
      %v2264 = vadd.f32 %v2054, %v2236
      %v2265 = vadd.f32 %v2055, %v2241
      %v2266 = vadd.f32 %v2056, %v2244
      %v2267 = vadd.f32 %v2057, %v2249
      %v2268 = vadd.f32 %v2058, %v2252
      %v2269 = vadd.f32 %v2059, %v2257
      %v2270 = vadd.f32 %v2060, %v2260
      %v2271 = vld [vmem:[#allocation2] sm:$0xff]
      %v2272 = vld [vmem:[#allocation2 + $0x8] sm:$0xff]
      %v2273 = vld [vmem:[#allocation2 + $0x10] sm:$0xff]
      %v2274 = vld [vmem:[#allocation2 + $0x18] sm:$0xff]
      %v2275 = vld [vmem:[#allocation2 + $0x20] sm:$0xff]
      %v2276 = vld [vmem:[#allocation2 + $0x28] sm:$0xff]
      %v2277 = vld [vmem:[#allocation2 + $0x30] sm:$0xff]
      %v2278 = vld [vmem:[#allocation2 + $0x38] sm:$0xff]
      %v2279 = vadd.f32 %v2271, %v2263
      %v2280 = vadd.f32 %v2272, %v2264
      %v2281 = vadd.f32 %v2273, %v2265
      %v2282 = vadd.f32 %v2274, %v2266
      %v2283 = vadd.f32 %v2275, %v2267
      %v2284 = vadd.f32 %v2276, %v2268
      %v2285 = vadd.f32 %v2277, %v2269
      %v2286 = vadd.f32 %v2278, %v2270
      %2287 = vst [vmem:[#allocation2] sm:$0xff] %v2279
      %2288 = vst [vmem:[#allocation2 + $0x8] sm:$0xff] %v2280
      %2289 = vst [vmem:[#allocation2 + $0x10] sm:$0xff] %v2281
      %2290 = vst [vmem:[#allocation2 + $0x18] sm:$0xff] %v2282
      %2291 = vst [vmem:[#allocation2 + $0x20] sm:$0xff] %v2283
      %2292 = vst [vmem:[#allocation2 + $0x28] sm:$0xff] %v2284
      %2293 = vst [vmem:[#allocation2 + $0x30] sm:$0xff] %v2285
      %2294 = vst [vmem:[#allocation2 + $0x38] sm:$0xff] %v2286
      %p2295 = scmp.eq.s32.totalorder %s23, 2
      // Predicated region
      $region37: #{_lambda_.6} parent=31 // pred_check
        %p2296 = pneg %p2295
      $region38: #{_lambda_.6} parent=31 // pred_check_branch
        %2298 = sbr.rel (%p2296) target = $region40
      $region39: #{_lambda_.6} parent=31 // pred_region
        %v2299 = vld [vmem:[#allocation2] sm:$0xff]
        %v2300 = vld [vmem:[#allocation2 + $0x8] sm:$0xff]
        %v2301 = vld [vmem:[#allocation2 + $0x10] sm:$0xff]
        %v2302 = vld [vmem:[#allocation2 + $0x18] sm:$0xff]
        %v2303 = vld [vmem:[#allocation2 + $0x20] sm:$0xff]
        %v2304 = vld [vmem:[#allocation2 + $0x28] sm:$0xff]
        %v2305 = vld [vmem:[#allocation2 + $0x30] sm:$0xff]
        %v2306 = vld [vmem:[#allocation2 + $0x38] sm:$0xff]
        %v2307 = vld [vmem:[%s2] sm:$0x1]
        %v2309 = vlaneseq
        %v2310 = vshrl.u32 %v2309, 7
        %v2311 = vsub.s32 0, %v2310
        %v2312 = vrot.slane %v2307, %v2311
        %v2314 = vadd.f32 %v2299, %v2312
        %v2315 = vadd.f32 %v2300, %v2312
        %v2316 = vadd.f32 %v2301, %v2312
        %v2317 = vadd.f32 %v2302, %v2312
        %v2318 = vadd.f32 %v2303, %v2312
        %v2319 = vadd.f32 %v2304, %v2312
        %v2320 = vadd.f32 %v2305, %v2312
        %v2321 = vadd.f32 %v2306, %v2312
        %v2322 = vpack.c.bf16 %v2315, %v2314
        %v2323 = vpack.c.bf16 %v2317, %v2316
        %v2324 = vpack.c.bf16 %v2319, %v2318
        %v2325 = vpack.c.bf16 %v2321, %v2320
        %v2330 = vunpack.c.l.b16 %v2322
        %v2331 = vunpack.c.h.b16 %v2322
        %v2332 = vunpack.c.l.b16 %v2323
        %v2333 = vunpack.c.h.b16 %v2323
        %v2334 = vunpack.c.l.b16 %v2324
        %v2335 = vunpack.c.h.b16 %v2324
        %v2336 = vunpack.c.l.b16 %v2325
        %v2337 = vunpack.c.h.b16 %v2325
        %v2338 = vpack.c.b16 %v2330, %v2330
        %v2339 = vpack.c.b16 %v2331, %v2331
        %v2340 = vpack.c.b16 %v2332, %v2332
        %v2341 = vpack.c.b16 %v2333, %v2333
        %v2342 = vpack.c.b16 %v2334, %v2334
        %v2343 = vpack.c.b16 %v2335, %v2335
        %v2344 = vpack.c.b16 %v2336, %v2336
        %v2345 = vpack.c.b16 %v2337, %v2337
        %2354 = vst [vmem:[%s280] sm:$0xf] %v2338
        %2355 = vst [vmem:[%s280 + $0x4] sm:$0xf] %v2339
        %2356 = vst [vmem:[%s280 + $0x8] sm:$0xf] %v2340
        %2357 = vst [vmem:[%s280 + $0xc] sm:$0xf] %v2341
        %2358 = vst [vmem:[%s280 + $0x10] sm:$0xf] %v2342
        %2359 = vst [vmem:[%s280 + $0x14] sm:$0xf] %v2343
        %2360 = vst [vmem:[%s280 + $0x18] sm:$0xf] %v2344
        %2361 = vst [vmem:[%s280 + $0x1c] sm:$0xf] %v2345
        %v2362 = vadd.f32 %v2314, %v2315
        %v2363 = vadd.f32 %v2362, %v2316
        %v2364 = vadd.f32 %v2363, %v2317
        %v2365 = vadd.f32 %v2364, %v2318
        %v2366 = vadd.f32 %v2365, %v2319
        %v2367 = vadd.f32 %v2366, %v2320
        %v2368 = vadd.f32 %v2367, %v2321
        %v2369 = vrot.slane %v2368, 4
        %v2370 = vadd.f32 %v2368, %v2369
        %v2371 = vrot.slane %v2370, 2
        %v2372 = vadd.f32 %v2370, %v2371
        %v2373 = vrot.slane %v2372, 1
        %v2374 = vadd.f32 %v2372, %v2373
        %2375 = vst [vmem:[%s288] sm:$0x1] %v2374
        %v2376 = vmul.f32 %v2314, %v2314
        %v2377 = vmul.f32 %v2315, %v2315
        %v2378 = vmul.f32 %v2316, %v2316
        %v2379 = vmul.f32 %v2317, %v2317
        %v2380 = vmul.f32 %v2318, %v2318
        %v2381 = vmul.f32 %v2319, %v2319
        %v2382 = vmul.f32 %v2320, %v2320
        %v2383 = vmul.f32 %v2321, %v2321
        %v2384 = vadd.f32 %v2376, %v2377
        %v2385 = vadd.f32 %v2384, %v2378
        %v2386 = vadd.f32 %v2385, %v2379
        %v2387 = vadd.f32 %v2386, %v2380
        %v2388 = vadd.f32 %v2387, %v2381
        %v2389 = vadd.f32 %v2388, %v2382
        %v2390 = vadd.f32 %v2389, %v2383
        %v2391 = vrot.slane %v2390, 4
        %v2392 = vadd.f32 %v2390, %v2391
        %v2393 = vrot.slane %v2392, 2
        %v2394 = vadd.f32 %v2392, %v2393
        %v2395 = vrot.slane %v2394, 1
        %v2396 = vadd.f32 %v2394, %v2395
        %2397 = vst [vmem:[%s288 + $0x1] sm:$0x1] %v2396
      $region40: #{_lambda_.6} parent=31 // pred_fallthru
        _
      %p2398 = scmp.lt.s32.totalorder %s21, 1
      %s2399 = scalar_select %p2398, %s21, 1
      %p2400 = scmp.lt.s32.totalorder %s22, 3
      %s2401 = scalar_select %p2400, %s22, 3
      %s2402 = smul.addr %s2401, 8
      %s2403 = smul.addr %s2399, 32
      %s2404 = sadd.s32 %s2402, %s2403
      %s2405 = smul.addr %s2404, 4
      %s2406 = scalar_lea.vmem %s3, %s2405
      %p2407 = scmp.lt.s32.totalorder %s21, 1
      %s2408 = scalar_select %p2407, %s21, 1
      %p2409 = scmp.lt.s32.totalorder %s22, 3
      %s2410 = scalar_select %p2409, %s22, 3
      %s2411 = smul.addr %s2408, 4
      %s2412 = sadd.s32 %s2410, %s2411
      %s2413 = smul.addr %s2412, 2
      %s2414 = scalar_lea.vmem %s4, %s2413
      // Predicated region
      $region41: #{_lambda_.6} parent=31 // pred_check
        %p2415 = pneg %p132
      $region42: #{_lambda_.6} parent=31 // pred_check_branch
        %2417 = sbr.rel (%p2415) target = $region44
      $region43: #{_lambda_.6} parent=31 // pred_region
        _
      $region44: #{_lambda_.6} parent=31 // pred_fallthru
        _
      // Predicated region
      $region45: #{_lambda_.6} parent=31 // pred_check
        %p2418 = pneg %p160
      $region46: #{_lambda_.6} parent=31 // pred_check_branch
        %2420 = sbr.rel (%p2418) target = $region48
      $region47: #{_lambda_.6} parent=31 // pred_region
        _
      $region48: #{_lambda_.6} parent=31 // pred_fallthru
        _
    $region32: #{_lambda_.6} parent=5 // pred_fallthru
      _
    %p2421 = scmp.le.s32.totalorder 2, %s11
    // Predicated region
    $region49: #{_lambda_.6} parent=5 // pred_check
      %p2422 = pneg %p2421
    $region50: #{_lambda_.6} parent=5 // pred_check_branch
      %2424 = sbr.rel (%p2422) target = $region52
    $region51: #{_lambda_.6} parent=5 // pred_region
      %s2425 = ssub.s32 %s11, 2
      // Predicated region
      $region53: #{_lambda_.6} parent=51 // pred_check
        %p2426 = pneg %p138
      $region54: #{_lambda_.6} parent=51 // pred_check_branch
        %2428 = sbr.rel (%p2426) target = $region56
      $region55: #{_lambda_.6} parent=51 // pred_region
        %p2429 = scmp.lt.s32.totalorder %s24, 1
        %s2430 = scalar_select %p2429, %s24, 1
        %p2431 = scmp.lt.s32.totalorder %s25, 3
        %s2432 = scalar_select %p2431, %s25, 3
        %s2433 = smul.addr %s2432, 8
        %s2434 = smul.addr %s2430, 32
        %s2435 = sadd.s32 %s2433, %s2434
        %s2436 = smul.addr %s2435, 4
        %s2437 = scalar_lea.vmem %s3, %s2436
      $region56: #{_lambda_.6} parent=51 // pred_fallthru
        _
      // Predicated region
      $region57: #{_lambda_.6} parent=51 // pred_check
        %p2438 = pneg %p166
      $region58: #{_lambda_.6} parent=51 // pred_check_branch
        %2440 = sbr.rel (%p2438) target = $region60
      $region59: #{_lambda_.6} parent=51 // pred_region
        %p2441 = scmp.lt.s32.totalorder %s24, 1
        %s2442 = scalar_select %p2441, %s24, 1
        %p2443 = scmp.lt.s32.totalorder %s25, 3
        %s2444 = scalar_select %p2443, %s25, 3
        %s2445 = smul.addr %s2442, 4
        %s2446 = sadd.s32 %s2444, %s2445
        %s2447 = smul.addr %s2446, 2
        %s2448 = scalar_lea.vmem %s4, %s2447
      $region60: #{_lambda_.6} parent=51 // pred_fallthru
        _
    $region52: #{_lambda_.6} parent=5 // pred_fallthru
      _
  $region6: #{_lambda_.6} parent=0 // loop_footer
    %s15 = sadd.s32 1, %s11
  $region7: #{_lambda_.6} parent=0 // loop_footer_branch
    %10 = sbr.rel target = $region3
  $region8: #{_lambda_.6} parent=0 // loop_exit
    _

</llo_original>
